<compile_context>
chip_gen: v7x
topology: tpu7x:2x2x1
jax: 0.10.0
libtpu: 0.0.40
codegen_flags: <defaults>
</compile_context>

<pallas_src>
import functools
import math

import jax
import jax.numpy as jnp
from jax import lax
from jax.experimental import pallas as pl
from jax.experimental.pallas import tpu as pltpu


# ---------------------------------------------------------------------------
# single-pass kernel: conv3x3 + GroupNorm + ReLU fused per sample
# ---------------------------------------------------------------------------
def _fused_conv_gn_relu_kernel(xp_ref, w_ref, gmat_ref, gamma_ref, beta_ref,
                               o_ref, sum_sc, sq_sc, *, row_tile, eps, inv_cnt):
    # xp_ref    : (1, Hp, Wp, Cin)  zero-padded NHWC sample
    # w_ref     : (9, Cin, C)       conv taps, tap index = kh*3 + kw
    # gmat_ref  : (C, C)            same-group indicator matrix
    # gamma/beta: (1, C)
    # o_ref     : (1, H*W, C)       output; also the VMEM buffer between the two phases
    # sum_sc/sq_sc : (8, C) f32     per-channel sum / sum-of-squares accumulators
    wp = xp_ref.shape[2]
    cin = xp_ref.shape[3]
    w_out = wp - 2
    h_out = xp_ref.shape[1] - 2
    c = o_ref.shape[2]
    n_ht = h_out // row_tile
    m = row_tile * w_out

    sum_sc[...] = jnp.zeros_like(sum_sc)
    sq_sc[...] = jnp.zeros_like(sq_sc)

    def _store_start(t):
        start = t * m
        if not isinstance(start, int) and m % 8 == 0:
            start = pl.multiple_of(start, 8)
        return start

    # phase 1: conv row tiles -> o_ref (stays in VMEM), fused channel statistics
    def conv_tile(t, carry):
        acc = jnp.zeros((m, c), jnp.float32)
        for kh in range(3):
            rows = xp_ref[0, pl.ds(t * row_tile + kh, row_tile), :, :]   # (TH, Wp, Cin)
            for kw in range(3):
                win = rows[:, kw:kw + w_out, :].reshape(m, cin)          # (TH*W, Cin)
                acc = acc + jnp.dot(win, w_ref[kh * 3 + kw],
                                    preferred_element_type=jnp.float32)
        o_ref[0, pl.ds(_store_start(t), m), :] = acc
        sum_sc[...] += jnp.sum(acc, axis=0, keepdims=True)
        sq_sc[...] += jnp.sum(acc * acc, axis=0, keepdims=True)
        return carry

    if n_ht == 1:
        conv_tile(0, 0)
    else:
        lax.fori_loop(0, n_ht, conv_tile, 0)

    # fold per-group GroupNorm statistics into a per-channel affine (in-kernel)
    gsum = jnp.dot(sum_sc[...], gmat_ref[...], preferred_element_type=jnp.float32)
    gsq = jnp.dot(sq_sc[...], gmat_ref[...], preferred_element_type=jnp.float32)
    mean = gsum * inv_cnt
    # TODO(synk): E[x^2]-E[x]^2 in f32 can lose precision for large-magnitude activations.
    var = jnp.maximum(gsq * inv_cnt - mean * mean, 0.0)
    rstd = lax.rsqrt(var + eps)
    scale = gamma_ref[...] * rstd                       # (8, C), identical rows
    shift = beta_ref[...] - mean * scale
    scale_r = scale[0:1, :]
    shift_r = shift[0:1, :]

    # phase 2: normalize + ReLU in place over the VMEM-resident output block
    def norm_tile(t, carry):
        sl = pl.ds(_store_start(t), m)
        y = o_ref[0, sl, :]
        o_ref[0, sl, :] = jnp.maximum(y * scale_r + shift_r, 0.0)
        return carry

    if n_ht == 1:
        norm_tile(0, 0)
    else:
        lax.fori_loop(0, n_ht, norm_tile, 0)


# ---------------------------------------------------------------------------
# two-pass fallback kernels (whole-sample activation does not fit VMEM)
# ---------------------------------------------------------------------------
def _conv_stats_kernel(xp_ref, w_ref, y_ref, sum_ref, sq_ref):
    # xp_ref: (1, Hp, Wp, Cin); w_ref: (9, Cin, C)
    # y_ref : (1, TH*W, C); sum_ref/sq_ref: (1, 1, 8, C) per-row-tile partial stats
    j = pl.program_id(1)
    wp = xp_ref.shape[2]
    cin = xp_ref.shape[3]
    w_out = wp - 2
    m = y_ref.shape[1]
    c = y_ref.shape[2]
    th = m // w_out

    acc = jnp.zeros((m, c), jnp.float32)
    for kh in range(3):
        rows = xp_ref[0, pl.ds(j * th + kh, th), :, :]
        for kw in range(3):
            win = rows[:, kw:kw + w_out, :].reshape(m, cin)
            acc = acc + jnp.dot(win, w_ref[kh * 3 + kw],
                                preferred_element_type=jnp.float32)
    y_ref[0] = acc
    s = jnp.sum(acc, axis=0, keepdims=True)
    q = jnp.sum(acc * acc, axis=0, keepdims=True)
    sum_ref[0, 0] = jnp.broadcast_to(s, (8, c))
    sq_ref[0, 0] = jnp.broadcast_to(q, (8, c))


def _gn_relu_kernel(y_ref, scale_ref, shift_ref, o_ref):
    o_ref[...] = jnp.maximum(
        y_ref[...] * scale_ref[...] + shift_ref[...], 0.0).astype(o_ref.dtype)


# ---------------------------------------------------------------------------
# wrapper
# ---------------------------------------------------------------------------
def _vmem_config():
    phys = 64 * 1024 * 1024
    try:
        info = pltpu.get_tpu_info()
        phys = int(getattr(info, "vmem_capacity_bytes", phys))
    except Exception:
        pass
    if phys >= 100 * 1024 * 1024:            # v5e / v6e: 128 MiB physical VMEM
        return min(phys - 24 * 1024 * 1024, 100 * 1024 * 1024), 4 * 1024 * 1024
    # v7x: 64 MiB physical VMEM per TensorCore
    return min(phys - 20 * 1024 * 1024, 44 * 1024 * 1024), 1 * 1024 * 1024


def _pick_row_tile(h, w, c, cap_bytes):
    # largest divisor of H with row_tile*W a multiple of 8 (sublane) and slab <= cap
    best = h
    for t in range(1, h + 1):
        if h % t:
            continue
        if t != h and (t * w) % 8 != 0:
            continue
        if t * w * c * 4 <= cap_bytes:
            best = t
    return best


def conv_gn_relu(x, weight, gamma, beta, *, eps=1e-5, groups=None,
                 row_tile=None, force_two_pass=False):
    """Forward of ConvGnReLU: Conv2d(3x3, s=1, p=1, no bias) -> GroupNorm -> ReLU.

    x: (N, Cin, H, W) f32; weight: (Cout, Cin, 3, 3); gamma/beta: (Cout,).
    GroupNorm uses per-sample, per-group statistics with biased variance (PyTorch).
    Returns (N, Cout, H, W) f32.
    """
    n, cin, h, w = x.shape
    c, cin_w, kh_sz, kw_sz = weight.shape
    assert cin_w == cin and kh_sz == 3 and kw_sz == 3
    if groups is None:
        groups = max(1, c // 8)
    assert c % groups == 0
    cpg = c // groups
    hp, wp = h + 2, w + 2

    vmem_limit, slab_cap = _vmem_config()

    # NCHW -> NHWC (channels on lanes) + zero pad.
    xp = jnp.pad(jnp.transpose(x, (0, 2, 3, 1)),
                 ((0, 0), (1, 1), (1, 1), (0, 0)))

    # (Cout, Cin, 3, 3) -> (9, Cin, Cout), tap-major.  No lane padding of Cout: the
    # HBM-resident activation keeps last dim = Cout (masked stores beat 8x DMA bytes).
    wt = jnp.transpose(weight, (2, 3, 1, 0)).reshape(9, cin, c)

    if row_tile is None:
        row_tile = _pick_row_tile(h, w, c, slab_cap)
    assert h % row_tile == 0
    assert (row_tile * w) % 8 == 0 or row_tile == h, (
        "row_tile*W must be a multiple of 8 (TPU sublanes) unless row_tile == H")
    n_ht = h // row_tile
    m = row_tile * w

    # Single-pass feasibility: double-buffered padded input + output slab + constants.
    single_need = 4 * (2 * hp * wp * cin + 2 * h * w * c
                       + 9 * cin * c + c * c + 4 * c + 2 * 8 * c)
    use_single = (not force_two_pass) and single_need <= int(0.7 * vmem_limit)

    if use_single:
        group_id = jnp.arange(c, dtype=jnp.int32) // cpg
        gmat = (group_id[:, None] == group_id[None, :]).astype(jnp.float32)
        kern = functools.partial(
            _fused_conv_gn_relu_kernel, row_tile=row_tile, eps=float(eps),
            inv_cnt=1.0 / float(cpg * h * w))
        out_flat = pl.pallas_call(
            kern,
            out_shape=jax.ShapeDtypeStruct((n, h * w, c), jnp.float32),
            grid=(n,),
            in_specs=[
                pl.BlockSpec((1, hp, wp, cin), lambda i: (i, 0, 0, 0)),
                pl.BlockSpec((9, cin, c), lambda i: (0, 0, 0)),
                pl.BlockSpec((c, c), lambda i: (0, 0)),
                pl.BlockSpec((1, c), lambda i: (0, 0)),
                pl.BlockSpec((1, c), lambda i: (0, 0)),
            ],
            out_specs=pl.BlockSpec((1, h * w, c), lambda i: (i, 0, 0)),
            scratch_shapes=[pltpu.VMEM((8, c), jnp.float32),
                            pltpu.VMEM((8, c), jnp.float32)],
            compiler_params=pltpu.CompilerParams(
                dimension_semantics=("parallel",),
                vmem_limit_bytes=vmem_limit),
        )(xp, wt, gmat, gamma.reshape(1, c), beta.reshape(1, c))
    else:
        # ---- pass 1: conv + per-row-tile partial channel statistics ----
        conv_out, ssum, ssq = pl.pallas_call(
            _conv_stats_kernel,
            out_shape=(jax.ShapeDtypeStruct((n, h * w, c), jnp.float32),
                       jax.ShapeDtypeStruct((n, n_ht, 8, c), jnp.float32),
                       jax.ShapeDtypeStruct((n, n_ht, 8, c), jnp.float32)),
            grid=(n, n_ht),
            in_specs=[
                pl.BlockSpec((1, hp, wp, cin), lambda i, j: (i, 0, 0, 0)),
                pl.BlockSpec((9, cin, c), lambda i, j: (0, 0, 0)),
            ],
            out_specs=(
                pl.BlockSpec((1, m, c), lambda i, j: (i, j, 0)),
                pl.BlockSpec((1, 1, 8, c), lambda i, j: (i, j, 0, 0)),
                pl.BlockSpec((1, 1, 8, c), lambda i, j: (i, j, 0, 0)),
            ),
            compiler_params=pltpu.CompilerParams(
                dimension_semantics=("parallel", "parallel"),
                vmem_limit_bytes=vmem_limit),
        )(xp, wt)

        # ---- tiny wrapper reduction: per-group stats -> per-channel affine ----
        cnt = jnp.float32(cpg * h * w)
        sum_c = ssum[:, :, 0, :].sum(axis=1)                 # (N, C)
        sq_c = ssq[:, :, 0, :].sum(axis=1)
        gsum = sum_c.reshape(n, groups, cpg).sum(axis=2)     # (N, G)
        gsq = sq_c.reshape(n, groups, cpg).sum(axis=2)
        mean_g = gsum / cnt
        var_g = jnp.maximum(gsq / cnt - mean_g * mean_g, 0.0)
        rstd_g = lax.rsqrt(var_g + eps)
        scale_c = jnp.repeat(rstd_g, cpg, axis=1) * gamma[None, :]
        shift_c = beta[None, :] - jnp.repeat(mean_g, cpg, axis=1) * scale_c
        scale_p = scale_c.reshape(n, 1, c)
        shift_p = shift_c.reshape(n, 1, c)

        # ---- pass 2: GroupNorm affine + ReLU, in place over the conv buffer ----
        out_flat = pl.pallas_call(
            _gn_relu_kernel,
            out_shape=jax.ShapeDtypeStruct((n, h * w, c), jnp.float32),
            grid=(n, n_ht),
            in_specs=[
                pl.BlockSpec((1, m, c), lambda i, j: (i, j, 0)),
                pl.BlockSpec((1, 1, c), lambda i, j: (i, 0, 0)),
                pl.BlockSpec((1, 1, c), lambda i, j: (i, 0, 0)),
            ],
            out_specs=pl.BlockSpec((1, m, c), lambda i, j: (i, j, 0)),
            input_output_aliases={0: 0},
            compiler_params=pltpu.CompilerParams(
                dimension_semantics=("parallel", "parallel"),
                vmem_limit_bytes=vmem_limit),
        )(conv_out, scale_p, shift_p)

    # TODO(synk): keep NHWC downstream to avoid this final HBM round trip.
    return jnp.transpose(out_flat.reshape(n, h, w, c), (0, 3, 1, 2))


if __name__ == "__main__":
    key = jax.random.PRNGKey(0)
    kx, kw_, kg, kb = jax.random.split(key, 4)
    N, Cin, Cout, H, W = 2, 4, 16, 16, 16

    x = jax.random.normal(kx, (N, Cin, H, W), jnp.float32)
    fan_in = Cin * 3 * 3
    bound = 1.0 / math.sqrt(fan_in)   # PyTorch Conv2d kaiming_uniform(a=sqrt(5)) bound
    weight = jax.random.uniform(kw_, (Cout, Cin, 3, 3), jnp.float32,
                                minval=-bound, maxval=bound)
    gamma = 1.0 + 0.1 * jax.random.normal(kg, (Cout,), jnp.float32)
    beta = 0.1 * jax.random.normal(kb, (Cout,), jnp.float32)

    # pure-JAX reference (Conv2d -> GroupNorm -> ReLU)
    eps = 1e-5
    ref_conv = lax.conv_general_dilated(
        x, weight, window_strides=(1, 1), padding=((1, 1), (1, 1)),
        dimension_numbers=("NCHW", "OIHW", "NCHW"),
        precision=lax.Precision.HIGHEST)
    G = max(1, Cout // 8)
    rc = ref_conv.reshape(N, G, Cout // G, H, W)
    mu = rc.mean(axis=(2, 3, 4), keepdims=True)
    va = rc.var(axis=(2, 3, 4), keepdims=True)
    rn = ((rc - mu) / jnp.sqrt(va + eps)).reshape(N, Cout, H, W)
    ref = jnp.maximum(rn * gamma.reshape(1, -1, 1, 1) + beta.reshape(1, -1, 1, 1), 0.0)

    variants = [
        jax.jit(functools.partial(conv_gn_relu)),                      # single-pass, auto tile
        jax.jit(functools.partial(conv_gn_relu, row_tile=4)),          # single-pass, in-kernel tiling
        jax.jit(functools.partial(conv_gn_relu, row_tile=8,
                                  force_two_pass=True)),               # two-pass fallback
    ]
    for fn in variants:
        out = jax.block_until_ready(fn(x, weight, gamma, beta))
        assert out.shape == (N, Cout, H, W)
        max_err = float(jnp.max(jnp.abs(out - ref)))
        assert jnp.allclose(out, ref, atol=5e-3, rtol=5e-3), max_err

    print("KERNEL_OK")
</pallas_src>

<mosaic_0001>
module attributes {stable_mosaic.version = 11 : i64} {
  func.func @_fused_conv_gn_relu_kernel(%arg0: i32, %arg1: memref<1x18x18x4xf32, #tpu.memory_space<vmem>>, %arg2: memref<9x4x16xf32, #tpu.memory_space<vmem>>, %arg3: memref<16x16xf32, #tpu.memory_space<vmem>>, %arg4: memref<1x16xf32, #tpu.memory_space<vmem>>, %arg5: memref<1x16xf32, #tpu.memory_space<vmem>>, %arg6: memref<1x256x16xf32, #tpu.memory_space<vmem>>, %arg7: memref<8x16xf32, #tpu.memory_space<vmem>>, %arg8: memref<8x16xf32, #tpu.memory_space<vmem>>) attributes {dimension_semantics = [#tpu.dimension_semantics<parallel>], iteration_bounds = array<i64: 2>, scalar_prefetch = 0 : i64, scratch_operands = 2 : i64, tpu.core_type = #tpu.core_type<tc>, window_params = [{transform_indices = @transform_0, window_bounds = array<i64: 1, 18, 18, 4>}, {pipeline_mode = #tpu.pipeline_mode<synchronous>, transform_indices = @transform_1, window_bounds = array<i64: 9, 4, 16>}, {pipeline_mode = #tpu.pipeline_mode<synchronous>, transform_indices = @transform_2, window_bounds = array<i64: 16, 16>}, {pipeline_mode = #tpu.pipeline_mode<synchronous>, transform_indices = @transform_3, window_bounds = array<i64: 1, 16>}, {pipeline_mode = #tpu.pipeline_mode<synchronous>, transform_indices = @transform_4, window_bounds = array<i64: 1, 16>}, {transform_indices = @transform_5, window_bounds = array<i64: 1, 256, 16>}]} {
    %cst = arith.constant 0.000000e+00 : f32
    %0 = vector.broadcast %cst : f32 to vector<8x16xf32>
    %c0 = arith.constant 0 : index
    %c0_0 = arith.constant 0 : index
    %1 = vector.load %arg7[%c0, %c0_0] : memref<8x16xf32, #tpu.memory_space<vmem>>, vector<8x16xf32>
    tpu.vector_store %arg7[%c0, %c0_0], %0 {strides = array<i32>} : memref<8x16xf32, #tpu.memory_space<vmem>>, vector<8x16xf32>,
    %cst_1 = arith.constant 0.000000e+00 : f32
    %2 = vector.broadcast %cst_1 : f32 to vector<8x16xf32>
    %c0_2 = arith.constant 0 : index
    %c0_3 = arith.constant 0 : index
    %3 = vector.load %arg8[%c0_2, %c0_3] : memref<8x16xf32, #tpu.memory_space<vmem>>, vector<8x16xf32>
    tpu.vector_store %arg8[%c0_2, %c0_3], %2 {strides = array<i32>} : memref<8x16xf32, #tpu.memory_space<vmem>>, vector<8x16xf32>,
    %cst_4 = arith.constant 0.000000e+00 : f32
    %4 = vector.broadcast %cst_4 : f32 to vector<256x16xf32>
    %c0_5 = arith.constant 0 : index
    %c0_6 = arith.constant 0 : index
    %c0_7 = arith.constant 0 : index
    %c0_8 = arith.constant 0 : index
    %5 = vector.load %arg1[%c0_5, %c0_6, %c0_7, %c0_8] : memref<1x18x18x4xf32, #tpu.memory_space<vmem>>, vector<1x16x18x4xf32>
    %6 = vector.shape_cast %5 : vector<1x16x18x4xf32> to vector<16x18x4xf32>
    %7 = vector.extract_strided_slice %6 {offsets = [0, 0, 0], sizes = [16, 16, 4], strides = [1, 1, 1]} : vector<16x18x4xf32> to vector<16x16x4xf32>
    %8 = vector.shape_cast %7 : vector<16x16x4xf32> to vector<256x4xf32>
    %c0_9 = arith.constant 0 : index
    %c0_10 = arith.constant 0 : index
    %c0_11 = arith.constant 0 : index
    %9 = vector.load %arg2[%c0_9, %c0_10, %c0_11] : memref<9x4x16xf32, #tpu.memory_space<vmem>>, vector<1x4x16xf32>
    %10 = vector.shape_cast %9 : vector<1x4x16xf32> to vector<4x16xf32>
    %cst_12 = arith.constant dense<0.000000e+00> : vector<256x16xf32>
    %11 = tpu.matmul %8, %10, %cst_12 {dimension_numbers = #tpu.dot_dimension_numbers<[1], [0], [0], [1], [0, 0, 1, 1], [], []>} : vector<256x4xf32>, vector<4x16xf32>, vector<256x16xf32> -> vector<256x16xf32>
    %12 = arith.addf %4, %11 : vector<256x16xf32>
    %13 = vector.extract_strided_slice %6 {offsets = [0, 1, 0], sizes = [16, 16, 4], strides = [1, 1, 1]} : vector<16x18x4xf32> to vector<16x16x4xf32>
    %14 = vector.shape_cast %13 : vector<16x16x4xf32> to vector<256x4xf32>
    %c1 = arith.constant 1 : index
    %c0_13 = arith.constant 0 : index
    %c0_14 = arith.constant 0 : index
    %15 = vector.load %arg2[%c1, %c0_13, %c0_14] : memref<9x4x16xf32, #tpu.memory_space<vmem>>, vector<1x4x16xf32>
    %16 = vector.shape_cast %15 : vector<1x4x16xf32> to vector<4x16xf32>
    %cst_15 = arith.constant dense<0.000000e+00> : vector<256x16xf32>
    %17 = tpu.matmul %14, %16, %cst_15 {dimension_numbers = #tpu.dot_dimension_numbers<[1], [0], [0], [1], [0, 0, 1, 1], [], []>} : vector<256x4xf32>, vector<4x16xf32>, vector<256x16xf32> -> vector<256x16xf32>
    %18 = arith.addf %12, %17 : vector<256x16xf32>
    %19 = vector.extract_strided_slice %6 {offsets = [0, 2, 0], sizes = [16, 16, 4], strides = [1, 1, 1]} : vector<16x18x4xf32> to vector<16x16x4xf32>
    %20 = vector.shape_cast %19 : vector<16x16x4xf32> to vector<256x4xf32>
    %c2 = arith.constant 2 : index
    %c0_16 = arith.constant 0 : index
    %c0_17 = arith.constant 0 : index
    %21 = vector.load %arg2[%c2, %c0_16, %c0_17] : memref<9x4x16xf32, #tpu.memory_space<vmem>>, vector<1x4x16xf32>
    %22 = vector.shape_cast %21 : vector<1x4x16xf32> to vector<4x16xf32>
    %cst_18 = arith.constant dense<0.000000e+00> : vector<256x16xf32>
    %23 = tpu.matmul %20, %22, %cst_18 {dimension_numbers = #tpu.dot_dimension_numbers<[1], [0], [0], [1], [0, 0, 1, 1], [], []>} : vector<256x4xf32>, vector<4x16xf32>, vector<256x16xf32> -> vector<256x16xf32>
    %24 = arith.addf %18, %23 : vector<256x16xf32>
    %c0_19 = arith.constant 0 : index
    %c1_20 = arith.constant 1 : index
    %c0_21 = arith.constant 0 : index
    %c0_22 = arith.constant 0 : index
    %25 = vector.load %arg1[%c0_19, %c1_20, %c0_21, %c0_22] : memref<1x18x18x4xf32, #tpu.memory_space<vmem>>, vector<1x16x18x4xf32>
    %26 = vector.shape_cast %25 : vector<1x16x18x4xf32> to vector<16x18x4xf32>
    %27 = vector.extract_strided_slice %26 {offsets = [0, 0, 0], sizes = [16, 16, 4], strides = [1, 1, 1]} : vector<16x18x4xf32> to vector<16x16x4xf32>
    %28 = vector.shape_cast %27 : vector<16x16x4xf32> to vector<256x4xf32>
    %c3 = arith.constant 3 : index
    %c0_23 = arith.constant 0 : index
    %c0_24 = arith.constant 0 : index
    %29 = vector.load %arg2[%c3, %c0_23, %c0_24] : memref<9x4x16xf32, #tpu.memory_space<vmem>>, vector<1x4x16xf32>
    %30 = vector.shape_cast %29 : vector<1x4x16xf32> to vector<4x16xf32>
    %cst_25 = arith.constant dense<0.000000e+00> : vector<256x16xf32>
    %31 = tpu.matmul %28, %30, %cst_25 {dimension_numbers = #tpu.dot_dimension_numbers<[1], [0], [0], [1], [0, 0, 1, 1], [], []>} : vector<256x4xf32>, vector<4x16xf32>, vector<256x16xf32> -> vector<256x16xf32>
    %32 = arith.addf %24, %31 : vector<256x16xf32>
    %33 = vector.extract_strided_slice %26 {offsets = [0, 1, 0], sizes = [16, 16, 4], strides = [1, 1, 1]} : vector<16x18x4xf32> to vector<16x16x4xf32>
    %34 = vector.shape_cast %33 : vector<16x16x4xf32> to vector<256x4xf32>
    %c4 = arith.constant 4 : index
    %c0_26 = arith.constant 0 : index
    %c0_27 = arith.constant 0 : index
    %35 = vector.load %arg2[%c4, %c0_26, %c0_27] : memref<9x4x16xf32, #tpu.memory_space<vmem>>, vector<1x4x16xf32>
    %36 = vector.shape_cast %35 : vector<1x4x16xf32> to vector<4x16xf32>
    %cst_28 = arith.constant dense<0.000000e+00> : vector<256x16xf32>
    %37 = tpu.matmul %34, %36, %cst_28 {dimension_numbers = #tpu.dot_dimension_numbers<[1], [0], [0], [1], [0, 0, 1, 1], [], []>} : vector<256x4xf32>, vector<4x16xf32>, vector<256x16xf32> -> vector<256x16xf32>
    %38 = arith.addf %32, %37 : vector<256x16xf32>
    %39 = vector.extract_strided_slice %26 {offsets = [0, 2, 0], sizes = [16, 16, 4], strides = [1, 1, 1]} : vector<16x18x4xf32> to vector<16x16x4xf32>
    %40 = vector.shape_cast %39 : vector<16x16x4xf32> to vector<256x4xf32>
    %c5 = arith.constant 5 : index
    %c0_29 = arith.constant 0 : index
    %c0_30 = arith.constant 0 : index
    %41 = vector.load %arg2[%c5, %c0_29, %c0_30] : memref<9x4x16xf32, #tpu.memory_space<vmem>>, vector<1x4x16xf32>
    %42 = vector.shape_cast %41 : vector<1x4x16xf32> to vector<4x16xf32>
    %cst_31 = arith.constant dense<0.000000e+00> : vector<256x16xf32>
    %43 = tpu.matmul %40, %42, %cst_31 {dimension_numbers = #tpu.dot_dimension_numbers<[1], [0], [0], [1], [0, 0, 1, 1], [], []>} : vector<256x4xf32>, vector<4x16xf32>, vector<256x16xf32> -> vector<256x16xf32>
    %44 = arith.addf %38, %43 : vector<256x16xf32>
    %c0_32 = arith.constant 0 : index
    %c2_33 = arith.constant 2 : index
    %c0_34 = arith.constant 0 : index
    %c0_35 = arith.constant 0 : index
    %45 = vector.load %arg1[%c0_32, %c2_33, %c0_34, %c0_35] : memref<1x18x18x4xf32, #tpu.memory_space<vmem>>, vector<1x16x18x4xf32>
    %46 = vector.shape_cast %45 : vector<1x16x18x4xf32> to vector<16x18x4xf32>
    %47 = vector.extract_strided_slice %46 {offsets = [0, 0, 0], sizes = [16, 16, 4], strides = [1, 1, 1]} : vector<16x18x4xf32> to vector<16x16x4xf32>
    %48 = vector.shape_cast %47 : vector<16x16x4xf32> to vector<256x4xf32>
    %c6 = arith.constant 6 : index
    %c0_36 = arith.constant 0 : index
    %c0_37 = arith.constant 0 : index
    %49 = vector.load %arg2[%c6, %c0_36, %c0_37] : memref<9x4x16xf32, #tpu.memory_space<vmem>>, vector<1x4x16xf32>
    %50 = vector.shape_cast %49 : vector<1x4x16xf32> to vector<4x16xf32>
    %cst_38 = arith.constant dense<0.000000e+00> : vector<256x16xf32>
    %51 = tpu.matmul %48, %50, %cst_38 {dimension_numbers = #tpu.dot_dimension_numbers<[1], [0], [0], [1], [0, 0, 1, 1], [], []>} : vector<256x4xf32>, vector<4x16xf32>, vector<256x16xf32> -> vector<256x16xf32>
    %52 = arith.addf %44, %51 : vector<256x16xf32>
    %53 = vector.extract_strided_slice %46 {offsets = [0, 1, 0], sizes = [16, 16, 4], strides = [1, 1, 1]} : vector<16x18x4xf32> to vector<16x16x4xf32>
    %54 = vector.shape_cast %53 : vector<16x16x4xf32> to vector<256x4xf32>
    %c7 = arith.constant 7 : index
    %c0_39 = arith.constant 0 : index
    %c0_40 = arith.constant 0 : index
    %55 = vector.load %arg2[%c7, %c0_39, %c0_40] : memref<9x4x16xf32, #tpu.memory_space<vmem>>, vector<1x4x16xf32>
    %56 = vector.shape_cast %55 : vector<1x4x16xf32> to vector<4x16xf32>
    %cst_41 = arith.constant dense<0.000000e+00> : vector<256x16xf32>
    %57 = tpu.matmul %54, %56, %cst_41 {dimension_numbers = #tpu.dot_dimension_numbers<[1], [0], [0], [1], [0, 0, 1, 1], [], []>} : vector<256x4xf32>, vector<4x16xf32>, vector<256x16xf32> -> vector<256x16xf32>
    %58 = arith.addf %52, %57 : vector<256x16xf32>
    %59 = vector.extract_strided_slice %46 {offsets = [0, 2, 0], sizes = [16, 16, 4], strides = [1, 1, 1]} : vector<16x18x4xf32> to vector<16x16x4xf32>
    %60 = vector.shape_cast %59 : vector<16x16x4xf32> to vector<256x4xf32>
    %c8 = arith.constant 8 : index
    %c0_42 = arith.constant 0 : index
    %c0_43 = arith.constant 0 : index
    %61 = vector.load %arg2[%c8, %c0_42, %c0_43] : memref<9x4x16xf32, #tpu.memory_space<vmem>>, vector<1x4x16xf32>
    %62 = vector.shape_cast %61 : vector<1x4x16xf32> to vector<4x16xf32>
    %cst_44 = arith.constant dense<0.000000e+00> : vector<256x16xf32>
    %63 = tpu.matmul %60, %62, %cst_44 {dimension_numbers = #tpu.dot_dimension_numbers<[1], [0], [0], [1], [0, 0, 1, 1], [], []>} : vector<256x4xf32>, vector<4x16xf32>, vector<256x16xf32> -> vector<256x16xf32>
    %64 = arith.addf %58, %63 : vector<256x16xf32>
    %c0_45 = arith.constant 0 : index
    %c0_46 = arith.constant 0 : index
    %c0_47 = arith.constant 0 : index
    %65 = vector.load %arg6[%c0_45, %c0_46, %c0_47] : memref<1x256x16xf32, #tpu.memory_space<vmem>>, vector<1x256x16xf32>
    %66 = vector.shape_cast %65 : vector<1x256x16xf32> to vector<256x16xf32>
    %67 = vector.shape_cast %64 : vector<256x16xf32> to vector<1x256x16xf32>
    tpu.vector_store %arg6[%c0_45, %c0_46, %c0_47], %67 {strides = array<i32>} : memref<1x256x16xf32, #tpu.memory_space<vmem>>, vector<1x256x16xf32>,
    %c0_48 = arith.constant 0 : index
    %c0_49 = arith.constant 0 : index
    %68 = vector.load %arg7[%c0_48, %c0_49] : memref<8x16xf32, #tpu.memory_space<vmem>>, vector<8x16xf32>
    %cst_50 = arith.constant dense<0.000000e+00> : vector<16xf32>
    %69 = vector.multi_reduction <add>, %64, %cst_50 [0] : vector<256x16xf32> to vector<16xf32>
    %70 = vector.shape_cast %69 : vector<16xf32> to vector<1x16xf32>
    %71 = vector.broadcast %70 : vector<1x16xf32> to vector<8x16xf32>
    %72 = arith.addf %68, %71 : vector<8x16xf32>
    %c0_51 = arith.constant 0 : index
    %c0_52 = arith.constant 0 : index
    %73 = vector.load %arg7[%c0_51, %c0_52] : memref<8x16xf32, #tpu.memory_space<vmem>>, vector<8x16xf32>
    tpu.vector_store %arg7[%c0_51, %c0_52], %72 {strides = array<i32>} : memref<8x16xf32, #tpu.memory_space<vmem>>, vector<8x16xf32>,
    %c0_53 = arith.constant 0 : index
    %c0_54 = arith.constant 0 : index
    %74 = vector.load %arg8[%c0_53, %c0_54] : memref<8x16xf32, #tpu.memory_space<vmem>>, vector<8x16xf32>
    %75 = arith.mulf %64, %64 : vector<256x16xf32>
    %cst_55 = arith.constant dense<0.000000e+00> : vector<16xf32>
    %76 = vector.multi_reduction <add>, %75, %cst_55 [0] : vector<256x16xf32> to vector<16xf32>
    %77 = vector.shape_cast %76 : vector<16xf32> to vector<1x16xf32>
    %78 = vector.broadcast %77 : vector<1x16xf32> to vector<8x16xf32>
    %79 = arith.addf %74, %78 : vector<8x16xf32>
    %c0_56 = arith.constant 0 : index
    %c0_57 = arith.constant 0 : index
    %80 = vector.load %arg8[%c0_56, %c0_57] : memref<8x16xf32, #tpu.memory_space<vmem>>, vector<8x16xf32>
    tpu.vector_store %arg8[%c0_56, %c0_57], %79 {strides = array<i32>} : memref<8x16xf32, #tpu.memory_space<vmem>>, vector<8x16xf32>,
    %c0_58 = arith.constant 0 : index
    %c0_59 = arith.constant 0 : index
    %81 = vector.load %arg7[%c0_58, %c0_59] : memref<8x16xf32, #tpu.memory_space<vmem>>, vector<8x16xf32>
    %c0_60 = arith.constant 0 : index
    %c0_61 = arith.constant 0 : index
    %82 = vector.load %arg3[%c0_60, %c0_61] : memref<16x16xf32, #tpu.memory_space<vmem>>, vector<16x16xf32>
    %cst_62 = arith.constant dense<0.000000e+00> : vector<8x16xf32>
    %83 = tpu.matmul %81, %82, %cst_62 {dimension_numbers = #tpu.dot_dimension_numbers<[1], [0], [0], [1], [0, 0, 1, 1], [], []>} : vector<8x16xf32>, vector<16x16xf32>, vector<8x16xf32> -> vector<8x16xf32>
    %c0_63 = arith.constant 0 : index
    %c0_64 = arith.constant 0 : index
    %84 = vector.load %arg8[%c0_63, %c0_64] : memref<8x16xf32, #tpu.memory_space<vmem>>, vector<8x16xf32>
    %c0_65 = arith.constant 0 : index
    %c0_66 = arith.constant 0 : index
    %85 = vector.load %arg3[%c0_65, %c0_66] : memref<16x16xf32, #tpu.memory_space<vmem>>, vector<16x16xf32>
    %cst_67 = arith.constant dense<0.000000e+00> : vector<8x16xf32>
    %86 = tpu.matmul %84, %85, %cst_67 {dimension_numbers = #tpu.dot_dimension_numbers<[1], [0], [0], [1], [0, 0, 1, 1], [], []>} : vector<8x16xf32>, vector<16x16xf32>, vector<8x16xf32> -> vector<8x16xf32>
    %cst_68 = arith.constant 4.8828125E-4 : f32
    %87 = vector.broadcast %cst_68 : f32 to vector<8x16xf32>
    %88 = arith.mulf %83, %87 : vector<8x16xf32>
    %cst_69 = arith.constant 4.8828125E-4 : f32
    %89 = vector.broadcast %cst_69 : f32 to vector<8x16xf32>
    %90 = arith.mulf %86, %89 : vector<8x16xf32>
    %91 = arith.mulf %88, %88 : vector<8x16xf32>
    %92 = arith.subf %90, %91 : vector<8x16xf32>
    %cst_70 = arith.constant 0.000000e+00 : f32
    %93 = vector.broadcast %cst_70 : f32 to vector<8x16xf32>
    %94 = arith.maximumf %92, %93 : vector<8x16xf32>
    %cst_71 = arith.constant 9.99999974E-6 : f32
    %95 = vector.broadcast %cst_71 : f32 to vector<8x16xf32>
    %96 = arith.addf %94, %95 : vector<8x16xf32>
    %97 = math.rsqrt %96 : vector<8x16xf32>
    %c0_72 = arith.constant 0 : index
    %c0_73 = arith.constant 0 : index
    %98 = vector.load %arg4[%c0_72, %c0_73] : memref<1x16xf32, #tpu.memory_space<vmem>>, vector<1x16xf32>
    %99 = vector.broadcast %98 : vector<1x16xf32> to vector<8x16xf32>
    %100 = arith.mulf %99, %97 : vector<8x16xf32>
    %c0_74 = arith.constant 0 : index
    %c0_75 = arith.constant 0 : index
    %101 = vector.load %arg5[%c0_74, %c0_75] : memref<1x16xf32, #tpu.memory_space<vmem>>, vector<1x16xf32>
    %102 = arith.mulf %88, %100 : vector<8x16xf32>
    %103 = vector.broadcast %101 : vector<1x16xf32> to vector<8x16xf32>
    %104 = arith.subf %103, %102 : vector<8x16xf32>
    %105 = vector.extract_strided_slice %100 {offsets = [0, 0], sizes = [1, 16], strides = [1, 1]} : vector<8x16xf32> to vector<1x16xf32>
    %106 = vector.extract_strided_slice %104 {offsets = [0, 0], sizes = [1, 16], strides = [1, 1]} : vector<8x16xf32> to vector<1x16xf32>
    %c0_76 = arith.constant 0 : index
    %c0_77 = arith.constant 0 : index
    %c0_78 = arith.constant 0 : index
    %107 = vector.load %arg6[%c0_76, %c0_77, %c0_78] : memref<1x256x16xf32, #tpu.memory_space<vmem>>, vector<1x256x16xf32>
    %108 = vector.shape_cast %107 : vector<1x256x16xf32> to vector<256x16xf32>
    %109 = vector.broadcast %105 : vector<1x16xf32> to vector<256x16xf32>
    %110 = arith.mulf %108, %109 : vector<256x16xf32>
    %111 = vector.broadcast %106 : vector<1x16xf32> to vector<256x16xf32>
    %112 = arith.addf %110, %111 : vector<256x16xf32>
    %cst_79 = arith.constant 0.000000e+00 : f32
    %113 = vector.broadcast %cst_79 : f32 to vector<256x16xf32>
    %114 = arith.maximumf %112, %113 : vector<256x16xf32>
    %c0_80 = arith.constant 0 : index
    %c0_81 = arith.constant 0 : index
    %c0_82 = arith.constant 0 : index
    %115 = vector.load %arg6[%c0_80, %c0_81, %c0_82] : memref<1x256x16xf32, #tpu.memory_space<vmem>>, vector<1x256x16xf32>
    %116 = vector.shape_cast %115 : vector<1x256x16xf32> to vector<256x16xf32>
    %117 = vector.shape_cast %114 : vector<256x16xf32> to vector<1x256x16xf32>
    tpu.vector_store %arg6[%c0_80, %c0_81, %c0_82], %117 {strides = array<i32>} : memref<1x256x16xf32, #tpu.memory_space<vmem>>, vector<1x256x16xf32>,
    return
  }
  func.func @transform_0(%arg0: i32) -> (i32, i32, i32, i32) {
    %c0_i32 = arith.constant 0 : i32
    %c0_i32_0 = arith.constant 0 : i32
    %c0_i32_1 = arith.constant 0 : i32
    %c0_i32_2 = arith.constant 0 : i32
    return %arg0, %c0_i32, %c0_i32_0, %c0_i32_1 : i32, i32, i32, i32
  }
  func.func @transform_1(%arg0: i32) -> (i32, i32, i32) {
    %c0_i32 = arith.constant 0 : i32
    %c0_i32_0 = arith.constant 0 : i32
    %c0_i32_1 = arith.constant 0 : i32
    %c0_i32_2 = arith.constant 0 : i32
    return %c0_i32, %c0_i32_0, %c0_i32_1 : i32, i32, i32
  }
  func.func @transform_2(%arg0: i32) -> (i32, i32) {
    %c0_i32 = arith.constant 0 : i32
    %c0_i32_0 = arith.constant 0 : i32
    %c0_i32_1 = arith.constant 0 : i32
    return %c0_i32, %c0_i32_0 : i32, i32
  }
  func.func @transform_3(%arg0: i32) -> (i32, i32) {
    %c0_i32 = arith.constant 0 : i32
    %c0_i32_0 = arith.constant 0 : i32
    %c0_i32_1 = arith.constant 0 : i32
    return %c0_i32, %c0_i32_0 : i32, i32
  }
  func.func @transform_4(%arg0: i32) -> (i32, i32) {
    %c0_i32 = arith.constant 0 : i32
    %c0_i32_0 = arith.constant 0 : i32
    %c0_i32_1 = arith.constant 0 : i32
    return %c0_i32, %c0_i32_0 : i32, i32
  }
  func.func @transform_5(%arg0: i32) -> (i32, i32, i32) {
    %c0_i32 = arith.constant 0 : i32
    %c0_i32_0 = arith.constant 0 : i32
    %c0_i32_1 = arith.constant 0 : i32
    return %arg0, %c0_i32, %c0_i32_0 : i32, i32, i32
  }
}

</mosaic_0001>

<llo_original>
// kernel: conv_gn_relu.1
$region0: #{conv_gn_relu.1}
  #allocation0 [shape = 'u32[]', space=smem, size = 0x4, offset = 0x4, fixed_abs, tag = 'smem constant byte address 0x4 - core index']
  #allocation1 [shape = 'u32[144,128]{1,0:T(1,128)}', space=vmem, size = 0x12000, scoped, tag = 'internal scratch']
  #allocation2 [shape = 'f32[8,16]{1,0:T(8,128)}', space=vmem, size = 0x1000, scoped, tag = 'scratch operand']
  #allocation3 [shape = 'f32[8,16]{1,0:T(8,128)}', space=vmem, size = 0x1000, scoped, tag = 'scratch operand']
  %s0 = inlined_call_operand.vmem [shape: f32[2,18,18,4], index: 0, kind: input, shape index: {}]
  %s1 = inlined_call_operand.vmem [shape: f32[9,4,16], index: 1, kind: input, shape index: {}]
  %s2 = inlined_call_operand.vmem [shape: f32[16,16], index: 2, kind: input, shape index: {}]
  %s3 = inlined_call_operand.vmem [shape: f32[1,16], index: 3, kind: input, shape index: {}]
  %s4 = inlined_call_operand.vmem [shape: f32[1,16], index: 4, kind: input, shape index: {}]
  %s5 = inlined_call_operand.vmem [shape: f32[2,256,16], index: 5, kind: output, shape index: {}]
  %s6 = sld [smem:[#allocation0]]
  $region53: #{conv_gn_relu.1} parent=0
    _
  %s8 = ssub.s32 1, %s6
  %s9 = scalar_select 0, %s8, %s6
  loop: start=0, step=1, limit=4
  $region2: #{conv_gn_relu.1} parent=0 // loop_pre_header
    _
  $region3: #{conv_gn_relu.1} parent=0 // loop_header
    %s11 = sphi 0, %s15
    %p12 = scmp.ge.s32.totalorder %s11, 4
    %s21 = sphi 0, %s23
    %s24 = sphi 0, %s21
    %s25 = sphi 0, %s24
    %s41 = sphi 0, %s25
    %s45 = sphi 0, %s45
    %s47 = sphi 0, %s45
    %s48 = sphi 0, %s47
    %s62 = sphi 0, %s48
    %s66 = sphi 0, %s66
    %s68 = sphi 0, %s66
    %s69 = sphi 0, %s68
    %s83 = sphi 0, %s69
    %s87 = sphi 0, %s87
    %s89 = sphi 0, %s87
    %s90 = sphi 0, %s89
    %s104 = sphi 0, %s90
    %s108 = sphi 0, %s108
    %s110 = sphi 0, %s108
    %s111 = sphi 0, %s110
    %s125 = sphi 0, %s111
    %s131 = sphi 0, %s133
    %s134 = sphi 0, %s131
    %s135 = sphi 0, %s134
    %s151 = sphi 0, %s135
  $region4: #{conv_gn_relu.1} parent=0 // loop_header_branch
    %14 = sbr.rel (%p12) target = $region8
  $region5: #{conv_gn_relu.1} parent=0 // loop_body
    %s16 = ssub.s32 %s11, 1
    %s17 = ssub.s32 %s11, 2
    %s18 = sadd.s32 %s11, 1
    %s19 = ssub.s32 %s11, %s18
    %p20 = scmp.eq.s32.totalorder %s19, 0
    %s22 = sadd.s32 %s21, 1
    %s23 = scalar_select %p20, %s21, %s22
    %p26 = pneg %p20
    %p27 = scmp.eq.s32.totalorder %s11, 1
    %p28 = por %p26, %p27
    %p29 = scmp.ne.s32.totalorder %s21, %s24
    %p30 = scmp.eq.s32.totalorder %s11, 0
    %p31 = por %p29, %p30
    %p32 = scmp.ne.s32.totalorder %s21, %s24
    %p33 = scmp.eq.s32.totalorder %s16, 1
    %p34 = por %p32, %p33
    %p35 = scmp.ne.s32.totalorder %s24, %s25
    %p36 = scmp.eq.s32.totalorder %s16, 0
    %p37 = por %p35, %p36
    %p38 = scmp.ne.s32.totalorder %s24, %s25
    %p39 = scmp.eq.s32.totalorder %s17, 1
    %p40 = por %p38, %p39
    %p42 = scmp.ne.s32.totalorder %s25, %s41
    %p43 = scmp.eq.s32.totalorder %s17, 0
    %p44 = por %p42, %p43
    %s46 = sadd.s32 %s45, 1
    %p49 = scmp.eq.s32.totalorder %s11, 1
    %p50 = scmp.ne.s32.totalorder %s45, %s47
    %p51 = scmp.eq.s32.totalorder %s11, 0
    %p52 = por %p50, %p51
    %p53 = scmp.ne.s32.totalorder %s45, %s47
    %p54 = scmp.eq.s32.totalorder %s16, 1
    %p55 = por %p53, %p54
    %p56 = scmp.ne.s32.totalorder %s47, %s48
    %p57 = scmp.eq.s32.totalorder %s16, 0
    %p58 = por %p56, %p57
    %p59 = scmp.ne.s32.totalorder %s47, %s48
    %p60 = scmp.eq.s32.totalorder %s17, 1
    %p61 = por %p59, %p60
    %p63 = scmp.ne.s32.totalorder %s48, %s62
    %p64 = scmp.eq.s32.totalorder %s17, 0
    %p65 = por %p63, %p64
    %s67 = sadd.s32 %s66, 1
    %p70 = scmp.eq.s32.totalorder %s11, 1
    %p71 = scmp.ne.s32.totalorder %s66, %s68
    %p72 = scmp.eq.s32.totalorder %s11, 0
    %p73 = por %p71, %p72
    %p74 = scmp.ne.s32.totalorder %s66, %s68
    %p75 = scmp.eq.s32.totalorder %s16, 1
    %p76 = por %p74, %p75
    %p77 = scmp.ne.s32.totalorder %s68, %s69
    %p78 = scmp.eq.s32.totalorder %s16, 0
    %p79 = por %p77, %p78
    %p80 = scmp.ne.s32.totalorder %s68, %s69
    %p81 = scmp.eq.s32.totalorder %s17, 1
    %p82 = por %p80, %p81
    %p84 = scmp.ne.s32.totalorder %s69, %s83
    %p85 = scmp.eq.s32.totalorder %s17, 0
    %p86 = por %p84, %p85
    %s88 = sadd.s32 %s87, 1
    %p91 = scmp.eq.s32.totalorder %s11, 1
    %p92 = scmp.ne.s32.totalorder %s87, %s89
    %p93 = scmp.eq.s32.totalorder %s11, 0
    %p94 = por %p92, %p93
    %p95 = scmp.ne.s32.totalorder %s87, %s89
    %p96 = scmp.eq.s32.totalorder %s16, 1
    %p97 = por %p95, %p96
    %p98 = scmp.ne.s32.totalorder %s89, %s90
    %p99 = scmp.eq.s32.totalorder %s16, 0
    %p100 = por %p98, %p99
    %p101 = scmp.ne.s32.totalorder %s89, %s90
    %p102 = scmp.eq.s32.totalorder %s17, 1
    %p103 = por %p101, %p102
    %p105 = scmp.ne.s32.totalorder %s90, %s104
    %p106 = scmp.eq.s32.totalorder %s17, 0
    %p107 = por %p105, %p106
    %s109 = sadd.s32 %s108, 1
    %p112 = scmp.eq.s32.totalorder %s11, 1
    %p113 = scmp.ne.s32.totalorder %s108, %s110
    %p114 = scmp.eq.s32.totalorder %s11, 0
    %p115 = por %p113, %p114
    %p116 = scmp.ne.s32.totalorder %s108, %s110
    %p117 = scmp.eq.s32.totalorder %s16, 1
    %p118 = por %p116, %p117
    %p119 = scmp.ne.s32.totalorder %s110, %s111
    %p120 = scmp.eq.s32.totalorder %s16, 0
    %p121 = por %p119, %p120
    %p122 = scmp.ne.s32.totalorder %s110, %s111
    %p123 = scmp.eq.s32.totalorder %s17, 1
    %p124 = por %p122, %p123
    %p126 = scmp.ne.s32.totalorder %s111, %s125
    %p127 = scmp.eq.s32.totalorder %s17, 0
    %p128 = por %p126, %p127
    %s129 = ssub.s32 %s11, %s18
    %p130 = scmp.eq.s32.totalorder %s129, 0
    %s132 = sadd.s32 %s131, 1
    %s133 = scalar_select %p130, %s131, %s132
    %p136 = pneg %p130
    %p137 = scmp.eq.s32.totalorder %s11, 1
    %p138 = por %p136, %p137
    %p139 = scmp.ne.s32.totalorder %s131, %s134
    %p140 = scmp.eq.s32.totalorder %s11, 0
    %p141 = por %p139, %p140
    %p142 = scmp.ne.s32.totalorder %s131, %s134
    %p143 = scmp.eq.s32.totalorder %s16, 1
    %p144 = por %p142, %p143
    %p145 = scmp.ne.s32.totalorder %s134, %s135
    %p146 = scmp.eq.s32.totalorder %s16, 0
    %p147 = por %p145, %p146
    %p148 = scmp.ne.s32.totalorder %s134, %s135
    %p149 = scmp.eq.s32.totalorder %s17, 1
    %p150 = por %p148, %p149
    %p152 = scmp.ne.s32.totalorder %s135, %s151
    %p153 = scmp.eq.s32.totalorder %s17, 0
    %p154 = por %p152, %p153
    %p155 = scmp.le.s32.totalorder 1, %s11
    %p156 = scmp.lt.s32.totalorder %s11, 3
    %p157 = pnand %p155, %p156
    %p158 = pneg %p157
    // Predicated region
    $region9: #{conv_gn_relu.1} parent=5 // pred_check
      _
    $region10: #{conv_gn_relu.1} parent=5 // pred_check_branch
      %160 = sbr.rel (%p157) target = $region12
    $region11: #{conv_gn_relu.1} parent=5 // pred_region
      %s161 = ssub.s32 %s11, 1
      // Predicated region
      $region13: #{conv_gn_relu.1} parent=11 // pred_check
        %p162 = pneg %p58
      $region14: #{conv_gn_relu.1} parent=11 // pred_check_branch
        %164 = sbr.rel (%p162) target = $region16
      $region15: #{conv_gn_relu.1} parent=11 // pred_region
        _
      $region16: #{conv_gn_relu.1} parent=11 // pred_fallthru
        _
      // Predicated region
      $region17: #{conv_gn_relu.1} parent=11 // pred_check
        %p165 = pneg %p79
      $region18: #{conv_gn_relu.1} parent=11 // pred_check_branch
        %167 = sbr.rel (%p165) target = $region20
      $region19: #{conv_gn_relu.1} parent=11 // pred_region
        _
      $region20: #{conv_gn_relu.1} parent=11 // pred_fallthru
        _
      // Predicated region
      $region21: #{conv_gn_relu.1} parent=11 // pred_check
        %p168 = pneg %p100
      $region22: #{conv_gn_relu.1} parent=11 // pred_check_branch
        %170 = sbr.rel (%p168) target = $region24
      $region23: #{conv_gn_relu.1} parent=11 // pred_region
        _
      $region24: #{conv_gn_relu.1} parent=11 // pred_fallthru
        _
      // Predicated region
      $region25: #{conv_gn_relu.1} parent=11 // pred_check
        %p171 = pneg %p121
      $region26: #{conv_gn_relu.1} parent=11 // pred_check_branch
        %173 = sbr.rel (%p171) target = $region28
      $region27: #{conv_gn_relu.1} parent=11 // pred_region
        _
      $region28: #{conv_gn_relu.1} parent=11 // pred_fallthru
        _
    $region12: #{conv_gn_relu.1} parent=5 // pred_fallthru
      _
    %p174 = scmp.lt.s32.totalorder %s11, 2
    // Predicated region
    $region29: #{conv_gn_relu.1} parent=5 // pred_check
      %p175 = pneg %p174
    $region30: #{conv_gn_relu.1} parent=5 // pred_check_branch
      %177 = sbr.rel (%p175) target = $region32
    $region31: #{conv_gn_relu.1} parent=5 // pred_region
      // Predicated region
      $region33: #{conv_gn_relu.1} parent=31 // pred_check
        %p178 = pneg %p31
      $region34: #{conv_gn_relu.1} parent=31 // pred_check_branch
        %180 = sbr.rel (%p178) target = $region36
      $region35: #{conv_gn_relu.1} parent=31 // pred_region
        %p181 = scmp.lt.s32.totalorder %s11, 1
        %s182 = scalar_select %p181, %s11, 1
        %s183 = smul.addr %s182, 54
        %s184 = smul.addr %s183, 8
        %s185 = scalar_lea.vmem %s0, %s184
      $region36: #{conv_gn_relu.1} parent=31 // pred_fallthru
        _
    $region32: #{conv_gn_relu.1} parent=5 // pred_fallthru
      _
    %p186 = scmp.le.s32.totalorder 1, %s11
    %p187 = scmp.lt.s32.totalorder %s11, 3
    %p188 = pnand %p186, %p187
    %p189 = pneg %p188
    // Predicated region
    $region37: #{conv_gn_relu.1} parent=5 // pred_check
      _
    $region38: #{conv_gn_relu.1} parent=5 // pred_check_branch
      %191 = sbr.rel (%p188) target = $region40
    $region39: #{conv_gn_relu.1} parent=5 // pred_region
      %s192 = ssub.s32 %s11, 1
      %p193 = scmp.lt.s32.totalorder %s16, 1
      %s194 = scalar_select %p193, %s16, 1
      %s195 = smul.addr %s194, 54
      %s196 = smul.addr %s195, 8
      %s197 = scalar_lea.vmem %s0, %s196
      %p198 = pneg %p37
      %p199 = pneg %p34
      %p200 = pneg %p58
      %p201 = pneg %p55
      %p202 = pneg %p79
      %p203 = pneg %p76
      %p204 = pneg %p100
      %p205 = pneg %p97
      %p206 = pneg %p121
      %p207 = pneg %p118
      %p208 = pneg %p147
      %p209 = pneg %p144
      %p210 = scmp.lt.s32.totalorder %s16, 1
      %s211 = scalar_select %p210, %s16, 1
      %s212 = smul.addr %s211, 32
      %s213 = smul.addr %s212, 8
      %s214 = scalar_lea.vmem %s5, %s213
      %p215 = scmp.lt.s32.totalorder %s16, 1
      %s216 = scalar_select %p215, %s16, 1
      %s217 = smul.addr %s216, 54
      %s218 = smul.addr %s217, 8
      %s219 = scalar_lea.vmem %s0, %s218
      %p220 = scmp.lt.s32.totalorder %s16, 1
      %s221 = scalar_select %p220, %s16, 1
      %s222 = smul.addr %s221, 32
      %s223 = smul.addr %s222, 8
      %s224 = scalar_lea.vmem %s5, %s223
      %vm225 = vcmask 130048
      %226 = vst.msk [vmem:[#allocation2] sm:$0xff] %vm225, 0.0
      %227 = vst.msk [vmem:[#allocation3] sm:$0xff] %vm225, 0.0
      %v228 = vld [vmem:[%s219] sm:$0xff]
      %v229 = vld [vmem:[%s219 + $0x8] sm:$0xff]
      %v230 = vld [vmem:[%s219 + $0x10] sm:$0x3]
      %v231 = vld [vmem:[%s219 + $0x18] sm:$0xff]
      %v232 = vld [vmem:[%s219 + $0x20] sm:$0xff]
      %v233 = vld [vmem:[%s219 + $0x28] sm:$0x3]
      %v234 = vld [vmem:[%s219 + $0x30] sm:$0xff]
      %v235 = vld [vmem:[%s219 + $0x38] sm:$0xff]
      %v236 = vld [vmem:[%s219 + $0x40] sm:$0x3]
      %v237 = vld [vmem:[%s219 + $0x48] sm:$0xff]
      %v238 = vld [vmem:[%s219 + $0x50] sm:$0xff]
      %v239 = vld [vmem:[%s219 + $0x58] sm:$0x3]
      %v240 = vld [vmem:[%s219 + $0x60] sm:$0xff]
      %v241 = vld [vmem:[%s219 + $0x68] sm:$0xff]
      %v242 = vld [vmem:[%s219 + $0x70] sm:$0x3]
      %v243 = vld [vmem:[%s219 + $0x78] sm:$0xff]
      %v244 = vld [vmem:[%s219 + $0x80] sm:$0xff]
      %v245 = vld [vmem:[%s219 + $0x88] sm:$0x3]
      %v246 = vld [vmem:[%s219 + $0x90] sm:$0xff]
      %v247 = vld [vmem:[%s219 + $0x98] sm:$0xff]
      %v248 = vld [vmem:[%s219 + $0xa0] sm:$0x3]
      %v249 = vld [vmem:[%s219 + $0xa8] sm:$0xff]
      %v250 = vld [vmem:[%s219 + $0xb0] sm:$0xff]
      %v251 = vld [vmem:[%s219 + $0xb8] sm:$0x3]
      %v252 = vld [vmem:[%s219 + $0xc0] sm:$0xff]
      %v253 = vld [vmem:[%s219 + $0xc8] sm:$0xff]
      %v254 = vld [vmem:[%s219 + $0xd0] sm:$0x3]
      %v255 = vld [vmem:[%s219 + $0xd8] sm:$0xff]
      %v256 = vld [vmem:[%s219 + $0xe0] sm:$0xff]
      %v257 = vld [vmem:[%s219 + $0xe8] sm:$0x3]
      %v258 = vld [vmem:[%s219 + $0xf0] sm:$0xff]
      %v259 = vld [vmem:[%s219 + $0xf8] sm:$0xff]
      %v260 = vld [vmem:[%s219 + $0x100] sm:$0x3]
      %v261 = vld [vmem:[%s219 + $0x108] sm:$0xff]
      %v262 = vld [vmem:[%s219 + $0x110] sm:$0xff]
      %v263 = vld [vmem:[%s219 + $0x118] sm:$0x3]
      %v264 = vld [vmem:[%s219 + $0x120] sm:$0xff]
      %v265 = vld [vmem:[%s219 + $0x128] sm:$0xff]
      %v266 = vld [vmem:[%s219 + $0x130] sm:$0x3]
      %v267 = vld [vmem:[%s219 + $0x138] sm:$0xff]
      %v268 = vld [vmem:[%s219 + $0x140] sm:$0xff]
      %v269 = vld [vmem:[%s219 + $0x148] sm:$0x3]
      %v270 = vld [vmem:[%s219 + $0x150] sm:$0xff]
      %v271 = vld [vmem:[%s219 + $0x158] sm:$0xff]
      %v272 = vld [vmem:[%s219 + $0x160] sm:$0x3]
      %v273 = vld [vmem:[%s219 + $0x168] sm:$0xff]
      %v274 = vld [vmem:[%s219 + $0x170] sm:$0xff]
      %v275 = vld [vmem:[%s219 + $0x178] sm:$0x3]
      %v276 = vld [vmem:[%s1] sm:$0xf]
      %vm325 = vcmask 1046528
      %v326 = vrot.slane %v228, 1
      %v327 = vrot.slane %v229, 1
      %v328 = vsel %vm325, %v326, %v327
      %v329 = vrot.slane %v230, 1
      %v330 = vsel %vm325, %v327, %v329
      %v331 = vrot.slane %v231, 1
      %v332 = vrot.slane %v232, 1
      %v333 = vsel %vm325, %v331, %v332
      %v334 = vrot.slane %v233, 1
      %v335 = vsel %vm325, %v332, %v334
      %v336 = vrot.slane %v234, 1
      %v337 = vrot.slane %v235, 1
      %v338 = vsel %vm325, %v336, %v337
      %v339 = vrot.slane %v236, 1
      %v340 = vsel %vm325, %v337, %v339
      %v341 = vrot.slane %v237, 1
      %v342 = vrot.slane %v238, 1
      %v343 = vsel %vm325, %v341, %v342
      %v344 = vrot.slane %v239, 1
      %v345 = vsel %vm325, %v342, %v344
      %v346 = vrot.slane %v240, 1
      %v347 = vrot.slane %v241, 1
      %v348 = vsel %vm325, %v346, %v347
      %v349 = vrot.slane %v242, 1
      %v350 = vsel %vm325, %v347, %v349
      %v351 = vrot.slane %v243, 1
      %v352 = vrot.slane %v244, 1
      %v353 = vsel %vm325, %v351, %v352
      %v354 = vrot.slane %v245, 1
      %v355 = vsel %vm325, %v352, %v354
      %v356 = vrot.slane %v246, 1
      %v357 = vrot.slane %v247, 1
      %v358 = vsel %vm325, %v356, %v357
      %v359 = vrot.slane %v248, 1
      %v360 = vsel %vm325, %v357, %v359
      %v361 = vrot.slane %v249, 1
      %v362 = vrot.slane %v250, 1
      %v363 = vsel %vm325, %v361, %v362
      %v364 = vrot.slane %v251, 1
      %v365 = vsel %vm325, %v362, %v364
      %v366 = vrot.slane %v252, 1
      %v367 = vrot.slane %v253, 1
      %v368 = vsel %vm325, %v366, %v367
      %v369 = vrot.slane %v254, 1
      %v370 = vsel %vm325, %v367, %v369
      %v371 = vrot.slane %v255, 1
      %v372 = vrot.slane %v256, 1
      %v373 = vsel %vm325, %v371, %v372
      %v374 = vrot.slane %v257, 1
      %v375 = vsel %vm325, %v372, %v374
      %v376 = vrot.slane %v258, 1
      %v377 = vrot.slane %v259, 1
      %v378 = vsel %vm325, %v376, %v377
      %v379 = vrot.slane %v260, 1
      %v380 = vsel %vm325, %v377, %v379
      %v381 = vrot.slane %v261, 1
      %v382 = vrot.slane %v262, 1
      %v383 = vsel %vm325, %v381, %v382
      %v384 = vrot.slane %v263, 1
      %v385 = vsel %vm325, %v382, %v384
      %v386 = vrot.slane %v264, 1
      %v387 = vrot.slane %v265, 1
      %v388 = vsel %vm325, %v386, %v387
      %v389 = vrot.slane %v266, 1
      %v390 = vsel %vm325, %v387, %v389
      %v391 = vrot.slane %v267, 1
      %v392 = vrot.slane %v268, 1
      %v393 = vsel %vm325, %v391, %v392
      %v394 = vrot.slane %v269, 1
      %v395 = vsel %vm325, %v392, %v394
      %v396 = vrot.slane %v270, 1
      %v397 = vrot.slane %v271, 1
      %v398 = vsel %vm325, %v396, %v397
      %v399 = vrot.slane %v272, 1
      %v400 = vsel %vm325, %v397, %v399
      %v401 = vrot.slane %v273, 1
      %v402 = vrot.slane %v274, 1
      %v403 = vsel %vm325, %v401, %v402
      %v404 = vrot.slane %v275, 1
      %v405 = vsel %vm325, %v402, %v404
      %s406 = scalar_lea.vmem %s1, 4
      %v407 = vld [vmem:[%s406] sm:$0xf]
      %vm408 = vcmask 31744
      %v409 = vsel %vm408, %v328, 0
      %v411 = vsel %vm408, %v330, 0
      %v413 = vsel %vm408, %v333, 0
      %v415 = vsel %vm408, %v335, 0
      %v417 = vsel %vm408, %v338, 0
      %v419 = vsel %vm408, %v340, 0
      %v421 = vsel %vm408, %v343, 0
      %v423 = vsel %vm408, %v345, 0
      %v425 = vsel %vm408, %v348, 0
      %v427 = vsel %vm408, %v350, 0
      %v429 = vsel %vm408, %v353, 0
      %v431 = vsel %vm408, %v355, 0
      %v433 = vsel %vm408, %v358, 0
      %v435 = vsel %vm408, %v360, 0
      %v437 = vsel %vm408, %v363, 0
      %v439 = vsel %vm408, %v365, 0
      %v441 = vsel %vm408, %v368, 0
      %v443 = vsel %vm408, %v370, 0
      %v445 = vsel %vm408, %v373, 0
      %v447 = vsel %vm408, %v375, 0
      %v449 = vsel %vm408, %v378, 0
      %v451 = vsel %vm408, %v380, 0
      %v453 = vsel %vm408, %v383, 0
      %v455 = vsel %vm408, %v385, 0
      %v457 = vsel %vm408, %v388, 0
      %v459 = vsel %vm408, %v390, 0
      %v461 = vsel %vm408, %v393, 0
      %v463 = vsel %vm408, %v395, 0
      %v465 = vsel %vm408, %v398, 0
      %v467 = vsel %vm408, %v400, 0
      %v469 = vsel %vm408, %v403, 0
      %v471 = vsel %vm408, %v405, 0
      %vm473 = vcmask 1043456
      %v475 = vsel %vm473, %v407, 0
      %477 = vmatprep.subr.mxu0 0.0
      %478 = vmatpush1.msra.mxu0 %v475
      %479 = vmatprep.subr.mxu0 0.0
      %480 = vmatpush1.msra.mxu0 0.0
      %481 = vmatprep.subr.mxu0 0.0
      %482 = vmatpush1.msra.mxu0 0.0
      %483 = vmatprep.subr.mxu0 0.0
      %484 = vmatpush1.msra.mxu0 0.0
      %485 = vmatprep.subr.mxu0 0.0
      %486 = vmatpush1.msra.mxu0 0.0
      %487 = vmatprep.subr.mxu0 0.0
      %488 = vmatpush1.msra.mxu0 0.0
      %489 = vmatprep.subr.mxu0 0.0
      %490 = vmatpush1.msra.mxu0 0.0
      %491 = vmatprep.subr.mxu0 0.0
      %492 = vmatpush1.msra.mxu0 0.0
      %493 = vmatprep.subr.mxu0 0.0
      %494 = vmatpush1.msra.mxu0 0.0
      %495 = vmatprep.subr.mxu0 0.0
      %496 = vmatpush1.msra.mxu0 0.0
      %497 = vmatprep.subr.mxu0 0.0
      %498 = vmatpush1.msra.mxu0 0.0
      %499 = vmatprep.subr.mxu0 0.0
      %500 = vmatpush1.msra.mxu0 0.0
      %501 = vmatprep.subr.mxu0 0.0
      %502 = vmatpush1.msra.mxu0 0.0
      %503 = vmatprep.subr.mxu0 0.0
      %504 = vmatpush1.msra.mxu0 0.0
      %505 = vmatprep.subr.mxu0 0.0
      %506 = vmatpush1.msra.mxu0 0.0
      %507 = vmatprep.subr.mxu0 0.0
      %508 = vmatpush1.msra.mxu0 0.0
      %509 = vmatprep.subr.mxu0 0.0
      %510 = vmatpush1.msra.mxu0 0.0
      %511 = vmatprep.subr.mxu0 0.0
      %512 = vmatpush1.msra.mxu0 0.0
      %513 = vmatprep.subr.mxu0 0.0
      %514 = vmatpush1.msra.mxu0 0.0
      %515 = vmatprep.subr.mxu0 0.0
      %516 = vmatpush1.msra.mxu0 0.0
      %517 = vmatprep.subr.mxu0 0.0
      %518 = vmatpush1.msra.mxu0 0.0
      %519 = vmatprep.subr.mxu0 0.0
      %520 = vmatpush1.msra.mxu0 0.0
      %521 = vmatprep.subr.mxu0 0.0
      %522 = vmatpush1.msra.mxu0 0.0
      %523 = vmatprep.subr.mxu0 0.0
      %524 = vmatpush1.msra.mxu0 0.0
      %525 = vmatprep.subr.mxu0 0.0
      %526 = vmatpush1.msra.mxu0 0.0
      %527 = vmatprep.subr.mxu0 0.0
      %528 = vmatpush1.msra.mxu0 0.0
      %529 = vmatprep.subr.mxu0 0.0
      %530 = vmatpush1.msra.mxu0 0.0
      %531 = vmatprep.subr.mxu0 0.0
      %532 = vmatpush1.msra.mxu0 0.0
      %533 = vmatprep.subr.mxu0 0.0
      %534 = vmatpush1.msra.mxu0 0.0
      %535 = vmatprep.subr.mxu0 0.0
      %536 = vmatpush1.msra.mxu0 0.0
      %537 = vmatprep.subr.mxu0 0.0
      %538 = vmatpush1.msra.mxu0 0.0
      %539 = vmatprep.subr.mxu0 0.0
      %540 = vmatpush1.msra.mxu0 0.0
      %541 = vmatprep.mubr.f32.mxu0 0.0
      %542 = vmatmul.mubr.f32.gmra.mrb[0].mxu0 %v409
      %v543 = vpop.f32.mrb[0].mxu0
      %v544 = vadd.f32 0.0, %v543
      %v545 = vpop.f32.mrb[0].mxu0
      %546 = vmatprep.mubr.f32.mxu0 0.0
      %547 = vmatmul.mubr.f32.gmra.mrb[0].mxu0 %v411
      %v548 = vpop.f32.mrb[0].mxu0
      %v549 = vadd.f32 0.0, %v548
      %v550 = vpop.f32.mrb[0].mxu0
      %551 = vmatprep.mubr.f32.mxu0 0.0
      %552 = vmatmul.mubr.f32.gmra.mrb[0].mxu0 %v413
      %v553 = vpop.f32.mrb[0].mxu0
      %v554 = vadd.f32 0.0, %v553
      %v555 = vpop.f32.mrb[0].mxu0
      %556 = vmatprep.mubr.f32.mxu0 0.0
      %557 = vmatmul.mubr.f32.gmra.mrb[0].mxu0 %v415
      %v558 = vpop.f32.mrb[0].mxu0
      %v559 = vadd.f32 0.0, %v558
      %v560 = vpop.f32.mrb[0].mxu0
      %561 = vmatprep.mubr.f32.mxu0 0.0
      %562 = vmatmul.mubr.f32.gmra.mrb[0].mxu0 %v417
      %v563 = vpop.f32.mrb[0].mxu0
      %v564 = vadd.f32 0.0, %v563
      %v565 = vpop.f32.mrb[0].mxu0
      %566 = vmatprep.mubr.f32.mxu0 0.0
      %567 = vmatmul.mubr.f32.gmra.mrb[0].mxu0 %v419
      %v568 = vpop.f32.mrb[0].mxu0
      %v569 = vadd.f32 0.0, %v568
      %v570 = vpop.f32.mrb[0].mxu0
      %571 = vmatprep.mubr.f32.mxu0 0.0
      %572 = vmatmul.mubr.f32.gmra.mrb[0].mxu0 %v421
      %v573 = vpop.f32.mrb[0].mxu0
      %v574 = vadd.f32 0.0, %v573
      %v575 = vpop.f32.mrb[0].mxu0
      %576 = vmatprep.mubr.f32.mxu0 0.0
      %577 = vmatmul.mubr.f32.gmra.mrb[0].mxu0 %v423
      %v578 = vpop.f32.mrb[0].mxu0
      %v579 = vadd.f32 0.0, %v578
      %v580 = vpop.f32.mrb[0].mxu0
      %581 = vmatprep.mubr.f32.mxu0 0.0
      %582 = vmatmul.mubr.f32.gmra.mrb[0].mxu0 %v425
      %v583 = vpop.f32.mrb[0].mxu0
      %v584 = vadd.f32 0.0, %v583
      %v585 = vpop.f32.mrb[0].mxu0
      %586 = vmatprep.mubr.f32.mxu0 0.0
      %587 = vmatmul.mubr.f32.gmra.mrb[0].mxu0 %v427
      %v588 = vpop.f32.mrb[0].mxu0
      %v589 = vadd.f32 0.0, %v588
      %v590 = vpop.f32.mrb[0].mxu0
      %591 = vmatprep.mubr.f32.mxu0 0.0
      %592 = vmatmul.mubr.f32.gmra.mrb[0].mxu0 %v429
      %v593 = vpop.f32.mrb[0].mxu0
      %v594 = vadd.f32 0.0, %v593
      %v595 = vpop.f32.mrb[0].mxu0
      %596 = vmatprep.mubr.f32.mxu0 0.0
      %597 = vmatmul.mubr.f32.gmra.mrb[0].mxu0 %v431
      %v598 = vpop.f32.mrb[0].mxu0
      %v599 = vadd.f32 0.0, %v598
      %v600 = vpop.f32.mrb[0].mxu0
      %601 = vmatprep.mubr.f32.mxu0 0.0
      %602 = vmatmul.mubr.f32.gmra.mrb[0].mxu0 %v433
      %v603 = vpop.f32.mrb[0].mxu0
      %v604 = vadd.f32 0.0, %v603
      %v605 = vpop.f32.mrb[0].mxu0
      %606 = vmatprep.mubr.f32.mxu0 0.0
      %607 = vmatmul.mubr.f32.gmra.mrb[0].mxu0 %v435
      %v608 = vpop.f32.mrb[0].mxu0
      %v609 = vadd.f32 0.0, %v608
      %v610 = vpop.f32.mrb[0].mxu0
      %611 = vmatprep.mubr.f32.mxu0 0.0
      %612 = vmatmul.mubr.f32.gmra.mrb[0].mxu0 %v437
      %v613 = vpop.f32.mrb[0].mxu0
      %v614 = vadd.f32 0.0, %v613
      %v615 = vpop.f32.mrb[0].mxu0
      %616 = vmatprep.mubr.f32.mxu0 0.0
      %617 = vmatmul.mubr.f32.gmra.mrb[0].mxu0 %v439
      %v618 = vpop.f32.mrb[0].mxu0
      %v619 = vadd.f32 0.0, %v618
      %v620 = vpop.f32.mrb[0].mxu0
      %621 = vmatprep.mubr.f32.mxu0 0.0
      %622 = vmatmul.mubr.f32.gmra.mrb[0].mxu0 %v441
      %v623 = vpop.f32.mrb[0].mxu0
      %v624 = vadd.f32 0.0, %v623
      %v625 = vpop.f32.mrb[0].mxu0
      %626 = vmatprep.mubr.f32.mxu0 0.0
      %627 = vmatmul.mubr.f32.gmra.mrb[0].mxu0 %v443
      %v628 = vpop.f32.mrb[0].mxu0
      %v629 = vadd.f32 0.0, %v628
      %v630 = vpop.f32.mrb[0].mxu0
      %631 = vmatprep.mubr.f32.mxu0 0.0
      %632 = vmatmul.mubr.f32.gmra.mrb[0].mxu0 %v445
      %v633 = vpop.f32.mrb[0].mxu0
      %v634 = vadd.f32 0.0, %v633
      %v635 = vpop.f32.mrb[0].mxu0
      %636 = vmatprep.mubr.f32.mxu0 0.0
      %637 = vmatmul.mubr.f32.gmra.mrb[0].mxu0 %v447
      %v638 = vpop.f32.mrb[0].mxu0
      %v639 = vadd.f32 0.0, %v638
      %v640 = vpop.f32.mrb[0].mxu0
      %641 = vmatprep.mubr.f32.mxu0 0.0
      %642 = vmatmul.mubr.f32.gmra.mrb[0].mxu0 %v449
      %v643 = vpop.f32.mrb[0].mxu0
      %v644 = vadd.f32 0.0, %v643
      %v645 = vpop.f32.mrb[0].mxu0
      %646 = vmatprep.mubr.f32.mxu0 0.0
      %647 = vmatmul.mubr.f32.gmra.mrb[0].mxu0 %v451
      %v648 = vpop.f32.mrb[0].mxu0
      %v649 = vadd.f32 0.0, %v648
      %v650 = vpop.f32.mrb[0].mxu0
      %651 = vmatprep.mubr.f32.mxu0 0.0
      %652 = vmatmul.mubr.f32.gmra.mrb[0].mxu0 %v453
      %v653 = vpop.f32.mrb[0].mxu0
      %v654 = vadd.f32 0.0, %v653
      %v655 = vpop.f32.mrb[0].mxu0
      %656 = vmatprep.mubr.f32.mxu0 0.0
      %657 = vmatmul.mubr.f32.gmra.mrb[0].mxu0 %v455
      %v658 = vpop.f32.mrb[0].mxu0
      %v659 = vadd.f32 0.0, %v658
      %v660 = vpop.f32.mrb[0].mxu0
      %661 = vmatprep.mubr.f32.mxu0 0.0
      %662 = vmatmul.mubr.f32.gmra.mrb[0].mxu0 %v457
      %v663 = vpop.f32.mrb[0].mxu0
      %v664 = vadd.f32 0.0, %v663
      %v665 = vpop.f32.mrb[0].mxu0
      %666 = vmatprep.mubr.f32.mxu0 0.0
      %667 = vmatmul.mubr.f32.gmra.mrb[0].mxu0 %v459
      %v668 = vpop.f32.mrb[0].mxu0
      %v669 = vadd.f32 0.0, %v668
      %v670 = vpop.f32.mrb[0].mxu0
      %671 = vmatprep.mubr.f32.mxu0 0.0
      %672 = vmatmul.mubr.f32.gmra.mrb[0].mxu0 %v461
      %v673 = vpop.f32.mrb[0].mxu0
      %v674 = vadd.f32 0.0, %v673
      %v675 = vpop.f32.mrb[0].mxu0
      %676 = vmatprep.mubr.f32.mxu0 0.0
      %677 = vmatmul.mubr.f32.gmra.mrb[0].mxu0 %v463
      %v678 = vpop.f32.mrb[0].mxu0
      %v679 = vadd.f32 0.0, %v678
      %v680 = vpop.f32.mrb[0].mxu0
      %681 = vmatprep.mubr.f32.mxu0 0.0
      %682 = vmatmul.mubr.f32.gmra.mrb[0].mxu0 %v465
      %v683 = vpop.f32.mrb[0].mxu0
      %v684 = vadd.f32 0.0, %v683
      %v685 = vpop.f32.mrb[0].mxu0
      %686 = vmatprep.mubr.f32.mxu0 0.0
      %687 = vmatmul.mubr.f32.gmra.mrb[0].mxu0 %v467
      %v688 = vpop.f32.mrb[0].mxu0
      %v689 = vadd.f32 0.0, %v688
      %v690 = vpop.f32.mrb[0].mxu0
      %691 = vmatprep.mubr.f32.mxu0 0.0
      %692 = vmatmul.mubr.f32.gmra.mrb[0].mxu0 %v469
      %v693 = vpop.f32.mrb[0].mxu0
      %v694 = vadd.f32 0.0, %v693
      %v695 = vpop.f32.mrb[0].mxu0
      %696 = vmatprep.mubr.f32.mxu0 0.0
      %697 = vmatmul.mubr.f32.gmra.mrb[0].mxu0 %v471
      %v698 = vpop.f32.mrb[0].mxu0
      %v699 = vadd.f32 0.0, %v698
      %v700 = vpop.f32.mrb[0].mxu0
      %701 = vdwg.mxu0
      %v702 = vsel %vm408, %v228, 0
      %v704 = vsel %vm408, %v229, 0
      %v706 = vsel %vm408, %v231, 0
      %v708 = vsel %vm408, %v232, 0
      %v710 = vsel %vm408, %v234, 0
      %v712 = vsel %vm408, %v235, 0
      %v714 = vsel %vm408, %v237, 0
      %v716 = vsel %vm408, %v238, 0
      %v718 = vsel %vm408, %v240, 0
      %v720 = vsel %vm408, %v241, 0
      %v722 = vsel %vm408, %v243, 0
      %v724 = vsel %vm408, %v244, 0
      %v726 = vsel %vm408, %v246, 0
      %v728 = vsel %vm408, %v247, 0
      %v730 = vsel %vm408, %v249, 0
      %v732 = vsel %vm408, %v250, 0
      %v734 = vsel %vm408, %v252, 0
      %v736 = vsel %vm408, %v253, 0
      %v738 = vsel %vm408, %v255, 0
      %v740 = vsel %vm408, %v256, 0
      %v742 = vsel %vm408, %v258, 0
      %v744 = vsel %vm408, %v259, 0
      %v746 = vsel %vm408, %v261, 0
      %v748 = vsel %vm408, %v262, 0
      %v750 = vsel %vm408, %v264, 0
      %v752 = vsel %vm408, %v265, 0
      %v754 = vsel %vm408, %v267, 0
      %v756 = vsel %vm408, %v268, 0
      %v758 = vsel %vm408, %v270, 0
      %v760 = vsel %vm408, %v271, 0
      %v762 = vsel %vm408, %v273, 0
      %v764 = vsel %vm408, %v274, 0
      %v767 = vsel %vm473, %v276, 0
      %769 = vmatprep.subr.mxu0 0.0
      %770 = vmatpush1.msra.mxu0 %v767
      %771 = vmatprep.subr.mxu0 0.0
      %772 = vmatpush1.msra.mxu0 0.0
      %773 = vmatprep.subr.mxu0 0.0
      %774 = vmatpush1.msra.mxu0 0.0
      %775 = vmatprep.subr.mxu0 0.0
      %776 = vmatpush1.msra.mxu0 0.0
      %777 = vmatprep.subr.mxu0 0.0
      %778 = vmatpush1.msra.mxu0 0.0
      %779 = vmatprep.subr.mxu0 0.0
      %780 = vmatpush1.msra.mxu0 0.0
      %781 = vmatprep.subr.mxu0 0.0
      %782 = vmatpush1.msra.mxu0 0.0
      %783 = vmatprep.subr.mxu0 0.0
      %784 = vmatpush1.msra.mxu0 0.0
      %785 = vmatprep.subr.mxu0 0.0
      %786 = vmatpush1.msra.mxu0 0.0
      %787 = vmatprep.subr.mxu0 0.0
      %788 = vmatpush1.msra.mxu0 0.0
      %789 = vmatprep.subr.mxu0 0.0
      %790 = vmatpush1.msra.mxu0 0.0
      %791 = vmatprep.subr.mxu0 0.0
      %792 = vmatpush1.msra.mxu0 0.0
      %793 = vmatprep.subr.mxu0 0.0
      %794 = vmatpush1.msra.mxu0 0.0
      %795 = vmatprep.subr.mxu0 0.0
      %796 = vmatpush1.msra.mxu0 0.0
      %797 = vmatprep.subr.mxu0 0.0
      %798 = vmatpush1.msra.mxu0 0.0
      %799 = vmatprep.subr.mxu0 0.0
      %800 = vmatpush1.msra.mxu0 0.0
      %801 = vmatprep.subr.mxu0 0.0
      %802 = vmatpush1.msra.mxu0 0.0
      %803 = vmatprep.subr.mxu0 0.0
      %804 = vmatpush1.msra.mxu0 0.0
      %805 = vmatprep.subr.mxu0 0.0
      %806 = vmatpush1.msra.mxu0 0.0
      %807 = vmatprep.subr.mxu0 0.0
      %808 = vmatpush1.msra.mxu0 0.0
      %809 = vmatprep.subr.mxu0 0.0
      %810 = vmatpush1.msra.mxu0 0.0
      %811 = vmatprep.subr.mxu0 0.0
      %812 = vmatpush1.msra.mxu0 0.0
      %813 = vmatprep.subr.mxu0 0.0
      %814 = vmatpush1.msra.mxu0 0.0
      %815 = vmatprep.subr.mxu0 0.0
      %816 = vmatpush1.msra.mxu0 0.0
      %817 = vmatprep.subr.mxu0 0.0
      %818 = vmatpush1.msra.mxu0 0.0
      %819 = vmatprep.subr.mxu0 0.0
      %820 = vmatpush1.msra.mxu0 0.0
      %821 = vmatprep.subr.mxu0 0.0
      %822 = vmatpush1.msra.mxu0 0.0
      %823 = vmatprep.subr.mxu0 0.0
      %824 = vmatpush1.msra.mxu0 0.0
      %825 = vmatprep.subr.mxu0 0.0
      %826 = vmatpush1.msra.mxu0 0.0
      %827 = vmatprep.subr.mxu0 0.0
      %828 = vmatpush1.msra.mxu0 0.0
      %829 = vmatprep.subr.mxu0 0.0
      %830 = vmatpush1.msra.mxu0 0.0
      %831 = vmatprep.subr.mxu0 0.0
      %832 = vmatpush1.msra.mxu0 0.0
      %833 = vmatprep.mubr.f32.mxu0 0.0
      %834 = vmatmul.mubr.f32.gmra.mrb[0].mxu0 %v702
      %v835 = vpop.f32.mrb[0].mxu0
      %v836 = vadd.f32 %v544, %v835
      %v837 = vpop.f32.mrb[0].mxu0
      %838 = vmatprep.mubr.f32.mxu0 0.0
      %839 = vmatmul.mubr.f32.gmra.mrb[0].mxu0 %v704
      %v840 = vpop.f32.mrb[0].mxu0
      %v841 = vadd.f32 %v549, %v840
      %v842 = vpop.f32.mrb[0].mxu0
      %843 = vmatprep.mubr.f32.mxu0 0.0
      %844 = vmatmul.mubr.f32.gmra.mrb[0].mxu0 %v706
      %v845 = vpop.f32.mrb[0].mxu0
      %v846 = vadd.f32 %v554, %v845
      %v847 = vpop.f32.mrb[0].mxu0
      %848 = vmatprep.mubr.f32.mxu0 0.0
      %849 = vmatmul.mubr.f32.gmra.mrb[0].mxu0 %v708
      %v850 = vpop.f32.mrb[0].mxu0
      %v851 = vadd.f32 %v559, %v850
      %v852 = vpop.f32.mrb[0].mxu0
      %853 = vmatprep.mubr.f32.mxu0 0.0
      %854 = vmatmul.mubr.f32.gmra.mrb[0].mxu0 %v710
      %v855 = vpop.f32.mrb[0].mxu0
      %v856 = vadd.f32 %v564, %v855
      %v857 = vpop.f32.mrb[0].mxu0
      %858 = vmatprep.mubr.f32.mxu0 0.0
      %859 = vmatmul.mubr.f32.gmra.mrb[0].mxu0 %v712
      %v860 = vpop.f32.mrb[0].mxu0
      %v861 = vadd.f32 %v569, %v860
      %v862 = vpop.f32.mrb[0].mxu0
      %863 = vmatprep.mubr.f32.mxu0 0.0
      %864 = vmatmul.mubr.f32.gmra.mrb[0].mxu0 %v714
      %v865 = vpop.f32.mrb[0].mxu0
      %v866 = vadd.f32 %v574, %v865
      %v867 = vpop.f32.mrb[0].mxu0
      %868 = vmatprep.mubr.f32.mxu0 0.0
      %869 = vmatmul.mubr.f32.gmra.mrb[0].mxu0 %v716
      %v870 = vpop.f32.mrb[0].mxu0
      %v871 = vadd.f32 %v579, %v870
      %v872 = vpop.f32.mrb[0].mxu0
      %873 = vmatprep.mubr.f32.mxu0 0.0
      %874 = vmatmul.mubr.f32.gmra.mrb[0].mxu0 %v718
      %v875 = vpop.f32.mrb[0].mxu0
      %v876 = vadd.f32 %v584, %v875
      %v877 = vpop.f32.mrb[0].mxu0
      %878 = vmatprep.mubr.f32.mxu0 0.0
      %879 = vmatmul.mubr.f32.gmra.mrb[0].mxu0 %v720
      %v880 = vpop.f32.mrb[0].mxu0
      %v881 = vadd.f32 %v589, %v880
      %v882 = vpop.f32.mrb[0].mxu0
      %883 = vmatprep.mubr.f32.mxu0 0.0
      %884 = vmatmul.mubr.f32.gmra.mrb[0].mxu0 %v722
      %v885 = vpop.f32.mrb[0].mxu0
      %v886 = vadd.f32 %v594, %v885
      %v887 = vpop.f32.mrb[0].mxu0
      %888 = vmatprep.mubr.f32.mxu0 0.0
      %889 = vmatmul.mubr.f32.gmra.mrb[0].mxu0 %v724
      %v890 = vpop.f32.mrb[0].mxu0
      %v891 = vadd.f32 %v599, %v890
      %v892 = vpop.f32.mrb[0].mxu0
      %893 = vmatprep.mubr.f32.mxu0 0.0
      %894 = vmatmul.mubr.f32.gmra.mrb[0].mxu0 %v726
      %v895 = vpop.f32.mrb[0].mxu0
      %v896 = vadd.f32 %v604, %v895
      %v897 = vpop.f32.mrb[0].mxu0
      %898 = vmatprep.mubr.f32.mxu0 0.0
      %899 = vmatmul.mubr.f32.gmra.mrb[0].mxu0 %v728
      %v900 = vpop.f32.mrb[0].mxu0
      %v901 = vadd.f32 %v609, %v900
      %v902 = vpop.f32.mrb[0].mxu0
      %903 = vmatprep.mubr.f32.mxu0 0.0
      %904 = vmatmul.mubr.f32.gmra.mrb[0].mxu0 %v730
      %v905 = vpop.f32.mrb[0].mxu0
      %v906 = vadd.f32 %v614, %v905
      %v907 = vpop.f32.mrb[0].mxu0
      %908 = vmatprep.mubr.f32.mxu0 0.0
      %909 = vmatmul.mubr.f32.gmra.mrb[0].mxu0 %v732
      %v910 = vpop.f32.mrb[0].mxu0
      %v911 = vadd.f32 %v619, %v910
      %v912 = vpop.f32.mrb[0].mxu0
      %913 = vmatprep.mubr.f32.mxu0 0.0
      %914 = vmatmul.mubr.f32.gmra.mrb[0].mxu0 %v734
      %v915 = vpop.f32.mrb[0].mxu0
      %v916 = vadd.f32 %v624, %v915
      %v917 = vpop.f32.mrb[0].mxu0
      %918 = vmatprep.mubr.f32.mxu0 0.0
      %919 = vmatmul.mubr.f32.gmra.mrb[0].mxu0 %v736
      %v920 = vpop.f32.mrb[0].mxu0
      %v921 = vadd.f32 %v629, %v920
      %v922 = vpop.f32.mrb[0].mxu0
      %923 = vmatprep.mubr.f32.mxu0 0.0
      %924 = vmatmul.mubr.f32.gmra.mrb[0].mxu0 %v738
      %v925 = vpop.f32.mrb[0].mxu0
      %v926 = vadd.f32 %v634, %v925
      %v927 = vpop.f32.mrb[0].mxu0
      %928 = vmatprep.mubr.f32.mxu0 0.0
      %929 = vmatmul.mubr.f32.gmra.mrb[0].mxu0 %v740
      %v930 = vpop.f32.mrb[0].mxu0
      %v931 = vadd.f32 %v639, %v930
      %v932 = vpop.f32.mrb[0].mxu0
      %933 = vmatprep.mubr.f32.mxu0 0.0
      %934 = vmatmul.mubr.f32.gmra.mrb[0].mxu0 %v742
      %v935 = vpop.f32.mrb[0].mxu0
      %v936 = vadd.f32 %v644, %v935
      %v937 = vpop.f32.mrb[0].mxu0
      %938 = vmatprep.mubr.f32.mxu0 0.0
      %939 = vmatmul.mubr.f32.gmra.mrb[0].mxu0 %v744
      %v940 = vpop.f32.mrb[0].mxu0
      %v941 = vadd.f32 %v649, %v940
      %v942 = vpop.f32.mrb[0].mxu0
      %943 = vmatprep.mubr.f32.mxu0 0.0
      %944 = vmatmul.mubr.f32.gmra.mrb[0].mxu0 %v746
      %v945 = vpop.f32.mrb[0].mxu0
      %v946 = vadd.f32 %v654, %v945
      %v947 = vpop.f32.mrb[0].mxu0
      %948 = vmatprep.mubr.f32.mxu0 0.0
      %949 = vmatmul.mubr.f32.gmra.mrb[0].mxu0 %v748
      %v950 = vpop.f32.mrb[0].mxu0
      %v951 = vadd.f32 %v659, %v950
      %v952 = vpop.f32.mrb[0].mxu0
      %953 = vmatprep.mubr.f32.mxu0 0.0
      %954 = vmatmul.mubr.f32.gmra.mrb[0].mxu0 %v750
      %v955 = vpop.f32.mrb[0].mxu0
      %v956 = vadd.f32 %v664, %v955
      %v957 = vpop.f32.mrb[0].mxu0
      %958 = vmatprep.mubr.f32.mxu0 0.0
      %959 = vmatmul.mubr.f32.gmra.mrb[0].mxu0 %v752
      %v960 = vpop.f32.mrb[0].mxu0
      %v961 = vadd.f32 %v669, %v960
      %v962 = vpop.f32.mrb[0].mxu0
      %963 = vmatprep.mubr.f32.mxu0 0.0
      %964 = vmatmul.mubr.f32.gmra.mrb[0].mxu0 %v754
      %v965 = vpop.f32.mrb[0].mxu0
      %v966 = vadd.f32 %v674, %v965
      %v967 = vpop.f32.mrb[0].mxu0
      %968 = vmatprep.mubr.f32.mxu0 0.0
      %969 = vmatmul.mubr.f32.gmra.mrb[0].mxu0 %v756
      %v970 = vpop.f32.mrb[0].mxu0
      %v971 = vadd.f32 %v679, %v970
      %v972 = vpop.f32.mrb[0].mxu0
      %973 = vmatprep.mubr.f32.mxu0 0.0
      %974 = vmatmul.mubr.f32.gmra.mrb[0].mxu0 %v758
      %v975 = vpop.f32.mrb[0].mxu0
      %v976 = vadd.f32 %v684, %v975
      %v977 = vpop.f32.mrb[0].mxu0
      %978 = vmatprep.mubr.f32.mxu0 0.0
      %979 = vmatmul.mubr.f32.gmra.mrb[0].mxu0 %v760
      %v980 = vpop.f32.mrb[0].mxu0
      %v981 = vadd.f32 %v689, %v980
      %v982 = vpop.f32.mrb[0].mxu0
      %983 = vmatprep.mubr.f32.mxu0 0.0
      %984 = vmatmul.mubr.f32.gmra.mrb[0].mxu0 %v762
      %v985 = vpop.f32.mrb[0].mxu0
      %v986 = vadd.f32 %v694, %v985
      %v987 = vpop.f32.mrb[0].mxu0
      %988 = vmatprep.mubr.f32.mxu0 0.0
      %989 = vmatmul.mubr.f32.gmra.mrb[0].mxu0 %v764
      %v990 = vpop.f32.mrb[0].mxu0
      %v991 = vadd.f32 %v699, %v990
      %v992 = vpop.f32.mrb[0].mxu0
      %993 = vdwg.mxu0
      %vm994 = vcmask 1045504
      %v995 = vrot.slane %v228, 2
      %v996 = vrot.slane %v229, 2
      %v997 = vsel %vm994, %v995, %v996
      %v998 = vrot.slane %v230, 2
      %v999 = vsel %vm994, %v996, %v998
      %v1000 = vrot.slane %v231, 2
      %v1001 = vrot.slane %v232, 2
      %v1002 = vsel %vm994, %v1000, %v1001
      %v1003 = vrot.slane %v233, 2
      %v1004 = vsel %vm994, %v1001, %v1003
      %v1005 = vrot.slane %v234, 2
      %v1006 = vrot.slane %v235, 2
      %v1007 = vsel %vm994, %v1005, %v1006
      %v1008 = vrot.slane %v236, 2
      %v1009 = vsel %vm994, %v1006, %v1008
      %v1010 = vrot.slane %v237, 2
      %v1011 = vrot.slane %v238, 2
      %v1012 = vsel %vm994, %v1010, %v1011
      %v1013 = vrot.slane %v239, 2
      %v1014 = vsel %vm994, %v1011, %v1013
      %v1015 = vrot.slane %v240, 2
      %v1016 = vrot.slane %v241, 2
      %v1017 = vsel %vm994, %v1015, %v1016
      %v1018 = vrot.slane %v242, 2
      %v1019 = vsel %vm994, %v1016, %v1018
      %v1020 = vrot.slane %v243, 2
      %v1021 = vrot.slane %v244, 2
      %v1022 = vsel %vm994, %v1020, %v1021
      %v1023 = vrot.slane %v245, 2
      %v1024 = vsel %vm994, %v1021, %v1023
      %v1025 = vrot.slane %v246, 2
      %v1026 = vrot.slane %v247, 2
      %v1027 = vsel %vm994, %v1025, %v1026
      %v1028 = vrot.slane %v248, 2
      %v1029 = vsel %vm994, %v1026, %v1028
      %v1030 = vrot.slane %v249, 2
      %v1031 = vrot.slane %v250, 2
      %v1032 = vsel %vm994, %v1030, %v1031
      %v1033 = vrot.slane %v251, 2
      %v1034 = vsel %vm994, %v1031, %v1033
      %v1035 = vrot.slane %v252, 2
      %v1036 = vrot.slane %v253, 2
      %v1037 = vsel %vm994, %v1035, %v1036
      %v1038 = vrot.slane %v254, 2
      %v1039 = vsel %vm994, %v1036, %v1038
      %v1040 = vrot.slane %v255, 2
      %v1041 = vrot.slane %v256, 2
      %v1042 = vsel %vm994, %v1040, %v1041
      %v1043 = vrot.slane %v257, 2
      %v1044 = vsel %vm994, %v1041, %v1043
      %v1045 = vrot.slane %v258, 2
      %v1046 = vrot.slane %v259, 2
      %v1047 = vsel %vm994, %v1045, %v1046
      %v1048 = vrot.slane %v260, 2
      %v1049 = vsel %vm994, %v1046, %v1048
      %v1050 = vrot.slane %v261, 2
      %v1051 = vrot.slane %v262, 2
      %v1052 = vsel %vm994, %v1050, %v1051
      %v1053 = vrot.slane %v263, 2
      %v1054 = vsel %vm994, %v1051, %v1053
      %v1055 = vrot.slane %v264, 2
      %v1056 = vrot.slane %v265, 2
      %v1057 = vsel %vm994, %v1055, %v1056
      %v1058 = vrot.slane %v266, 2
      %v1059 = vsel %vm994, %v1056, %v1058
      %v1060 = vrot.slane %v267, 2
      %v1061 = vrot.slane %v268, 2
      %v1062 = vsel %vm994, %v1060, %v1061
      %v1063 = vrot.slane %v269, 2
      %v1064 = vsel %vm994, %v1061, %v1063
      %v1065 = vrot.slane %v270, 2
      %v1066 = vrot.slane %v271, 2
      %v1067 = vsel %vm994, %v1065, %v1066
      %v1068 = vrot.slane %v272, 2
      %v1069 = vsel %vm994, %v1066, %v1068
      %v1070 = vrot.slane %v273, 2
      %v1071 = vrot.slane %v274, 2
      %v1072 = vsel %vm994, %v1070, %v1071
      %v1073 = vrot.slane %v275, 2
      %v1074 = vsel %vm994, %v1071, %v1073
      %s1075 = scalar_lea.vmem %s1, 8
      %v1076 = vld [vmem:[%s1075] sm:$0xf]
      %v1077 = vsel %vm408, %v997, 0
      %v1079 = vsel %vm408, %v999, 0
      %v1081 = vsel %vm408, %v1002, 0
      %v1083 = vsel %vm408, %v1004, 0
      %v1085 = vsel %vm408, %v1007, 0
      %v1087 = vsel %vm408, %v1009, 0
      %v1089 = vsel %vm408, %v1012, 0
      %v1091 = vsel %vm408, %v1014, 0
      %v1093 = vsel %vm408, %v1017, 0
      %v1095 = vsel %vm408, %v1019, 0
      %v1097 = vsel %vm408, %v1022, 0
      %v1099 = vsel %vm408, %v1024, 0
      %v1101 = vsel %vm408, %v1027, 0
      %v1103 = vsel %vm408, %v1029, 0
      %v1105 = vsel %vm408, %v1032, 0
      %v1107 = vsel %vm408, %v1034, 0
      %v1109 = vsel %vm408, %v1037, 0
      %v1111 = vsel %vm408, %v1039, 0
      %v1113 = vsel %vm408, %v1042, 0
      %v1115 = vsel %vm408, %v1044, 0
      %v1117 = vsel %vm408, %v1047, 0
      %v1119 = vsel %vm408, %v1049, 0
      %v1121 = vsel %vm408, %v1052, 0
      %v1123 = vsel %vm408, %v1054, 0
      %v1125 = vsel %vm408, %v1057, 0
      %v1127 = vsel %vm408, %v1059, 0
      %v1129 = vsel %vm408, %v1062, 0
      %v1131 = vsel %vm408, %v1064, 0
      %v1133 = vsel %vm408, %v1067, 0
      %v1135 = vsel %vm408, %v1069, 0
      %v1137 = vsel %vm408, %v1072, 0
      %v1139 = vsel %vm408, %v1074, 0
      %v1142 = vsel %vm473, %v1076, 0
      %1144 = vmatprep.subr.mxu0 0.0
      %1145 = vmatpush1.msra.mxu0 %v1142
      %1146 = vmatprep.subr.mxu0 0.0
      %1147 = vmatpush1.msra.mxu0 0.0
      %1148 = vmatprep.subr.mxu0 0.0
      %1149 = vmatpush1.msra.mxu0 0.0
      %1150 = vmatprep.subr.mxu0 0.0
      %1151 = vmatpush1.msra.mxu0 0.0
      %1152 = vmatprep.subr.mxu0 0.0
      %1153 = vmatpush1.msra.mxu0 0.0
      %1154 = vmatprep.subr.mxu0 0.0
      %1155 = vmatpush1.msra.mxu0 0.0
      %1156 = vmatprep.subr.mxu0 0.0
      %1157 = vmatpush1.msra.mxu0 0.0
      %1158 = vmatprep.subr.mxu0 0.0
      %1159 = vmatpush1.msra.mxu0 0.0
      %1160 = vmatprep.subr.mxu0 0.0
      %1161 = vmatpush1.msra.mxu0 0.0
      %1162 = vmatprep.subr.mxu0 0.0
      %1163 = vmatpush1.msra.mxu0 0.0
      %1164 = vmatprep.subr.mxu0 0.0
      %1165 = vmatpush1.msra.mxu0 0.0
      %1166 = vmatprep.subr.mxu0 0.0
      %1167 = vmatpush1.msra.mxu0 0.0
      %1168 = vmatprep.subr.mxu0 0.0
      %1169 = vmatpush1.msra.mxu0 0.0
      %1170 = vmatprep.subr.mxu0 0.0
      %1171 = vmatpush1.msra.mxu0 0.0
      %1172 = vmatprep.subr.mxu0 0.0
      %1173 = vmatpush1.msra.mxu0 0.0
      %1174 = vmatprep.subr.mxu0 0.0
      %1175 = vmatpush1.msra.mxu0 0.0
      %1176 = vmatprep.subr.mxu0 0.0
      %1177 = vmatpush1.msra.mxu0 0.0
      %1178 = vmatprep.subr.mxu0 0.0
      %1179 = vmatpush1.msra.mxu0 0.0
      %1180 = vmatprep.subr.mxu0 0.0
      %1181 = vmatpush1.msra.mxu0 0.0
      %1182 = vmatprep.subr.mxu0 0.0
      %1183 = vmatpush1.msra.mxu0 0.0
      %1184 = vmatprep.subr.mxu0 0.0
      %1185 = vmatpush1.msra.mxu0 0.0
      %1186 = vmatprep.subr.mxu0 0.0
      %1187 = vmatpush1.msra.mxu0 0.0
      %1188 = vmatprep.subr.mxu0 0.0
      %1189 = vmatpush1.msra.mxu0 0.0
      %1190 = vmatprep.subr.mxu0 0.0
      %1191 = vmatpush1.msra.mxu0 0.0
      %1192 = vmatprep.subr.mxu0 0.0
      %1193 = vmatpush1.msra.mxu0 0.0
      %1194 = vmatprep.subr.mxu0 0.0
      %1195 = vmatpush1.msra.mxu0 0.0
      %1196 = vmatprep.subr.mxu0 0.0
      %1197 = vmatpush1.msra.mxu0 0.0
      %1198 = vmatprep.subr.mxu0 0.0
      %1199 = vmatpush1.msra.mxu0 0.0
      %1200 = vmatprep.subr.mxu0 0.0
      %1201 = vmatpush1.msra.mxu0 0.0
      %1202 = vmatprep.subr.mxu0 0.0
      %1203 = vmatpush1.msra.mxu0 0.0
      %1204 = vmatprep.subr.mxu0 0.0
      %1205 = vmatpush1.msra.mxu0 0.0
      %1206 = vmatprep.subr.mxu0 0.0
      %1207 = vmatpush1.msra.mxu0 0.0
      %1208 = vmatprep.mubr.f32.mxu0 0.0
      %1209 = vmatmul.mubr.f32.gmra.mrb[0].mxu0 %v1077
      %v1210 = vpop.f32.mrb[0].mxu0
      %v1211 = vadd.f32 0.0, %v1210
      %v1212 = vpop.f32.mrb[0].mxu0
      %1213 = vmatprep.mubr.f32.mxu0 0.0
      %1214 = vmatmul.mubr.f32.gmra.mrb[0].mxu0 %v1079
      %v1215 = vpop.f32.mrb[0].mxu0
      %v1216 = vadd.f32 0.0, %v1215
      %v1217 = vpop.f32.mrb[0].mxu0
      %1218 = vmatprep.mubr.f32.mxu0 0.0
      %1219 = vmatmul.mubr.f32.gmra.mrb[0].mxu0 %v1081
      %v1220 = vpop.f32.mrb[0].mxu0
      %v1221 = vadd.f32 0.0, %v1220
      %v1222 = vpop.f32.mrb[0].mxu0
      %1223 = vmatprep.mubr.f32.mxu0 0.0
      %1224 = vmatmul.mubr.f32.gmra.mrb[0].mxu0 %v1083
      %v1225 = vpop.f32.mrb[0].mxu0
      %v1226 = vadd.f32 0.0, %v1225
      %v1227 = vpop.f32.mrb[0].mxu0
      %1228 = vmatprep.mubr.f32.mxu0 0.0
      %1229 = vmatmul.mubr.f32.gmra.mrb[0].mxu0 %v1085
      %v1230 = vpop.f32.mrb[0].mxu0
      %v1231 = vadd.f32 0.0, %v1230
      %v1232 = vpop.f32.mrb[0].mxu0
      %1233 = vmatprep.mubr.f32.mxu0 0.0
      %1234 = vmatmul.mubr.f32.gmra.mrb[0].mxu0 %v1087
      %v1235 = vpop.f32.mrb[0].mxu0
      %v1236 = vadd.f32 0.0, %v1235
      %v1237 = vpop.f32.mrb[0].mxu0
      %1238 = vmatprep.mubr.f32.mxu0 0.0
      %1239 = vmatmul.mubr.f32.gmra.mrb[0].mxu0 %v1089
      %v1240 = vpop.f32.mrb[0].mxu0
      %v1241 = vadd.f32 0.0, %v1240
      %v1242 = vpop.f32.mrb[0].mxu0
      %1243 = vmatprep.mubr.f32.mxu0 0.0
      %1244 = vmatmul.mubr.f32.gmra.mrb[0].mxu0 %v1091
      %v1245 = vpop.f32.mrb[0].mxu0
      %v1246 = vadd.f32 0.0, %v1245
      %v1247 = vpop.f32.mrb[0].mxu0
      %1248 = vmatprep.mubr.f32.mxu0 0.0
      %1249 = vmatmul.mubr.f32.gmra.mrb[0].mxu0 %v1093
      %v1250 = vpop.f32.mrb[0].mxu0
      %v1251 = vadd.f32 0.0, %v1250
      %v1252 = vpop.f32.mrb[0].mxu0
      %1253 = vmatprep.mubr.f32.mxu0 0.0
      %1254 = vmatmul.mubr.f32.gmra.mrb[0].mxu0 %v1095
      %v1255 = vpop.f32.mrb[0].mxu0
      %v1256 = vadd.f32 0.0, %v1255
      %v1257 = vpop.f32.mrb[0].mxu0
      %1258 = vmatprep.mubr.f32.mxu0 0.0
      %1259 = vmatmul.mubr.f32.gmra.mrb[0].mxu0 %v1097
      %v1260 = vpop.f32.mrb[0].mxu0
      %v1261 = vadd.f32 0.0, %v1260
      %v1262 = vpop.f32.mrb[0].mxu0
      %1263 = vmatprep.mubr.f32.mxu0 0.0
      %1264 = vmatmul.mubr.f32.gmra.mrb[0].mxu0 %v1099
      %v1265 = vpop.f32.mrb[0].mxu0
      %v1266 = vadd.f32 0.0, %v1265
      %v1267 = vpop.f32.mrb[0].mxu0
      %1268 = vmatprep.mubr.f32.mxu0 0.0
      %1269 = vmatmul.mubr.f32.gmra.mrb[0].mxu0 %v1101
      %v1270 = vpop.f32.mrb[0].mxu0
      %v1271 = vadd.f32 0.0, %v1270
      %v1272 = vpop.f32.mrb[0].mxu0
      %1273 = vmatprep.mubr.f32.mxu0 0.0
      %1274 = vmatmul.mubr.f32.gmra.mrb[0].mxu0 %v1103
      %v1275 = vpop.f32.mrb[0].mxu0
      %v1276 = vadd.f32 0.0, %v1275
      %v1277 = vpop.f32.mrb[0].mxu0
      %1278 = vmatprep.mubr.f32.mxu0 0.0
      %1279 = vmatmul.mubr.f32.gmra.mrb[0].mxu0 %v1105
      %v1280 = vpop.f32.mrb[0].mxu0
      %v1281 = vadd.f32 0.0, %v1280
      %v1282 = vpop.f32.mrb[0].mxu0
      %1283 = vmatprep.mubr.f32.mxu0 0.0
      %1284 = vmatmul.mubr.f32.gmra.mrb[0].mxu0 %v1107
      %v1285 = vpop.f32.mrb[0].mxu0
      %v1286 = vadd.f32 0.0, %v1285
      %v1287 = vpop.f32.mrb[0].mxu0
      %1288 = vmatprep.mubr.f32.mxu0 0.0
      %1289 = vmatmul.mubr.f32.gmra.mrb[0].mxu0 %v1109
      %v1290 = vpop.f32.mrb[0].mxu0
      %v1291 = vadd.f32 0.0, %v1290
      %v1292 = vpop.f32.mrb[0].mxu0
      %1293 = vmatprep.mubr.f32.mxu0 0.0
      %1294 = vmatmul.mubr.f32.gmra.mrb[0].mxu0 %v1111
      %v1295 = vpop.f32.mrb[0].mxu0
      %v1296 = vadd.f32 0.0, %v1295
      %v1297 = vpop.f32.mrb[0].mxu0
      %1298 = vmatprep.mubr.f32.mxu0 0.0
      %1299 = vmatmul.mubr.f32.gmra.mrb[0].mxu0 %v1113
      %v1300 = vpop.f32.mrb[0].mxu0
      %v1301 = vadd.f32 0.0, %v1300
      %v1302 = vpop.f32.mrb[0].mxu0
      %1303 = vmatprep.mubr.f32.mxu0 0.0
      %1304 = vmatmul.mubr.f32.gmra.mrb[0].mxu0 %v1115
      %v1305 = vpop.f32.mrb[0].mxu0
      %v1306 = vadd.f32 0.0, %v1305
      %v1307 = vpop.f32.mrb[0].mxu0
      %1308 = vmatprep.mubr.f32.mxu0 0.0
      %1309 = vmatmul.mubr.f32.gmra.mrb[0].mxu0 %v1117
      %v1310 = vpop.f32.mrb[0].mxu0
      %v1311 = vadd.f32 0.0, %v1310
      %v1312 = vpop.f32.mrb[0].mxu0
      %1313 = vmatprep.mubr.f32.mxu0 0.0
      %1314 = vmatmul.mubr.f32.gmra.mrb[0].mxu0 %v1119
      %v1315 = vpop.f32.mrb[0].mxu0
      %v1316 = vadd.f32 0.0, %v1315
      %v1317 = vpop.f32.mrb[0].mxu0
      %1318 = vmatprep.mubr.f32.mxu0 0.0
      %1319 = vmatmul.mubr.f32.gmra.mrb[0].mxu0 %v1121
      %v1320 = vpop.f32.mrb[0].mxu0
      %v1321 = vadd.f32 0.0, %v1320
      %v1322 = vpop.f32.mrb[0].mxu0
      %1323 = vmatprep.mubr.f32.mxu0 0.0
      %1324 = vmatmul.mubr.f32.gmra.mrb[0].mxu0 %v1123
      %v1325 = vpop.f32.mrb[0].mxu0
      %v1326 = vadd.f32 0.0, %v1325
      %v1327 = vpop.f32.mrb[0].mxu0
      %1328 = vmatprep.mubr.f32.mxu0 0.0
      %1329 = vmatmul.mubr.f32.gmra.mrb[0].mxu0 %v1125
      %v1330 = vpop.f32.mrb[0].mxu0
      %v1331 = vadd.f32 0.0, %v1330
      %v1332 = vpop.f32.mrb[0].mxu0
      %1333 = vmatprep.mubr.f32.mxu0 0.0
      %1334 = vmatmul.mubr.f32.gmra.mrb[0].mxu0 %v1127
      %v1335 = vpop.f32.mrb[0].mxu0
      %v1336 = vadd.f32 0.0, %v1335
      %v1337 = vpop.f32.mrb[0].mxu0
      %1338 = vmatprep.mubr.f32.mxu0 0.0
      %1339 = vmatmul.mubr.f32.gmra.mrb[0].mxu0 %v1129
      %v1340 = vpop.f32.mrb[0].mxu0
      %v1341 = vadd.f32 0.0, %v1340
      %v1342 = vpop.f32.mrb[0].mxu0
      %1343 = vmatprep.mubr.f32.mxu0 0.0
      %1344 = vmatmul.mubr.f32.gmra.mrb[0].mxu0 %v1131
      %v1345 = vpop.f32.mrb[0].mxu0
      %v1346 = vadd.f32 0.0, %v1345
      %v1347 = vpop.f32.mrb[0].mxu0
      %1348 = vmatprep.mubr.f32.mxu0 0.0
      %1349 = vmatmul.mubr.f32.gmra.mrb[0].mxu0 %v1133
      %v1350 = vpop.f32.mrb[0].mxu0
      %v1351 = vadd.f32 0.0, %v1350
      %v1352 = vpop.f32.mrb[0].mxu0
      %1353 = vmatprep.mubr.f32.mxu0 0.0
      %1354 = vmatmul.mubr.f32.gmra.mrb[0].mxu0 %v1135
      %v1355 = vpop.f32.mrb[0].mxu0
      %v1356 = vadd.f32 0.0, %v1355
      %v1357 = vpop.f32.mrb[0].mxu0
      %1358 = vmatprep.mubr.f32.mxu0 0.0
      %1359 = vmatmul.mubr.f32.gmra.mrb[0].mxu0 %v1137
      %v1360 = vpop.f32.mrb[0].mxu0
      %v1361 = vadd.f32 0.0, %v1360
      %v1362 = vpop.f32.mrb[0].mxu0
      %1363 = vmatprep.mubr.f32.mxu0 0.0
      %1364 = vmatmul.mubr.f32.gmra.mrb[0].mxu0 %v1139
      %v1365 = vpop.f32.mrb[0].mxu0
      %v1366 = vadd.f32 0.0, %v1365
      %v1367 = vpop.f32.mrb[0].mxu0
      %1368 = vdwg.mxu0
      %v1369 = vadd.f32 %v836, %v1211
      %v1370 = vadd.f32 %v841, %v1216
      %v1371 = vadd.f32 %v846, %v1221
      %v1372 = vadd.f32 %v851, %v1226
      %v1373 = vadd.f32 %v856, %v1231
      %v1374 = vadd.f32 %v861, %v1236
      %v1375 = vadd.f32 %v866, %v1241
      %v1376 = vadd.f32 %v871, %v1246
      %v1377 = vadd.f32 %v876, %v1251
      %v1378 = vadd.f32 %v881, %v1256
      %v1379 = vadd.f32 %v886, %v1261
      %v1380 = vadd.f32 %v891, %v1266
      %v1381 = vadd.f32 %v896, %v1271
      %v1382 = vadd.f32 %v901, %v1276
      %v1383 = vadd.f32 %v906, %v1281
      %v1384 = vadd.f32 %v911, %v1286
      %v1385 = vadd.f32 %v916, %v1291
      %v1386 = vadd.f32 %v921, %v1296
      %v1387 = vadd.f32 %v926, %v1301
      %v1388 = vadd.f32 %v931, %v1306
      %v1389 = vadd.f32 %v936, %v1311
      %v1390 = vadd.f32 %v941, %v1316
      %v1391 = vadd.f32 %v946, %v1321
      %v1392 = vadd.f32 %v951, %v1326
      %v1393 = vadd.f32 %v956, %v1331
      %v1394 = vadd.f32 %v961, %v1336
      %v1395 = vadd.f32 %v966, %v1341
      %v1396 = vadd.f32 %v971, %v1346
      %v1397 = vadd.f32 %v976, %v1351
      %v1398 = vadd.f32 %v981, %v1356
      %v1399 = vadd.f32 %v986, %v1361
      %v1400 = vadd.f32 %v991, %v1366
      %s1401 = scalar_lea.vmem %s219, 24
      %v1402 = vld [vmem:[%s1401] sm:$0xff]
      %v1403 = vld [vmem:[%s1401 + $0x8] sm:$0xff]
      %v1404 = vld [vmem:[%s1401 + $0x10] sm:$0x3]
      %v1405 = vld [vmem:[%s1401 + $0x18] sm:$0xff]
      %v1406 = vld [vmem:[%s1401 + $0x20] sm:$0xff]
      %v1407 = vld [vmem:[%s1401 + $0x28] sm:$0x3]
      %v1408 = vld [vmem:[%s1401 + $0x30] sm:$0xff]
      %v1409 = vld [vmem:[%s1401 + $0x38] sm:$0xff]
      %v1410 = vld [vmem:[%s1401 + $0x40] sm:$0x3]
      %v1411 = vld [vmem:[%s1401 + $0x48] sm:$0xff]
      %v1412 = vld [vmem:[%s1401 + $0x50] sm:$0xff]
      %v1413 = vld [vmem:[%s1401 + $0x58] sm:$0x3]
      %v1414 = vld [vmem:[%s1401 + $0x60] sm:$0xff]
      %v1415 = vld [vmem:[%s1401 + $0x68] sm:$0xff]
      %v1416 = vld [vmem:[%s1401 + $0x70] sm:$0x3]
      %v1417 = vld [vmem:[%s1401 + $0x78] sm:$0xff]
      %v1418 = vld [vmem:[%s1401 + $0x80] sm:$0xff]
      %v1419 = vld [vmem:[%s1401 + $0x88] sm:$0x3]
      %v1420 = vld [vmem:[%s1401 + $0x90] sm:$0xff]
      %v1421 = vld [vmem:[%s1401 + $0x98] sm:$0xff]
      %v1422 = vld [vmem:[%s1401 + $0xa0] sm:$0x3]
      %v1423 = vld [vmem:[%s1401 + $0xa8] sm:$0xff]
      %v1424 = vld [vmem:[%s1401 + $0xb0] sm:$0xff]
      %v1425 = vld [vmem:[%s1401 + $0xb8] sm:$0x3]
      %v1426 = vld [vmem:[%s1401 + $0xc0] sm:$0xff]
      %v1427 = vld [vmem:[%s1401 + $0xc8] sm:$0xff]
      %v1428 = vld [vmem:[%s1401 + $0xd0] sm:$0x3]
      %v1429 = vld [vmem:[%s1401 + $0xd8] sm:$0xff]
      %v1430 = vld [vmem:[%s1401 + $0xe0] sm:$0xff]
      %v1431 = vld [vmem:[%s1401 + $0xe8] sm:$0x3]
      %v1432 = vld [vmem:[%s1401 + $0xf0] sm:$0xff]
      %v1433 = vld [vmem:[%s1401 + $0xf8] sm:$0xff]
      %v1434 = vld [vmem:[%s1401 + $0x100] sm:$0x3]
      %v1435 = vld [vmem:[%s1401 + $0x108] sm:$0xff]
      %v1436 = vld [vmem:[%s1401 + $0x110] sm:$0xff]
      %v1437 = vld [vmem:[%s1401 + $0x118] sm:$0x3]
      %v1438 = vld [vmem:[%s1401 + $0x120] sm:$0xff]
      %v1439 = vld [vmem:[%s1401 + $0x128] sm:$0xff]
      %v1440 = vld [vmem:[%s1401 + $0x130] sm:$0x3]
      %v1441 = vld [vmem:[%s1401 + $0x138] sm:$0xff]
      %v1442 = vld [vmem:[%s1401 + $0x140] sm:$0xff]
      %v1443 = vld [vmem:[%s1401 + $0x148] sm:$0x3]
      %v1444 = vld [vmem:[%s1401 + $0x150] sm:$0xff]
      %v1445 = vld [vmem:[%s1401 + $0x158] sm:$0xff]
      %v1446 = vld [vmem:[%s1401 + $0x160] sm:$0x3]
      %v1447 = vld [vmem:[%s1401 + $0x168] sm:$0xff]
      %v1448 = vld [vmem:[%s1401 + $0x170] sm:$0xff]
      %v1449 = vld [vmem:[%s1401 + $0x178] sm:$0x3]
      %s1450 = scalar_lea.vmem %s1, 12
      %v1451 = vld [vmem:[%s1450] sm:$0xf]
      %v1453 = vsel %vm408, %v1402, 0
      %v1456 = vsel %vm408, %v1403, 0
      %v1459 = vsel %vm408, %v1405, 0
      %v1462 = vsel %vm408, %v1406, 0
      %v1465 = vsel %vm408, %v1408, 0
      %v1468 = vsel %vm408, %v1409, 0
      %v1471 = vsel %vm408, %v1411, 0
      %v1474 = vsel %vm408, %v1412, 0
      %v1477 = vsel %vm408, %v1414, 0
      %v1480 = vsel %vm408, %v1415, 0
      %v1483 = vsel %vm408, %v1417, 0
      %v1486 = vsel %vm408, %v1418, 0
      %v1489 = vsel %vm408, %v1420, 0
      %v1492 = vsel %vm408, %v1421, 0
      %v1495 = vsel %vm408, %v1423, 0
      %v1498 = vsel %vm408, %v1424, 0
      %v1501 = vsel %vm408, %v1426, 0
      %v1504 = vsel %vm408, %v1427, 0
      %v1507 = vsel %vm408, %v1429, 0
      %v1510 = vsel %vm408, %v1430, 0
      %v1513 = vsel %vm408, %v1432, 0
      %v1516 = vsel %vm408, %v1433, 0
      %v1519 = vsel %vm408, %v1435, 0
      %v1522 = vsel %vm408, %v1436, 0
      %v1525 = vsel %vm408, %v1438, 0
      %v1528 = vsel %vm408, %v1439, 0
      %v1531 = vsel %vm408, %v1441, 0
      %v1534 = vsel %vm408, %v1442, 0
      %v1537 = vsel %vm408, %v1444, 0
      %v1540 = vsel %vm408, %v1445, 0
      %v1543 = vsel %vm408, %v1447, 0
      %v1546 = vsel %vm408, %v1448, 0
      %v1549 = vsel %vm473, %v1451, 0
      %1551 = vmatprep.subr.mxu0 0.0
      %1552 = vmatpush1.msra.mxu0 %v1549
      %1553 = vmatprep.subr.mxu0 0.0
      %1554 = vmatpush1.msra.mxu0 0.0
      %1555 = vmatprep.subr.mxu0 0.0
      %1556 = vmatpush1.msra.mxu0 0.0
      %1557 = vmatprep.subr.mxu0 0.0
      %1558 = vmatpush1.msra.mxu0 0.0
      %1559 = vmatprep.subr.mxu0 0.0
      %1560 = vmatpush1.msra.mxu0 0.0
      %1561 = vmatprep.subr.mxu0 0.0
      %1562 = vmatpush1.msra.mxu0 0.0
      %1563 = vmatprep.subr.mxu0 0.0
      %1564 = vmatpush1.msra.mxu0 0.0
      %1565 = vmatprep.subr.mxu0 0.0
      %1566 = vmatpush1.msra.mxu0 0.0
      %1567 = vmatprep.subr.mxu0 0.0
      %1568 = vmatpush1.msra.mxu0 0.0
      %1569 = vmatprep.subr.mxu0 0.0
      %1570 = vmatpush1.msra.mxu0 0.0
      %1571 = vmatprep.subr.mxu0 0.0
      %1572 = vmatpush1.msra.mxu0 0.0
      %1573 = vmatprep.subr.mxu0 0.0
      %1574 = vmatpush1.msra.mxu0 0.0
      %1575 = vmatprep.subr.mxu0 0.0
      %1576 = vmatpush1.msra.mxu0 0.0
      %1577 = vmatprep.subr.mxu0 0.0
      %1578 = vmatpush1.msra.mxu0 0.0
      %1579 = vmatprep.subr.mxu0 0.0
      %1580 = vmatpush1.msra.mxu0 0.0
      %1581 = vmatprep.subr.mxu0 0.0
      %1582 = vmatpush1.msra.mxu0 0.0
      %1583 = vmatprep.subr.mxu0 0.0
      %1584 = vmatpush1.msra.mxu0 0.0
      %1585 = vmatprep.subr.mxu0 0.0
      %1586 = vmatpush1.msra.mxu0 0.0
      %1587 = vmatprep.subr.mxu0 0.0
      %1588 = vmatpush1.msra.mxu0 0.0
      %1589 = vmatprep.subr.mxu0 0.0
      %1590 = vmatpush1.msra.mxu0 0.0
      %1591 = vmatprep.subr.mxu0 0.0
      %1592 = vmatpush1.msra.mxu0 0.0
      %1593 = vmatprep.subr.mxu0 0.0
      %1594 = vmatpush1.msra.mxu0 0.0
      %1595 = vmatprep.subr.mxu0 0.0
      %1596 = vmatpush1.msra.mxu0 0.0
      %1597 = vmatprep.subr.mxu0 0.0
      %1598 = vmatpush1.msra.mxu0 0.0
      %1599 = vmatprep.subr.mxu0 0.0
      %1600 = vmatpush1.msra.mxu0 0.0
      %1601 = vmatprep.subr.mxu0 0.0
      %1602 = vmatpush1.msra.mxu0 0.0
      %1603 = vmatprep.subr.mxu0 0.0
      %1604 = vmatpush1.msra.mxu0 0.0
      %1605 = vmatprep.subr.mxu0 0.0
      %1606 = vmatpush1.msra.mxu0 0.0
      %1607 = vmatprep.subr.mxu0 0.0
      %1608 = vmatpush1.msra.mxu0 0.0
      %1609 = vmatprep.subr.mxu0 0.0
      %1610 = vmatpush1.msra.mxu0 0.0
      %1611 = vmatprep.subr.mxu0 0.0
      %1612 = vmatpush1.msra.mxu0 0.0
      %1613 = vmatprep.subr.mxu0 0.0
      %1614 = vmatpush1.msra.mxu0 0.0
      %1615 = vmatprep.mubr.f32.mxu0 0.0
      %1616 = vmatmul.mubr.f32.gmra.mrb[0].mxu0 %v1453
      %v1617 = vpop.f32.mrb[0].mxu0
      %v1618 = vadd.f32 0.0, %v1617
      %v1619 = vpop.f32.mrb[0].mxu0
      %1620 = vmatprep.mubr.f32.mxu0 0.0
      %1621 = vmatmul.mubr.f32.gmra.mrb[0].mxu0 %v1456
      %v1622 = vpop.f32.mrb[0].mxu0
      %v1623 = vadd.f32 0.0, %v1622
      %v1624 = vpop.f32.mrb[0].mxu0
      %1625 = vmatprep.mubr.f32.mxu0 0.0
      %1626 = vmatmul.mubr.f32.gmra.mrb[0].mxu0 %v1459
      %v1627 = vpop.f32.mrb[0].mxu0
      %v1628 = vadd.f32 0.0, %v1627
      %v1629 = vpop.f32.mrb[0].mxu0
      %1630 = vmatprep.mubr.f32.mxu0 0.0
      %1631 = vmatmul.mubr.f32.gmra.mrb[0].mxu0 %v1462
      %v1632 = vpop.f32.mrb[0].mxu0
      %v1633 = vadd.f32 0.0, %v1632
      %v1634 = vpop.f32.mrb[0].mxu0
      %1635 = vmatprep.mubr.f32.mxu0 0.0
      %1636 = vmatmul.mubr.f32.gmra.mrb[0].mxu0 %v1465
      %v1637 = vpop.f32.mrb[0].mxu0
      %v1638 = vadd.f32 0.0, %v1637
      %v1639 = vpop.f32.mrb[0].mxu0
      %1640 = vmatprep.mubr.f32.mxu0 0.0
      %1641 = vmatmul.mubr.f32.gmra.mrb[0].mxu0 %v1468
      %v1642 = vpop.f32.mrb[0].mxu0
      %v1643 = vadd.f32 0.0, %v1642
      %v1644 = vpop.f32.mrb[0].mxu0
      %1645 = vmatprep.mubr.f32.mxu0 0.0
      %1646 = vmatmul.mubr.f32.gmra.mrb[0].mxu0 %v1471
      %v1647 = vpop.f32.mrb[0].mxu0
      %v1648 = vadd.f32 0.0, %v1647
      %v1649 = vpop.f32.mrb[0].mxu0
      %1650 = vmatprep.mubr.f32.mxu0 0.0
      %1651 = vmatmul.mubr.f32.gmra.mrb[0].mxu0 %v1474
      %v1652 = vpop.f32.mrb[0].mxu0
      %v1653 = vadd.f32 0.0, %v1652
      %v1654 = vpop.f32.mrb[0].mxu0
      %1655 = vmatprep.mubr.f32.mxu0 0.0
      %1656 = vmatmul.mubr.f32.gmra.mrb[0].mxu0 %v1477
      %v1657 = vpop.f32.mrb[0].mxu0
      %v1658 = vadd.f32 0.0, %v1657
      %v1659 = vpop.f32.mrb[0].mxu0
      %1660 = vmatprep.mubr.f32.mxu0 0.0
      %1661 = vmatmul.mubr.f32.gmra.mrb[0].mxu0 %v1480
      %v1662 = vpop.f32.mrb[0].mxu0
      %v1663 = vadd.f32 0.0, %v1662
      %v1664 = vpop.f32.mrb[0].mxu0
      %1665 = vmatprep.mubr.f32.mxu0 0.0
      %1666 = vmatmul.mubr.f32.gmra.mrb[0].mxu0 %v1483
      %v1667 = vpop.f32.mrb[0].mxu0
      %v1668 = vadd.f32 0.0, %v1667
      %v1669 = vpop.f32.mrb[0].mxu0
      %1670 = vmatprep.mubr.f32.mxu0 0.0
      %1671 = vmatmul.mubr.f32.gmra.mrb[0].mxu0 %v1486
      %v1672 = vpop.f32.mrb[0].mxu0
      %v1673 = vadd.f32 0.0, %v1672
      %v1674 = vpop.f32.mrb[0].mxu0
      %1675 = vmatprep.mubr.f32.mxu0 0.0
      %1676 = vmatmul.mubr.f32.gmra.mrb[0].mxu0 %v1489
      %v1677 = vpop.f32.mrb[0].mxu0
      %v1678 = vadd.f32 0.0, %v1677
      %v1679 = vpop.f32.mrb[0].mxu0
      %1680 = vmatprep.mubr.f32.mxu0 0.0
      %1681 = vmatmul.mubr.f32.gmra.mrb[0].mxu0 %v1492
      %v1682 = vpop.f32.mrb[0].mxu0
      %v1683 = vadd.f32 0.0, %v1682
      %v1684 = vpop.f32.mrb[0].mxu0
      %1685 = vmatprep.mubr.f32.mxu0 0.0
      %1686 = vmatmul.mubr.f32.gmra.mrb[0].mxu0 %v1495
      %v1687 = vpop.f32.mrb[0].mxu0
      %v1688 = vadd.f32 0.0, %v1687
      %v1689 = vpop.f32.mrb[0].mxu0
      %1690 = vmatprep.mubr.f32.mxu0 0.0
      %1691 = vmatmul.mubr.f32.gmra.mrb[0].mxu0 %v1498
      %v1692 = vpop.f32.mrb[0].mxu0
      %v1693 = vadd.f32 0.0, %v1692
      %v1694 = vpop.f32.mrb[0].mxu0
      %1695 = vmatprep.mubr.f32.mxu0 0.0
      %1696 = vmatmul.mubr.f32.gmra.mrb[0].mxu0 %v1501
      %v1697 = vpop.f32.mrb[0].mxu0
      %v1698 = vadd.f32 0.0, %v1697
      %v1699 = vpop.f32.mrb[0].mxu0
      %1700 = vmatprep.mubr.f32.mxu0 0.0
      %1701 = vmatmul.mubr.f32.gmra.mrb[0].mxu0 %v1504
      %v1702 = vpop.f32.mrb[0].mxu0
      %v1703 = vadd.f32 0.0, %v1702
      %v1704 = vpop.f32.mrb[0].mxu0
      %1705 = vmatprep.mubr.f32.mxu0 0.0
      %1706 = vmatmul.mubr.f32.gmra.mrb[0].mxu0 %v1507
      %v1707 = vpop.f32.mrb[0].mxu0
      %v1708 = vadd.f32 0.0, %v1707
      %v1709 = vpop.f32.mrb[0].mxu0
      %1710 = vmatprep.mubr.f32.mxu0 0.0
      %1711 = vmatmul.mubr.f32.gmra.mrb[0].mxu0 %v1510
      %v1712 = vpop.f32.mrb[0].mxu0
      %v1713 = vadd.f32 0.0, %v1712
      %v1714 = vpop.f32.mrb[0].mxu0
      %1715 = vmatprep.mubr.f32.mxu0 0.0
      %1716 = vmatmul.mubr.f32.gmra.mrb[0].mxu0 %v1513
      %v1717 = vpop.f32.mrb[0].mxu0
      %v1718 = vadd.f32 0.0, %v1717
      %v1719 = vpop.f32.mrb[0].mxu0
      %1720 = vmatprep.mubr.f32.mxu0 0.0
      %1721 = vmatmul.mubr.f32.gmra.mrb[0].mxu0 %v1516
      %v1722 = vpop.f32.mrb[0].mxu0
      %v1723 = vadd.f32 0.0, %v1722
      %v1724 = vpop.f32.mrb[0].mxu0
      %1725 = vmatprep.mubr.f32.mxu0 0.0
      %1726 = vmatmul.mubr.f32.gmra.mrb[0].mxu0 %v1519
      %v1727 = vpop.f32.mrb[0].mxu0
      %v1728 = vadd.f32 0.0, %v1727
      %v1729 = vpop.f32.mrb[0].mxu0
      %1730 = vmatprep.mubr.f32.mxu0 0.0
      %1731 = vmatmul.mubr.f32.gmra.mrb[0].mxu0 %v1522
      %v1732 = vpop.f32.mrb[0].mxu0
      %v1733 = vadd.f32 0.0, %v1732
      %v1734 = vpop.f32.mrb[0].mxu0
      %1735 = vmatprep.mubr.f32.mxu0 0.0
      %1736 = vmatmul.mubr.f32.gmra.mrb[0].mxu0 %v1525
      %v1737 = vpop.f32.mrb[0].mxu0
      %v1738 = vadd.f32 0.0, %v1737
      %v1739 = vpop.f32.mrb[0].mxu0
      %1740 = vmatprep.mubr.f32.mxu0 0.0
      %1741 = vmatmul.mubr.f32.gmra.mrb[0].mxu0 %v1528
      %v1742 = vpop.f32.mrb[0].mxu0
      %v1743 = vadd.f32 0.0, %v1742
      %v1744 = vpop.f32.mrb[0].mxu0
      %1745 = vmatprep.mubr.f32.mxu0 0.0
      %1746 = vmatmul.mubr.f32.gmra.mrb[0].mxu0 %v1531
      %v1747 = vpop.f32.mrb[0].mxu0
      %v1748 = vadd.f32 0.0, %v1747
      %v1749 = vpop.f32.mrb[0].mxu0
      %1750 = vmatprep.mubr.f32.mxu0 0.0
      %1751 = vmatmul.mubr.f32.gmra.mrb[0].mxu0 %v1534
      %v1752 = vpop.f32.mrb[0].mxu0
      %v1753 = vadd.f32 0.0, %v1752
      %v1754 = vpop.f32.mrb[0].mxu0
      %1755 = vmatprep.mubr.f32.mxu0 0.0
      %1756 = vmatmul.mubr.f32.gmra.mrb[0].mxu0 %v1537
      %v1757 = vpop.f32.mrb[0].mxu0
      %v1758 = vadd.f32 0.0, %v1757
      %v1759 = vpop.f32.mrb[0].mxu0
      %1760 = vmatprep.mubr.f32.mxu0 0.0
      %1761 = vmatmul.mubr.f32.gmra.mrb[0].mxu0 %v1540
      %v1762 = vpop.f32.mrb[0].mxu0
      %v1763 = vadd.f32 0.0, %v1762
      %v1764 = vpop.f32.mrb[0].mxu0
      %1765 = vmatprep.mubr.f32.mxu0 0.0
      %1766 = vmatmul.mubr.f32.gmra.mrb[0].mxu0 %v1543
      %v1767 = vpop.f32.mrb[0].mxu0
      %v1768 = vadd.f32 0.0, %v1767
      %v1769 = vpop.f32.mrb[0].mxu0
      %1770 = vmatprep.mubr.f32.mxu0 0.0
      %1771 = vmatmul.mubr.f32.gmra.mrb[0].mxu0 %v1546
      %v1772 = vpop.f32.mrb[0].mxu0
      %v1773 = vadd.f32 0.0, %v1772
      %v1774 = vpop.f32.mrb[0].mxu0
      %1775 = vdwg.mxu0
      %v1776 = vadd.f32 %v1369, %v1618
      %v1777 = vadd.f32 %v1370, %v1623
      %v1778 = vadd.f32 %v1371, %v1628
      %v1779 = vadd.f32 %v1372, %v1633
      %v1780 = vadd.f32 %v1373, %v1638
      %v1781 = vadd.f32 %v1374, %v1643
      %v1782 = vadd.f32 %v1375, %v1648
      %v1783 = vadd.f32 %v1376, %v1653
      %v1784 = vadd.f32 %v1377, %v1658
      %v1785 = vadd.f32 %v1378, %v1663
      %v1786 = vadd.f32 %v1379, %v1668
      %v1787 = vadd.f32 %v1380, %v1673
      %v1788 = vadd.f32 %v1381, %v1678
      %v1789 = vadd.f32 %v1382, %v1683
      %v1790 = vadd.f32 %v1383, %v1688
      %v1791 = vadd.f32 %v1384, %v1693
      %v1792 = vadd.f32 %v1385, %v1698
      %v1793 = vadd.f32 %v1386, %v1703
      %v1794 = vadd.f32 %v1387, %v1708
      %v1795 = vadd.f32 %v1388, %v1713
      %v1796 = vadd.f32 %v1389, %v1718
      %v1797 = vadd.f32 %v1390, %v1723
      %v1798 = vadd.f32 %v1391, %v1728
      %v1799 = vadd.f32 %v1392, %v1733
      %v1800 = vadd.f32 %v1393, %v1738
      %v1801 = vadd.f32 %v1394, %v1743
      %v1802 = vadd.f32 %v1395, %v1748
      %v1803 = vadd.f32 %v1396, %v1753
      %v1804 = vadd.f32 %v1397, %v1758
      %v1805 = vadd.f32 %v1398, %v1763
      %v1806 = vadd.f32 %v1399, %v1768
      %v1807 = vadd.f32 %v1400, %v1773
      %v1824 = vrot.slane %v1402, 1
      %v1825 = vrot.slane %v1403, 1
      %v1826 = vsel %vm325, %v1824, %v1825
      %v1827 = vrot.slane %v1404, 1
      %v1828 = vsel %vm325, %v1825, %v1827
      %v1829 = vrot.slane %v1405, 1
      %v1830 = vrot.slane %v1406, 1
      %v1831 = vsel %vm325, %v1829, %v1830
      %v1832 = vrot.slane %v1407, 1
      %v1833 = vsel %vm325, %v1830, %v1832
      %v1834 = vrot.slane %v1408, 1
      %v1835 = vrot.slane %v1409, 1
      %v1836 = vsel %vm325, %v1834, %v1835
      %v1837 = vrot.slane %v1410, 1
      %v1838 = vsel %vm325, %v1835, %v1837
      %v1839 = vrot.slane %v1411, 1
      %v1840 = vrot.slane %v1412, 1
      %v1841 = vsel %vm325, %v1839, %v1840
      %v1842 = vrot.slane %v1413, 1
      %v1843 = vsel %vm325, %v1840, %v1842
      %v1844 = vrot.slane %v1414, 1
      %v1845 = vrot.slane %v1415, 1
      %v1846 = vsel %vm325, %v1844, %v1845
      %v1847 = vrot.slane %v1416, 1
      %v1848 = vsel %vm325, %v1845, %v1847
      %v1849 = vrot.slane %v1417, 1
      %v1850 = vrot.slane %v1418, 1
      %v1851 = vsel %vm325, %v1849, %v1850
      %v1852 = vrot.slane %v1419, 1
      %v1853 = vsel %vm325, %v1850, %v1852
      %v1854 = vrot.slane %v1420, 1
      %v1855 = vrot.slane %v1421, 1
      %v1856 = vsel %vm325, %v1854, %v1855
      %v1857 = vrot.slane %v1422, 1
      %v1858 = vsel %vm325, %v1855, %v1857
      %v1859 = vrot.slane %v1423, 1
      %v1860 = vrot.slane %v1424, 1
      %v1861 = vsel %vm325, %v1859, %v1860
      %v1862 = vrot.slane %v1425, 1
      %v1863 = vsel %vm325, %v1860, %v1862
      %v1864 = vrot.slane %v1426, 1
      %v1865 = vrot.slane %v1427, 1
      %v1866 = vsel %vm325, %v1864, %v1865
      %v1867 = vrot.slane %v1428, 1
      %v1868 = vsel %vm325, %v1865, %v1867
      %v1869 = vrot.slane %v1429, 1
      %v1870 = vrot.slane %v1430, 1
      %v1871 = vsel %vm325, %v1869, %v1870
      %v1872 = vrot.slane %v1431, 1
      %v1873 = vsel %vm325, %v1870, %v1872
      %v1874 = vrot.slane %v1432, 1
      %v1875 = vrot.slane %v1433, 1
      %v1876 = vsel %vm325, %v1874, %v1875
      %v1877 = vrot.slane %v1434, 1
      %v1878 = vsel %vm325, %v1875, %v1877
      %v1879 = vrot.slane %v1435, 1
      %v1880 = vrot.slane %v1436, 1
      %v1881 = vsel %vm325, %v1879, %v1880
      %v1882 = vrot.slane %v1437, 1
      %v1883 = vsel %vm325, %v1880, %v1882
      %v1884 = vrot.slane %v1438, 1
      %v1885 = vrot.slane %v1439, 1
      %v1886 = vsel %vm325, %v1884, %v1885
      %v1887 = vrot.slane %v1440, 1
      %v1888 = vsel %vm325, %v1885, %v1887
      %v1889 = vrot.slane %v1441, 1
      %v1890 = vrot.slane %v1442, 1
      %v1891 = vsel %vm325, %v1889, %v1890
      %v1892 = vrot.slane %v1443, 1
      %v1893 = vsel %vm325, %v1890, %v1892
      %v1894 = vrot.slane %v1444, 1
      %v1895 = vrot.slane %v1445, 1
      %v1896 = vsel %vm325, %v1894, %v1895
      %v1897 = vrot.slane %v1446, 1
      %v1898 = vsel %vm325, %v1895, %v1897
      %v1899 = vrot.slane %v1447, 1
      %v1900 = vrot.slane %v1448, 1
      %v1901 = vsel %vm325, %v1899, %v1900
      %v1902 = vrot.slane %v1449, 1
      %v1903 = vsel %vm325, %v1900, %v1902
      %s1904 = scalar_lea.vmem %s1, 16
      %v1905 = vld [vmem:[%s1904] sm:$0xf]
      %v1906 = vsel %vm408, %v1826, 0
      %v1908 = vsel %vm408, %v1828, 0
      %v1910 = vsel %vm408, %v1831, 0
      %v1912 = vsel %vm408, %v1833, 0
      %v1914 = vsel %vm408, %v1836, 0
      %v1916 = vsel %vm408, %v1838, 0
      %v1918 = vsel %vm408, %v1841, 0
      %v1920 = vsel %vm408, %v1843, 0
      %v1922 = vsel %vm408, %v1846, 0
      %v1924 = vsel %vm408, %v1848, 0
      %v1926 = vsel %vm408, %v1851, 0
      %v1928 = vsel %vm408, %v1853, 0
      %v1930 = vsel %vm408, %v1856, 0
      %v1932 = vsel %vm408, %v1858, 0
      %v1934 = vsel %vm408, %v1861, 0
      %v1936 = vsel %vm408, %v1863, 0
      %v1938 = vsel %vm408, %v1866, 0
      %v1940 = vsel %vm408, %v1868, 0
      %v1942 = vsel %vm408, %v1871, 0
      %v1944 = vsel %vm408, %v1873, 0
      %v1946 = vsel %vm408, %v1876, 0
      %v1948 = vsel %vm408, %v1878, 0
      %v1950 = vsel %vm408, %v1881, 0
      %v1952 = vsel %vm408, %v1883, 0
      %v1954 = vsel %vm408, %v1886, 0
      %v1956 = vsel %vm408, %v1888, 0
      %v1958 = vsel %vm408, %v1891, 0
      %v1960 = vsel %vm408, %v1893, 0
      %v1962 = vsel %vm408, %v1896, 0
      %v1964 = vsel %vm408, %v1898, 0
      %v1966 = vsel %vm408, %v1901, 0
      %v1968 = vsel %vm408, %v1903, 0
      %v1971 = vsel %vm473, %v1905, 0
      %1973 = vmatprep.subr.mxu0 0.0
      %1974 = vmatpush1.msra.mxu0 %v1971
      %1975 = vmatprep.subr.mxu0 0.0
      %1976 = vmatpush1.msra.mxu0 0.0
      %1977 = vmatprep.subr.mxu0 0.0
      %1978 = vmatpush1.msra.mxu0 0.0
      %1979 = vmatprep.subr.mxu0 0.0
      %1980 = vmatpush1.msra.mxu0 0.0
      %1981 = vmatprep.subr.mxu0 0.0
      %1982 = vmatpush1.msra.mxu0 0.0
      %1983 = vmatprep.subr.mxu0 0.0
      %1984 = vmatpush1.msra.mxu0 0.0
      %1985 = vmatprep.subr.mxu0 0.0
      %1986 = vmatpush1.msra.mxu0 0.0
      %1987 = vmatprep.subr.mxu0 0.0
      %1988 = vmatpush1.msra.mxu0 0.0
      %1989 = vmatprep.subr.mxu0 0.0
      %1990 = vmatpush1.msra.mxu0 0.0
      %1991 = vmatprep.subr.mxu0 0.0
      %1992 = vmatpush1.msra.mxu0 0.0
      %1993 = vmatprep.subr.mxu0 0.0
      %1994 = vmatpush1.msra.mxu0 0.0
      %1995 = vmatprep.subr.mxu0 0.0
      %1996 = vmatpush1.msra.mxu0 0.0
      %1997 = vmatprep.subr.mxu0 0.0
      %1998 = vmatpush1.msra.mxu0 0.0
      %1999 = vmatprep.subr.mxu0 0.0
      %2000 = vmatpush1.msra.mxu0 0.0
      %2001 = vmatprep.subr.mxu0 0.0
      %2002 = vmatpush1.msra.mxu0 0.0
      %2003 = vmatprep.subr.mxu0 0.0
      %2004 = vmatpush1.msra.mxu0 0.0
      %2005 = vmatprep.subr.mxu0 0.0
      %2006 = vmatpush1.msra.mxu0 0.0
      %2007 = vmatprep.subr.mxu0 0.0
      %2008 = vmatpush1.msra.mxu0 0.0
      %2009 = vmatprep.subr.mxu0 0.0
      %2010 = vmatpush1.msra.mxu0 0.0
      %2011 = vmatprep.subr.mxu0 0.0
      %2012 = vmatpush1.msra.mxu0 0.0
      %2013 = vmatprep.subr.mxu0 0.0
      %2014 = vmatpush1.msra.mxu0 0.0
      %2015 = vmatprep.subr.mxu0 0.0
      %2016 = vmatpush1.msra.mxu0 0.0
      %2017 = vmatprep.subr.mxu0 0.0
      %2018 = vmatpush1.msra.mxu0 0.0
      %2019 = vmatprep.subr.mxu0 0.0
      %2020 = vmatpush1.msra.mxu0 0.0
      %2021 = vmatprep.subr.mxu0 0.0
      %2022 = vmatpush1.msra.mxu0 0.0
      %2023 = vmatprep.subr.mxu0 0.0
      %2024 = vmatpush1.msra.mxu0 0.0
      %2025 = vmatprep.subr.mxu0 0.0
      %2026 = vmatpush1.msra.mxu0 0.0
      %2027 = vmatprep.subr.mxu0 0.0
      %2028 = vmatpush1.msra.mxu0 0.0
      %2029 = vmatprep.subr.mxu0 0.0
      %2030 = vmatpush1.msra.mxu0 0.0
      %2031 = vmatprep.subr.mxu0 0.0
      %2032 = vmatpush1.msra.mxu0 0.0
      %2033 = vmatprep.subr.mxu0 0.0
      %2034 = vmatpush1.msra.mxu0 0.0
      %2035 = vmatprep.subr.mxu0 0.0
      %2036 = vmatpush1.msra.mxu0 0.0
      %2037 = vmatprep.mubr.f32.mxu0 0.0
      %2038 = vmatmul.mubr.f32.gmra.mrb[0].mxu0 %v1906
      %v2039 = vpop.f32.mrb[0].mxu0
      %v2040 = vadd.f32 0.0, %v2039
      %v2041 = vpop.f32.mrb[0].mxu0
      %2042 = vmatprep.mubr.f32.mxu0 0.0
      %2043 = vmatmul.mubr.f32.gmra.mrb[0].mxu0 %v1908
      %v2044 = vpop.f32.mrb[0].mxu0
      %v2045 = vadd.f32 0.0, %v2044
      %v2046 = vpop.f32.mrb[0].mxu0
      %2047 = vmatprep.mubr.f32.mxu0 0.0
      %2048 = vmatmul.mubr.f32.gmra.mrb[0].mxu0 %v1910
      %v2049 = vpop.f32.mrb[0].mxu0
      %v2050 = vadd.f32 0.0, %v2049
      %v2051 = vpop.f32.mrb[0].mxu0
      %2052 = vmatprep.mubr.f32.mxu0 0.0
      %2053 = vmatmul.mubr.f32.gmra.mrb[0].mxu0 %v1912
      %v2054 = vpop.f32.mrb[0].mxu0
      %v2055 = vadd.f32 0.0, %v2054
      %v2056 = vpop.f32.mrb[0].mxu0
      %2057 = vmatprep.mubr.f32.mxu0 0.0
      %2058 = vmatmul.mubr.f32.gmra.mrb[0].mxu0 %v1914
      %v2059 = vpop.f32.mrb[0].mxu0
      %v2060 = vadd.f32 0.0, %v2059
      %v2061 = vpop.f32.mrb[0].mxu0
      %2062 = vmatprep.mubr.f32.mxu0 0.0
      %2063 = vmatmul.mubr.f32.gmra.mrb[0].mxu0 %v1916
      %v2064 = vpop.f32.mrb[0].mxu0
      %v2065 = vadd.f32 0.0, %v2064
      %v2066 = vpop.f32.mrb[0].mxu0
      %2067 = vmatprep.mubr.f32.mxu0 0.0
      %2068 = vmatmul.mubr.f32.gmra.mrb[0].mxu0 %v1918
      %v2069 = vpop.f32.mrb[0].mxu0
      %v2070 = vadd.f32 0.0, %v2069
      %v2071 = vpop.f32.mrb[0].mxu0
      %2072 = vmatprep.mubr.f32.mxu0 0.0
      %2073 = vmatmul.mubr.f32.gmra.mrb[0].mxu0 %v1920
      %v2074 = vpop.f32.mrb[0].mxu0
      %v2075 = vadd.f32 0.0, %v2074
      %v2076 = vpop.f32.mrb[0].mxu0
      %2077 = vmatprep.mubr.f32.mxu0 0.0
      %2078 = vmatmul.mubr.f32.gmra.mrb[0].mxu0 %v1922
      %v2079 = vpop.f32.mrb[0].mxu0
      %v2080 = vadd.f32 0.0, %v2079
      %v2081 = vpop.f32.mrb[0].mxu0
      %2082 = vmatprep.mubr.f32.mxu0 0.0
      %2083 = vmatmul.mubr.f32.gmra.mrb[0].mxu0 %v1924
      %v2084 = vpop.f32.mrb[0].mxu0
      %v2085 = vadd.f32 0.0, %v2084
      %v2086 = vpop.f32.mrb[0].mxu0
      %2087 = vmatprep.mubr.f32.mxu0 0.0
      %2088 = vmatmul.mubr.f32.gmra.mrb[0].mxu0 %v1926
      %v2089 = vpop.f32.mrb[0].mxu0
      %v2090 = vadd.f32 0.0, %v2089
      %v2091 = vpop.f32.mrb[0].mxu0
      %2092 = vmatprep.mubr.f32.mxu0 0.0
      %2093 = vmatmul.mubr.f32.gmra.mrb[0].mxu0 %v1928
      %v2094 = vpop.f32.mrb[0].mxu0
      %v2095 = vadd.f32 0.0, %v2094
      %v2096 = vpop.f32.mrb[0].mxu0
      %2097 = vmatprep.mubr.f32.mxu0 0.0
      %2098 = vmatmul.mubr.f32.gmra.mrb[0].mxu0 %v1930
      %v2099 = vpop.f32.mrb[0].mxu0
      %v2100 = vadd.f32 0.0, %v2099
      %v2101 = vpop.f32.mrb[0].mxu0
      %2102 = vmatprep.mubr.f32.mxu0 0.0
      %2103 = vmatmul.mubr.f32.gmra.mrb[0].mxu0 %v1932
      %v2104 = vpop.f32.mrb[0].mxu0
      %v2105 = vadd.f32 0.0, %v2104
      %v2106 = vpop.f32.mrb[0].mxu0
      %2107 = vmatprep.mubr.f32.mxu0 0.0
      %2108 = vmatmul.mubr.f32.gmra.mrb[0].mxu0 %v1934
      %v2109 = vpop.f32.mrb[0].mxu0
      %v2110 = vadd.f32 0.0, %v2109
      %v2111 = vpop.f32.mrb[0].mxu0
      %2112 = vmatprep.mubr.f32.mxu0 0.0
      %2113 = vmatmul.mubr.f32.gmra.mrb[0].mxu0 %v1936
      %v2114 = vpop.f32.mrb[0].mxu0
      %v2115 = vadd.f32 0.0, %v2114
      %v2116 = vpop.f32.mrb[0].mxu0
      %2117 = vmatprep.mubr.f32.mxu0 0.0
      %2118 = vmatmul.mubr.f32.gmra.mrb[0].mxu0 %v1938
      %v2119 = vpop.f32.mrb[0].mxu0
      %v2120 = vadd.f32 0.0, %v2119
      %v2121 = vpop.f32.mrb[0].mxu0
      %2122 = vmatprep.mubr.f32.mxu0 0.0
      %2123 = vmatmul.mubr.f32.gmra.mrb[0].mxu0 %v1940
      %v2124 = vpop.f32.mrb[0].mxu0
      %v2125 = vadd.f32 0.0, %v2124
      %v2126 = vpop.f32.mrb[0].mxu0
      %2127 = vmatprep.mubr.f32.mxu0 0.0
      %2128 = vmatmul.mubr.f32.gmra.mrb[0].mxu0 %v1942
      %v2129 = vpop.f32.mrb[0].mxu0
      %v2130 = vadd.f32 0.0, %v2129
      %v2131 = vpop.f32.mrb[0].mxu0
      %2132 = vmatprep.mubr.f32.mxu0 0.0
      %2133 = vmatmul.mubr.f32.gmra.mrb[0].mxu0 %v1944
      %v2134 = vpop.f32.mrb[0].mxu0
      %v2135 = vadd.f32 0.0, %v2134
      %v2136 = vpop.f32.mrb[0].mxu0
      %2137 = vmatprep.mubr.f32.mxu0 0.0
      %2138 = vmatmul.mubr.f32.gmra.mrb[0].mxu0 %v1946
      %v2139 = vpop.f32.mrb[0].mxu0
      %v2140 = vadd.f32 0.0, %v2139
      %v2141 = vpop.f32.mrb[0].mxu0
      %2142 = vmatprep.mubr.f32.mxu0 0.0
      %2143 = vmatmul.mubr.f32.gmra.mrb[0].mxu0 %v1948
      %v2144 = vpop.f32.mrb[0].mxu0
      %v2145 = vadd.f32 0.0, %v2144
      %v2146 = vpop.f32.mrb[0].mxu0
      %2147 = vmatprep.mubr.f32.mxu0 0.0
      %2148 = vmatmul.mubr.f32.gmra.mrb[0].mxu0 %v1950
      %v2149 = vpop.f32.mrb[0].mxu0
      %v2150 = vadd.f32 0.0, %v2149
      %v2151 = vpop.f32.mrb[0].mxu0
      %2152 = vmatprep.mubr.f32.mxu0 0.0
      %2153 = vmatmul.mubr.f32.gmra.mrb[0].mxu0 %v1952
      %v2154 = vpop.f32.mrb[0].mxu0
      %v2155 = vadd.f32 0.0, %v2154
      %v2156 = vpop.f32.mrb[0].mxu0
      %2157 = vmatprep.mubr.f32.mxu0 0.0
      %2158 = vmatmul.mubr.f32.gmra.mrb[0].mxu0 %v1954
      %v2159 = vpop.f32.mrb[0].mxu0
      %v2160 = vadd.f32 0.0, %v2159
      %v2161 = vpop.f32.mrb[0].mxu0
      %2162 = vmatprep.mubr.f32.mxu0 0.0
      %2163 = vmatmul.mubr.f32.gmra.mrb[0].mxu0 %v1956
      %v2164 = vpop.f32.mrb[0].mxu0
      %v2165 = vadd.f32 0.0, %v2164
      %v2166 = vpop.f32.mrb[0].mxu0
      %2167 = vmatprep.mubr.f32.mxu0 0.0
      %2168 = vmatmul.mubr.f32.gmra.mrb[0].mxu0 %v1958
      %v2169 = vpop.f32.mrb[0].mxu0
      %v2170 = vadd.f32 0.0, %v2169
      %v2171 = vpop.f32.mrb[0].mxu0
      %2172 = vmatprep.mubr.f32.mxu0 0.0
      %2173 = vmatmul.mubr.f32.gmra.mrb[0].mxu0 %v1960
      %v2174 = vpop.f32.mrb[0].mxu0
      %v2175 = vadd.f32 0.0, %v2174
      %v2176 = vpop.f32.mrb[0].mxu0
      %2177 = vmatprep.mubr.f32.mxu0 0.0
      %2178 = vmatmul.mubr.f32.gmra.mrb[0].mxu0 %v1962
      %v2179 = vpop.f32.mrb[0].mxu0
      %v2180 = vadd.f32 0.0, %v2179
      %v2181 = vpop.f32.mrb[0].mxu0
      %2182 = vmatprep.mubr.f32.mxu0 0.0
      %2183 = vmatmul.mubr.f32.gmra.mrb[0].mxu0 %v1964
      %v2184 = vpop.f32.mrb[0].mxu0
      %v2185 = vadd.f32 0.0, %v2184
      %v2186 = vpop.f32.mrb[0].mxu0
      %2187 = vmatprep.mubr.f32.mxu0 0.0
      %2188 = vmatmul.mubr.f32.gmra.mrb[0].mxu0 %v1966
      %v2189 = vpop.f32.mrb[0].mxu0
      %v2190 = vadd.f32 0.0, %v2189
      %v2191 = vpop.f32.mrb[0].mxu0
      %2192 = vmatprep.mubr.f32.mxu0 0.0
      %2193 = vmatmul.mubr.f32.gmra.mrb[0].mxu0 %v1968
      %v2194 = vpop.f32.mrb[0].mxu0
      %v2195 = vadd.f32 0.0, %v2194
      %v2196 = vpop.f32.mrb[0].mxu0
      %2197 = vdwg.mxu0
      %v2198 = vadd.f32 %v1776, %v2040
      %v2199 = vadd.f32 %v1777, %v2045
      %v2200 = vadd.f32 %v1778, %v2050
      %v2201 = vadd.f32 %v1779, %v2055
      %v2202 = vadd.f32 %v1780, %v2060
      %v2203 = vadd.f32 %v1781, %v2065
      %v2204 = vadd.f32 %v1782, %v2070
      %v2205 = vadd.f32 %v1783, %v2075
      %v2206 = vadd.f32 %v1784, %v2080
      %v2207 = vadd.f32 %v1785, %v2085
      %v2208 = vadd.f32 %v1786, %v2090
      %v2209 = vadd.f32 %v1787, %v2095
      %v2210 = vadd.f32 %v1788, %v2100
      %v2211 = vadd.f32 %v1789, %v2105
      %v2212 = vadd.f32 %v1790, %v2110
      %v2213 = vadd.f32 %v1791, %v2115
      %v2214 = vadd.f32 %v1792, %v2120
      %v2215 = vadd.f32 %v1793, %v2125
      %v2216 = vadd.f32 %v1794, %v2130
      %v2217 = vadd.f32 %v1795, %v2135
      %v2218 = vadd.f32 %v1796, %v2140
      %v2219 = vadd.f32 %v1797, %v2145
      %v2220 = vadd.f32 %v1798, %v2150
      %v2221 = vadd.f32 %v1799, %v2155
      %v2222 = vadd.f32 %v1800, %v2160
      %v2223 = vadd.f32 %v1801, %v2165
      %v2224 = vadd.f32 %v1802, %v2170
      %v2225 = vadd.f32 %v1803, %v2175
      %v2226 = vadd.f32 %v1804, %v2180
      %v2227 = vadd.f32 %v1805, %v2185
      %v2228 = vadd.f32 %v1806, %v2190
      %v2229 = vadd.f32 %v1807, %v2195
      %v2230 = vrot.slane %v1402, 2
      %v2231 = vrot.slane %v1403, 2
      %v2232 = vsel %vm994, %v2230, %v2231
      %v2233 = vrot.slane %v1404, 2
      %v2234 = vsel %vm994, %v2231, %v2233
      %v2235 = vrot.slane %v1405, 2
      %v2236 = vrot.slane %v1406, 2
      %v2237 = vsel %vm994, %v2235, %v2236
      %v2238 = vrot.slane %v1407, 2
      %v2239 = vsel %vm994, %v2236, %v2238
      %v2240 = vrot.slane %v1408, 2
      %v2241 = vrot.slane %v1409, 2
      %v2242 = vsel %vm994, %v2240, %v2241
      %v2243 = vrot.slane %v1410, 2
      %v2244 = vsel %vm994, %v2241, %v2243
      %v2245 = vrot.slane %v1411, 2
      %v2246 = vrot.slane %v1412, 2
      %v2247 = vsel %vm994, %v2245, %v2246
      %v2248 = vrot.slane %v1413, 2
      %v2249 = vsel %vm994, %v2246, %v2248
      %v2250 = vrot.slane %v1414, 2
      %v2251 = vrot.slane %v1415, 2
      %v2252 = vsel %vm994, %v2250, %v2251
      %v2253 = vrot.slane %v1416, 2
      %v2254 = vsel %vm994, %v2251, %v2253
      %v2255 = vrot.slane %v1417, 2
      %v2256 = vrot.slane %v1418, 2
      %v2257 = vsel %vm994, %v2255, %v2256
      %v2258 = vrot.slane %v1419, 2
      %v2259 = vsel %vm994, %v2256, %v2258
      %v2260 = vrot.slane %v1420, 2
      %v2261 = vrot.slane %v1421, 2
      %v2262 = vsel %vm994, %v2260, %v2261
      %v2263 = vrot.slane %v1422, 2
      %v2264 = vsel %vm994, %v2261, %v2263
      %v2265 = vrot.slane %v1423, 2
      %v2266 = vrot.slane %v1424, 2
      %v2267 = vsel %vm994, %v2265, %v2266
      %v2268 = vrot.slane %v1425, 2
      %v2269 = vsel %vm994, %v2266, %v2268
      %v2270 = vrot.slane %v1426, 2
      %v2271 = vrot.slane %v1427, 2
      %v2272 = vsel %vm994, %v2270, %v2271
      %v2273 = vrot.slane %v1428, 2
      %v2274 = vsel %vm994, %v2271, %v2273
      %v2275 = vrot.slane %v1429, 2
      %v2276 = vrot.slane %v1430, 2
      %v2277 = vsel %vm994, %v2275, %v2276
      %v2278 = vrot.slane %v1431, 2
      %v2279 = vsel %vm994, %v2276, %v2278
      %v2280 = vrot.slane %v1432, 2
      %v2281 = vrot.slane %v1433, 2
      %v2282 = vsel %vm994, %v2280, %v2281
      %v2283 = vrot.slane %v1434, 2
      %v2284 = vsel %vm994, %v2281, %v2283
      %v2285 = vrot.slane %v1435, 2
      %v2286 = vrot.slane %v1436, 2
      %v2287 = vsel %vm994, %v2285, %v2286
      %v2288 = vrot.slane %v1437, 2
      %v2289 = vsel %vm994, %v2286, %v2288
      %v2290 = vrot.slane %v1438, 2
      %v2291 = vrot.slane %v1439, 2
      %v2292 = vsel %vm994, %v2290, %v2291
      %v2293 = vrot.slane %v1440, 2
      %v2294 = vsel %vm994, %v2291, %v2293
      %v2295 = vrot.slane %v1441, 2
      %v2296 = vrot.slane %v1442, 2
      %v2297 = vsel %vm994, %v2295, %v2296
      %v2298 = vrot.slane %v1443, 2
      %v2299 = vsel %vm994, %v2296, %v2298
      %v2300 = vrot.slane %v1444, 2
      %v2301 = vrot.slane %v1445, 2
      %v2302 = vsel %vm994, %v2300, %v2301
      %v2303 = vrot.slane %v1446, 2
      %v2304 = vsel %vm994, %v2301, %v2303
      %v2305 = vrot.slane %v1447, 2
      %v2306 = vrot.slane %v1448, 2
      %v2307 = vsel %vm994, %v2305, %v2306
      %v2308 = vrot.slane %v1449, 2
      %v2309 = vsel %vm994, %v2306, %v2308
      %s2310 = scalar_lea.vmem %s1, 20
      %v2311 = vld [vmem:[%s2310] sm:$0xf]
      %v2312 = vsel %vm408, %v2232, 0
      %v2314 = vsel %vm408, %v2234, 0
      %v2316 = vsel %vm408, %v2237, 0
      %v2318 = vsel %vm408, %v2239, 0
      %v2320 = vsel %vm408, %v2242, 0
      %v2322 = vsel %vm408, %v2244, 0
      %v2324 = vsel %vm408, %v2247, 0
      %v2326 = vsel %vm408, %v2249, 0
      %v2328 = vsel %vm408, %v2252, 0
      %v2330 = vsel %vm408, %v2254, 0
      %v2332 = vsel %vm408, %v2257, 0
      %v2334 = vsel %vm408, %v2259, 0
      %v2336 = vsel %vm408, %v2262, 0
      %v2338 = vsel %vm408, %v2264, 0
      %v2340 = vsel %vm408, %v2267, 0
      %v2342 = vsel %vm408, %v2269, 0
      %v2344 = vsel %vm408, %v2272, 0
      %v2346 = vsel %vm408, %v2274, 0
      %v2348 = vsel %vm408, %v2277, 0
      %v2350 = vsel %vm408, %v2279, 0
      %v2352 = vsel %vm408, %v2282, 0
      %v2354 = vsel %vm408, %v2284, 0
      %v2356 = vsel %vm408, %v2287, 0
      %v2358 = vsel %vm408, %v2289, 0
      %v2360 = vsel %vm408, %v2292, 0
      %v2362 = vsel %vm408, %v2294, 0
      %v2364 = vsel %vm408, %v2297, 0
      %v2366 = vsel %vm408, %v2299, 0
      %v2368 = vsel %vm408, %v2302, 0
      %v2370 = vsel %vm408, %v2304, 0
      %v2372 = vsel %vm408, %v2307, 0
      %v2374 = vsel %vm408, %v2309, 0
      %v2377 = vsel %vm473, %v2311, 0
      %2379 = vmatprep.subr.mxu0 0.0
      %2380 = vmatpush1.msra.mxu0 %v2377
      %2381 = vmatprep.subr.mxu0 0.0
      %2382 = vmatpush1.msra.mxu0 0.0
      %2383 = vmatprep.subr.mxu0 0.0
      %2384 = vmatpush1.msra.mxu0 0.0
      %2385 = vmatprep.subr.mxu0 0.0
      %2386 = vmatpush1.msra.mxu0 0.0
      %2387 = vmatprep.subr.mxu0 0.0
      %2388 = vmatpush1.msra.mxu0 0.0
      %2389 = vmatprep.subr.mxu0 0.0
      %2390 = vmatpush1.msra.mxu0 0.0
      %2391 = vmatprep.subr.mxu0 0.0
      %2392 = vmatpush1.msra.mxu0 0.0
      %2393 = vmatprep.subr.mxu0 0.0
      %2394 = vmatpush1.msra.mxu0 0.0
      %2395 = vmatprep.subr.mxu0 0.0
      %2396 = vmatpush1.msra.mxu0 0.0
      %2397 = vmatprep.subr.mxu0 0.0
      %2398 = vmatpush1.msra.mxu0 0.0
      %2399 = vmatprep.subr.mxu0 0.0
      %2400 = vmatpush1.msra.mxu0 0.0
      %2401 = vmatprep.subr.mxu0 0.0
      %2402 = vmatpush1.msra.mxu0 0.0
      %2403 = vmatprep.subr.mxu0 0.0
      %2404 = vmatpush1.msra.mxu0 0.0
      %2405 = vmatprep.subr.mxu0 0.0
      %2406 = vmatpush1.msra.mxu0 0.0
      %2407 = vmatprep.subr.mxu0 0.0
      %2408 = vmatpush1.msra.mxu0 0.0
      %2409 = vmatprep.subr.mxu0 0.0
      %2410 = vmatpush1.msra.mxu0 0.0
      %2411 = vmatprep.subr.mxu0 0.0
      %2412 = vmatpush1.msra.mxu0 0.0
      %2413 = vmatprep.subr.mxu0 0.0
      %2414 = vmatpush1.msra.mxu0 0.0
      %2415 = vmatprep.subr.mxu0 0.0
      %2416 = vmatpush1.msra.mxu0 0.0
      %2417 = vmatprep.subr.mxu0 0.0
      %2418 = vmatpush1.msra.mxu0 0.0
      %2419 = vmatprep.subr.mxu0 0.0
      %2420 = vmatpush1.msra.mxu0 0.0
      %2421 = vmatprep.subr.mxu0 0.0
      %2422 = vmatpush1.msra.mxu0 0.0
      %2423 = vmatprep.subr.mxu0 0.0
      %2424 = vmatpush1.msra.mxu0 0.0
      %2425 = vmatprep.subr.mxu0 0.0
      %2426 = vmatpush1.msra.mxu0 0.0
      %2427 = vmatprep.subr.mxu0 0.0
      %2428 = vmatpush1.msra.mxu0 0.0
      %2429 = vmatprep.subr.mxu0 0.0
      %2430 = vmatpush1.msra.mxu0 0.0
      %2431 = vmatprep.subr.mxu0 0.0
      %2432 = vmatpush1.msra.mxu0 0.0
      %2433 = vmatprep.subr.mxu0 0.0
      %2434 = vmatpush1.msra.mxu0 0.0
      %2435 = vmatprep.subr.mxu0 0.0
      %2436 = vmatpush1.msra.mxu0 0.0
      %2437 = vmatprep.subr.mxu0 0.0
      %2438 = vmatpush1.msra.mxu0 0.0
      %2439 = vmatprep.subr.mxu0 0.0
      %2440 = vmatpush1.msra.mxu0 0.0
      %2441 = vmatprep.subr.mxu0 0.0
      %2442 = vmatpush1.msra.mxu0 0.0
      %2443 = vmatprep.mubr.f32.mxu0 0.0
      %2444 = vmatmul.mubr.f32.gmra.mrb[0].mxu0 %v2312
      %v2445 = vpop.f32.mrb[0].mxu0
      %v2446 = vadd.f32 0.0, %v2445
      %v2447 = vpop.f32.mrb[0].mxu0
      %2448 = vmatprep.mubr.f32.mxu0 0.0
      %2449 = vmatmul.mubr.f32.gmra.mrb[0].mxu0 %v2314
      %v2450 = vpop.f32.mrb[0].mxu0
      %v2451 = vadd.f32 0.0, %v2450
      %v2452 = vpop.f32.mrb[0].mxu0
      %2453 = vmatprep.mubr.f32.mxu0 0.0
      %2454 = vmatmul.mubr.f32.gmra.mrb[0].mxu0 %v2316
      %v2455 = vpop.f32.mrb[0].mxu0
      %v2456 = vadd.f32 0.0, %v2455
      %v2457 = vpop.f32.mrb[0].mxu0
      %2458 = vmatprep.mubr.f32.mxu0 0.0
      %2459 = vmatmul.mubr.f32.gmra.mrb[0].mxu0 %v2318
      %v2460 = vpop.f32.mrb[0].mxu0
      %v2461 = vadd.f32 0.0, %v2460
      %v2462 = vpop.f32.mrb[0].mxu0
      %2463 = vmatprep.mubr.f32.mxu0 0.0
      %2464 = vmatmul.mubr.f32.gmra.mrb[0].mxu0 %v2320
      %v2465 = vpop.f32.mrb[0].mxu0
      %v2466 = vadd.f32 0.0, %v2465
      %v2467 = vpop.f32.mrb[0].mxu0
      %2468 = vmatprep.mubr.f32.mxu0 0.0
      %2469 = vmatmul.mubr.f32.gmra.mrb[0].mxu0 %v2322
      %v2470 = vpop.f32.mrb[0].mxu0
      %v2471 = vadd.f32 0.0, %v2470
      %v2472 = vpop.f32.mrb[0].mxu0
      %2473 = vmatprep.mubr.f32.mxu0 0.0
      %2474 = vmatmul.mubr.f32.gmra.mrb[0].mxu0 %v2324
      %v2475 = vpop.f32.mrb[0].mxu0
      %v2476 = vadd.f32 0.0, %v2475
      %v2477 = vpop.f32.mrb[0].mxu0
      %2478 = vmatprep.mubr.f32.mxu0 0.0
      %2479 = vmatmul.mubr.f32.gmra.mrb[0].mxu0 %v2326
      %v2480 = vpop.f32.mrb[0].mxu0
      %v2481 = vadd.f32 0.0, %v2480
      %v2482 = vpop.f32.mrb[0].mxu0
      %2483 = vmatprep.mubr.f32.mxu0 0.0
      %2484 = vmatmul.mubr.f32.gmra.mrb[0].mxu0 %v2328
      %v2485 = vpop.f32.mrb[0].mxu0
      %v2486 = vadd.f32 0.0, %v2485
      %v2487 = vpop.f32.mrb[0].mxu0
      %2488 = vmatprep.mubr.f32.mxu0 0.0
      %2489 = vmatmul.mubr.f32.gmra.mrb[0].mxu0 %v2330
      %v2490 = vpop.f32.mrb[0].mxu0
      %v2491 = vadd.f32 0.0, %v2490
      %v2492 = vpop.f32.mrb[0].mxu0
      %2493 = vmatprep.mubr.f32.mxu0 0.0
      %2494 = vmatmul.mubr.f32.gmra.mrb[0].mxu0 %v2332
      %v2495 = vpop.f32.mrb[0].mxu0
      %v2496 = vadd.f32 0.0, %v2495
      %v2497 = vpop.f32.mrb[0].mxu0
      %2498 = vmatprep.mubr.f32.mxu0 0.0
      %2499 = vmatmul.mubr.f32.gmra.mrb[0].mxu0 %v2334
      %v2500 = vpop.f32.mrb[0].mxu0
      %v2501 = vadd.f32 0.0, %v2500
      %v2502 = vpop.f32.mrb[0].mxu0
      %2503 = vmatprep.mubr.f32.mxu0 0.0
      %2504 = vmatmul.mubr.f32.gmra.mrb[0].mxu0 %v2336
      %v2505 = vpop.f32.mrb[0].mxu0
      %v2506 = vadd.f32 0.0, %v2505
      %v2507 = vpop.f32.mrb[0].mxu0
      %2508 = vmatprep.mubr.f32.mxu0 0.0
      %2509 = vmatmul.mubr.f32.gmra.mrb[0].mxu0 %v2338
      %v2510 = vpop.f32.mrb[0].mxu0
      %v2511 = vadd.f32 0.0, %v2510
      %v2512 = vpop.f32.mrb[0].mxu0
      %2513 = vmatprep.mubr.f32.mxu0 0.0
      %2514 = vmatmul.mubr.f32.gmra.mrb[0].mxu0 %v2340
      %v2515 = vpop.f32.mrb[0].mxu0
      %v2516 = vadd.f32 0.0, %v2515
      %v2517 = vpop.f32.mrb[0].mxu0
      %2518 = vmatprep.mubr.f32.mxu0 0.0
      %2519 = vmatmul.mubr.f32.gmra.mrb[0].mxu0 %v2342
      %v2520 = vpop.f32.mrb[0].mxu0
      %v2521 = vadd.f32 0.0, %v2520
      %v2522 = vpop.f32.mrb[0].mxu0
      %2523 = vmatprep.mubr.f32.mxu0 0.0
      %2524 = vmatmul.mubr.f32.gmra.mrb[0].mxu0 %v2344
      %v2525 = vpop.f32.mrb[0].mxu0
      %v2526 = vadd.f32 0.0, %v2525
      %v2527 = vpop.f32.mrb[0].mxu0
      %2528 = vmatprep.mubr.f32.mxu0 0.0
      %2529 = vmatmul.mubr.f32.gmra.mrb[0].mxu0 %v2346
      %v2530 = vpop.f32.mrb[0].mxu0
      %v2531 = vadd.f32 0.0, %v2530
      %v2532 = vpop.f32.mrb[0].mxu0
      %2533 = vmatprep.mubr.f32.mxu0 0.0
      %2534 = vmatmul.mubr.f32.gmra.mrb[0].mxu0 %v2348
      %v2535 = vpop.f32.mrb[0].mxu0
      %v2536 = vadd.f32 0.0, %v2535
      %v2537 = vpop.f32.mrb[0].mxu0
      %2538 = vmatprep.mubr.f32.mxu0 0.0
      %2539 = vmatmul.mubr.f32.gmra.mrb[0].mxu0 %v2350
      %v2540 = vpop.f32.mrb[0].mxu0
      %v2541 = vadd.f32 0.0, %v2540
      %v2542 = vpop.f32.mrb[0].mxu0
      %2543 = vmatprep.mubr.f32.mxu0 0.0
      %2544 = vmatmul.mubr.f32.gmra.mrb[0].mxu0 %v2352
      %v2545 = vpop.f32.mrb[0].mxu0
      %v2546 = vadd.f32 0.0, %v2545
      %v2547 = vpop.f32.mrb[0].mxu0
      %2548 = vmatprep.mubr.f32.mxu0 0.0
      %2549 = vmatmul.mubr.f32.gmra.mrb[0].mxu0 %v2354
      %v2550 = vpop.f32.mrb[0].mxu0
      %v2551 = vadd.f32 0.0, %v2550
      %v2552 = vpop.f32.mrb[0].mxu0
      %2553 = vmatprep.mubr.f32.mxu0 0.0
      %2554 = vmatmul.mubr.f32.gmra.mrb[0].mxu0 %v2356
      %v2555 = vpop.f32.mrb[0].mxu0
      %v2556 = vadd.f32 0.0, %v2555
      %v2557 = vpop.f32.mrb[0].mxu0
      %2558 = vmatprep.mubr.f32.mxu0 0.0
      %2559 = vmatmul.mubr.f32.gmra.mrb[0].mxu0 %v2358
      %v2560 = vpop.f32.mrb[0].mxu0
      %v2561 = vadd.f32 0.0, %v2560
      %v2562 = vpop.f32.mrb[0].mxu0
      %2563 = vmatprep.mubr.f32.mxu0 0.0
      %2564 = vmatmul.mubr.f32.gmra.mrb[0].mxu0 %v2360
      %v2565 = vpop.f32.mrb[0].mxu0
      %v2566 = vadd.f32 0.0, %v2565
      %v2567 = vpop.f32.mrb[0].mxu0
      %2568 = vmatprep.mubr.f32.mxu0 0.0
      %2569 = vmatmul.mubr.f32.gmra.mrb[0].mxu0 %v2362
      %v2570 = vpop.f32.mrb[0].mxu0
      %v2571 = vadd.f32 0.0, %v2570
      %v2572 = vpop.f32.mrb[0].mxu0
      %2573 = vmatprep.mubr.f32.mxu0 0.0
      %2574 = vmatmul.mubr.f32.gmra.mrb[0].mxu0 %v2364
      %v2575 = vpop.f32.mrb[0].mxu0
      %v2576 = vadd.f32 0.0, %v2575
      %v2577 = vpop.f32.mrb[0].mxu0
      %2578 = vmatprep.mubr.f32.mxu0 0.0
      %2579 = vmatmul.mubr.f32.gmra.mrb[0].mxu0 %v2366
      %v2580 = vpop.f32.mrb[0].mxu0
      %v2581 = vadd.f32 0.0, %v2580
      %v2582 = vpop.f32.mrb[0].mxu0
      %2583 = vmatprep.mubr.f32.mxu0 0.0
      %2584 = vmatmul.mubr.f32.gmra.mrb[0].mxu0 %v2368
      %v2585 = vpop.f32.mrb[0].mxu0
      %v2586 = vadd.f32 0.0, %v2585
      %v2587 = vpop.f32.mrb[0].mxu0
      %2588 = vmatprep.mubr.f32.mxu0 0.0
      %2589 = vmatmul.mubr.f32.gmra.mrb[0].mxu0 %v2370
      %v2590 = vpop.f32.mrb[0].mxu0
      %v2591 = vadd.f32 0.0, %v2590
      %v2592 = vpop.f32.mrb[0].mxu0
      %2593 = vmatprep.mubr.f32.mxu0 0.0
      %2594 = vmatmul.mubr.f32.gmra.mrb[0].mxu0 %v2372
      %v2595 = vpop.f32.mrb[0].mxu0
      %v2596 = vadd.f32 0.0, %v2595
      %v2597 = vpop.f32.mrb[0].mxu0
      %2598 = vmatprep.mubr.f32.mxu0 0.0
      %2599 = vmatmul.mubr.f32.gmra.mrb[0].mxu0 %v2374
      %v2600 = vpop.f32.mrb[0].mxu0
      %v2601 = vadd.f32 0.0, %v2600
      %v2602 = vpop.f32.mrb[0].mxu0
      %2603 = vdwg.mxu0
      %v2604 = vadd.f32 %v2198, %v2446
      %v2605 = vadd.f32 %v2199, %v2451
      %v2606 = vadd.f32 %v2200, %v2456
      %v2607 = vadd.f32 %v2201, %v2461
      %v2608 = vadd.f32 %v2202, %v2466
      %v2609 = vadd.f32 %v2203, %v2471
      %v2610 = vadd.f32 %v2204, %v2476
      %v2611 = vadd.f32 %v2205, %v2481
      %v2612 = vadd.f32 %v2206, %v2486
      %v2613 = vadd.f32 %v2207, %v2491
      %v2614 = vadd.f32 %v2208, %v2496
      %v2615 = vadd.f32 %v2209, %v2501
      %v2616 = vadd.f32 %v2210, %v2506
      %v2617 = vadd.f32 %v2211, %v2511
      %v2618 = vadd.f32 %v2212, %v2516
      %v2619 = vadd.f32 %v2213, %v2521
      %v2620 = vadd.f32 %v2214, %v2526
      %v2621 = vadd.f32 %v2215, %v2531
      %v2622 = vadd.f32 %v2216, %v2536
      %v2623 = vadd.f32 %v2217, %v2541
      %v2624 = vadd.f32 %v2218, %v2546
      %v2625 = vadd.f32 %v2219, %v2551
      %v2626 = vadd.f32 %v2220, %v2556
      %v2627 = vadd.f32 %v2221, %v2561
      %v2628 = vadd.f32 %v2222, %v2566
      %v2629 = vadd.f32 %v2223, %v2571
      %v2630 = vadd.f32 %v2224, %v2576
      %v2631 = vadd.f32 %v2225, %v2581
      %v2632 = vadd.f32 %v2226, %v2586
      %v2633 = vadd.f32 %v2227, %v2591
      %v2634 = vadd.f32 %v2228, %v2596
      %v2635 = vadd.f32 %v2229, %v2601
      %s2636 = scalar_lea.vmem %s219, 48
      %v2637 = vld [vmem:[%s2636] sm:$0xff]
      %v2638 = vld [vmem:[%s2636 + $0x8] sm:$0xff]
      %v2639 = vld [vmem:[%s2636 + $0x10] sm:$0x3]
      %v2640 = vld [vmem:[%s2636 + $0x18] sm:$0xff]
      %v2641 = vld [vmem:[%s2636 + $0x20] sm:$0xff]
      %v2642 = vld [vmem:[%s2636 + $0x28] sm:$0x3]
      %v2643 = vld [vmem:[%s2636 + $0x30] sm:$0xff]
      %v2644 = vld [vmem:[%s2636 + $0x38] sm:$0xff]
      %v2645 = vld [vmem:[%s2636 + $0x40] sm:$0x3]
      %v2646 = vld [vmem:[%s2636 + $0x48] sm:$0xff]
      %v2647 = vld [vmem:[%s2636 + $0x50] sm:$0xff]
      %v2648 = vld [vmem:[%s2636 + $0x58] sm:$0x3]
      %v2649 = vld [vmem:[%s2636 + $0x60] sm:$0xff]
      %v2650 = vld [vmem:[%s2636 + $0x68] sm:$0xff]
      %v2651 = vld [vmem:[%s2636 + $0x70] sm:$0x3]
      %v2652 = vld [vmem:[%s2636 + $0x78] sm:$0xff]
      %v2653 = vld [vmem:[%s2636 + $0x80] sm:$0xff]
      %v2654 = vld [vmem:[%s2636 + $0x88] sm:$0x3]
      %v2655 = vld [vmem:[%s2636 + $0x90] sm:$0xff]
      %v2656 = vld [vmem:[%s2636 + $0x98] sm:$0xff]
      %v2657 = vld [vmem:[%s2636 + $0xa0] sm:$0x3]
      %v2658 = vld [vmem:[%s2636 + $0xa8] sm:$0xff]
      %v2659 = vld [vmem:[%s2636 + $0xb0] sm:$0xff]
      %v2660 = vld [vmem:[%s2636 + $0xb8] sm:$0x3]
      %v2661 = vld [vmem:[%s2636 + $0xc0] sm:$0xff]
      %v2662 = vld [vmem:[%s2636 + $0xc8] sm:$0xff]
      %v2663 = vld [vmem:[%s2636 + $0xd0] sm:$0x3]
      %v2664 = vld [vmem:[%s2636 + $0xd8] sm:$0xff]
      %v2665 = vld [vmem:[%s2636 + $0xe0] sm:$0xff]
      %v2666 = vld [vmem:[%s2636 + $0xe8] sm:$0x3]
      %v2667 = vld [vmem:[%s2636 + $0xf0] sm:$0xff]
      %v2668 = vld [vmem:[%s2636 + $0xf8] sm:$0xff]
      %v2669 = vld [vmem:[%s2636 + $0x100] sm:$0x3]
      %v2670 = vld [vmem:[%s2636 + $0x108] sm:$0xff]
      %v2671 = vld [vmem:[%s2636 + $0x110] sm:$0xff]
      %v2672 = vld [vmem:[%s2636 + $0x118] sm:$0x3]
      %v2673 = vld [vmem:[%s2636 + $0x120] sm:$0xff]
      %v2674 = vld [vmem:[%s2636 + $0x128] sm:$0xff]
      %v2675 = vld [vmem:[%s2636 + $0x130] sm:$0x3]
      %v2676 = vld [vmem:[%s2636 + $0x138] sm:$0xff]
      %v2677 = vld [vmem:[%s2636 + $0x140] sm:$0xff]
      %v2678 = vld [vmem:[%s2636 + $0x148] sm:$0x3]
      %v2679 = vld [vmem:[%s2636 + $0x150] sm:$0xff]
      %v2680 = vld [vmem:[%s2636 + $0x158] sm:$0xff]
      %v2681 = vld [vmem:[%s2636 + $0x160] sm:$0x3]
      %v2682 = vld [vmem:[%s2636 + $0x168] sm:$0xff]
      %v2683 = vld [vmem:[%s2636 + $0x170] sm:$0xff]
      %v2684 = vld [vmem:[%s2636 + $0x178] sm:$0x3]
      %s2685 = scalar_lea.vmem %s1, 24
      %v2686 = vld [vmem:[%s2685] sm:$0xf]
      %v2688 = vsel %vm408, %v2637, 0
      %v2691 = vsel %vm408, %v2638, 0
      %v2694 = vsel %vm408, %v2640, 0
      %v2697 = vsel %vm408, %v2641, 0
      %v2700 = vsel %vm408, %v2643, 0
      %v2703 = vsel %vm408, %v2644, 0
      %v2706 = vsel %vm408, %v2646, 0
      %v2709 = vsel %vm408, %v2647, 0
      %v2712 = vsel %vm408, %v2649, 0
      %v2715 = vsel %vm408, %v2650, 0
      %v2718 = vsel %vm408, %v2652, 0
      %v2721 = vsel %vm408, %v2653, 0
      %v2724 = vsel %vm408, %v2655, 0
      %v2727 = vsel %vm408, %v2656, 0
      %v2730 = vsel %vm408, %v2658, 0
      %v2733 = vsel %vm408, %v2659, 0
      %v2736 = vsel %vm408, %v2661, 0
      %v2739 = vsel %vm408, %v2662, 0
      %v2742 = vsel %vm408, %v2664, 0
      %v2745 = vsel %vm408, %v2665, 0
      %v2748 = vsel %vm408, %v2667, 0
      %v2751 = vsel %vm408, %v2668, 0
      %v2754 = vsel %vm408, %v2670, 0
      %v2757 = vsel %vm408, %v2671, 0
      %v2760 = vsel %vm408, %v2673, 0
      %v2763 = vsel %vm408, %v2674, 0
      %v2766 = vsel %vm408, %v2676, 0
      %v2769 = vsel %vm408, %v2677, 0
      %v2772 = vsel %vm408, %v2679, 0
      %v2775 = vsel %vm408, %v2680, 0
      %v2778 = vsel %vm408, %v2682, 0
      %v2781 = vsel %vm408, %v2683, 0
      %v2784 = vsel %vm473, %v2686, 0
      %2786 = vmatprep.subr.mxu0 0.0
      %2787 = vmatpush1.msra.mxu0 %v2784
      %2788 = vmatprep.subr.mxu0 0.0
      %2789 = vmatpush1.msra.mxu0 0.0
      %2790 = vmatprep.subr.mxu0 0.0
      %2791 = vmatpush1.msra.mxu0 0.0
      %2792 = vmatprep.subr.mxu0 0.0
      %2793 = vmatpush1.msra.mxu0 0.0
      %2794 = vmatprep.subr.mxu0 0.0
      %2795 = vmatpush1.msra.mxu0 0.0
      %2796 = vmatprep.subr.mxu0 0.0
      %2797 = vmatpush1.msra.mxu0 0.0
      %2798 = vmatprep.subr.mxu0 0.0
      %2799 = vmatpush1.msra.mxu0 0.0
      %2800 = vmatprep.subr.mxu0 0.0
      %2801 = vmatpush1.msra.mxu0 0.0
      %2802 = vmatprep.subr.mxu0 0.0
      %2803 = vmatpush1.msra.mxu0 0.0
      %2804 = vmatprep.subr.mxu0 0.0
      %2805 = vmatpush1.msra.mxu0 0.0
      %2806 = vmatprep.subr.mxu0 0.0
      %2807 = vmatpush1.msra.mxu0 0.0
      %2808 = vmatprep.subr.mxu0 0.0
      %2809 = vmatpush1.msra.mxu0 0.0
      %2810 = vmatprep.subr.mxu0 0.0
      %2811 = vmatpush1.msra.mxu0 0.0
      %2812 = vmatprep.subr.mxu0 0.0
      %2813 = vmatpush1.msra.mxu0 0.0
      %2814 = vmatprep.subr.mxu0 0.0
      %2815 = vmatpush1.msra.mxu0 0.0
      %2816 = vmatprep.subr.mxu0 0.0
      %2817 = vmatpush1.msra.mxu0 0.0
      %2818 = vmatprep.subr.mxu0 0.0
      %2819 = vmatpush1.msra.mxu0 0.0
      %2820 = vmatprep.subr.mxu0 0.0
      %2821 = vmatpush1.msra.mxu0 0.0
      %2822 = vmatprep.subr.mxu0 0.0
      %2823 = vmatpush1.msra.mxu0 0.0
      %2824 = vmatprep.subr.mxu0 0.0
      %2825 = vmatpush1.msra.mxu0 0.0
      %2826 = vmatprep.subr.mxu0 0.0
      %2827 = vmatpush1.msra.mxu0 0.0
      %2828 = vmatprep.subr.mxu0 0.0
      %2829 = vmatpush1.msra.mxu0 0.0
      %2830 = vmatprep.subr.mxu0 0.0
      %2831 = vmatpush1.msra.mxu0 0.0
      %2832 = vmatprep.subr.mxu0 0.0
      %2833 = vmatpush1.msra.mxu0 0.0
      %2834 = vmatprep.subr.mxu0 0.0
      %2835 = vmatpush1.msra.mxu0 0.0
      %2836 = vmatprep.subr.mxu0 0.0
      %2837 = vmatpush1.msra.mxu0 0.0
      %2838 = vmatprep.subr.mxu0 0.0
      %2839 = vmatpush1.msra.mxu0 0.0
      %2840 = vmatprep.subr.mxu0 0.0
      %2841 = vmatpush1.msra.mxu0 0.0
      %2842 = vmatprep.subr.mxu0 0.0
      %2843 = vmatpush1.msra.mxu0 0.0
      %2844 = vmatprep.subr.mxu0 0.0
      %2845 = vmatpush1.msra.mxu0 0.0
      %2846 = vmatprep.subr.mxu0 0.0
      %2847 = vmatpush1.msra.mxu0 0.0
      %2848 = vmatprep.subr.mxu0 0.0
      %2849 = vmatpush1.msra.mxu0 0.0
      %2850 = vmatprep.mubr.f32.mxu0 0.0
      %2851 = vmatmul.mubr.f32.gmra.mrb[0].mxu0 %v2688
      %v2852 = vpop.f32.mrb[0].mxu0
      %v2853 = vadd.f32 0.0, %v2852
      %v2854 = vpop.f32.mrb[0].mxu0
      %2855 = vmatprep.mubr.f32.mxu0 0.0
      %2856 = vmatmul.mubr.f32.gmra.mrb[0].mxu0 %v2691
      %v2857 = vpop.f32.mrb[0].mxu0
      %v2858 = vadd.f32 0.0, %v2857
      %v2859 = vpop.f32.mrb[0].mxu0
      %2860 = vmatprep.mubr.f32.mxu0 0.0
      %2861 = vmatmul.mubr.f32.gmra.mrb[0].mxu0 %v2694
      %v2862 = vpop.f32.mrb[0].mxu0
      %v2863 = vadd.f32 0.0, %v2862
      %v2864 = vpop.f32.mrb[0].mxu0
      %2865 = vmatprep.mubr.f32.mxu0 0.0
      %2866 = vmatmul.mubr.f32.gmra.mrb[0].mxu0 %v2697
      %v2867 = vpop.f32.mrb[0].mxu0
      %v2868 = vadd.f32 0.0, %v2867
      %v2869 = vpop.f32.mrb[0].mxu0
      %2870 = vmatprep.mubr.f32.mxu0 0.0
      %2871 = vmatmul.mubr.f32.gmra.mrb[0].mxu0 %v2700
      %v2872 = vpop.f32.mrb[0].mxu0
      %v2873 = vadd.f32 0.0, %v2872
      %v2874 = vpop.f32.mrb[0].mxu0
      %2875 = vmatprep.mubr.f32.mxu0 0.0
      %2876 = vmatmul.mubr.f32.gmra.mrb[0].mxu0 %v2703
      %v2877 = vpop.f32.mrb[0].mxu0
      %v2878 = vadd.f32 0.0, %v2877
      %v2879 = vpop.f32.mrb[0].mxu0
      %2880 = vmatprep.mubr.f32.mxu0 0.0
      %2881 = vmatmul.mubr.f32.gmra.mrb[0].mxu0 %v2706
      %v2882 = vpop.f32.mrb[0].mxu0
      %v2883 = vadd.f32 0.0, %v2882
      %v2884 = vpop.f32.mrb[0].mxu0
      %2885 = vmatprep.mubr.f32.mxu0 0.0
      %2886 = vmatmul.mubr.f32.gmra.mrb[0].mxu0 %v2709
      %v2887 = vpop.f32.mrb[0].mxu0
      %v2888 = vadd.f32 0.0, %v2887
      %v2889 = vpop.f32.mrb[0].mxu0
      %2890 = vmatprep.mubr.f32.mxu0 0.0
      %2891 = vmatmul.mubr.f32.gmra.mrb[0].mxu0 %v2712
      %v2892 = vpop.f32.mrb[0].mxu0
      %v2893 = vadd.f32 0.0, %v2892
      %v2894 = vpop.f32.mrb[0].mxu0
      %2895 = vmatprep.mubr.f32.mxu0 0.0
      %2896 = vmatmul.mubr.f32.gmra.mrb[0].mxu0 %v2715
      %v2897 = vpop.f32.mrb[0].mxu0
      %v2898 = vadd.f32 0.0, %v2897
      %v2899 = vpop.f32.mrb[0].mxu0
      %2900 = vmatprep.mubr.f32.mxu0 0.0
      %2901 = vmatmul.mubr.f32.gmra.mrb[0].mxu0 %v2718
      %v2902 = vpop.f32.mrb[0].mxu0
      %v2903 = vadd.f32 0.0, %v2902
      %v2904 = vpop.f32.mrb[0].mxu0
      %2905 = vmatprep.mubr.f32.mxu0 0.0
      %2906 = vmatmul.mubr.f32.gmra.mrb[0].mxu0 %v2721
      %v2907 = vpop.f32.mrb[0].mxu0
      %v2908 = vadd.f32 0.0, %v2907
      %v2909 = vpop.f32.mrb[0].mxu0
      %2910 = vmatprep.mubr.f32.mxu0 0.0
      %2911 = vmatmul.mubr.f32.gmra.mrb[0].mxu0 %v2724
      %v2912 = vpop.f32.mrb[0].mxu0
      %v2913 = vadd.f32 0.0, %v2912
      %v2914 = vpop.f32.mrb[0].mxu0
      %2915 = vmatprep.mubr.f32.mxu0 0.0
      %2916 = vmatmul.mubr.f32.gmra.mrb[0].mxu0 %v2727
      %v2917 = vpop.f32.mrb[0].mxu0
      %v2918 = vadd.f32 0.0, %v2917
      %v2919 = vpop.f32.mrb[0].mxu0
      %2920 = vmatprep.mubr.f32.mxu0 0.0
      %2921 = vmatmul.mubr.f32.gmra.mrb[0].mxu0 %v2730
      %v2922 = vpop.f32.mrb[0].mxu0
      %v2923 = vadd.f32 0.0, %v2922
      %v2924 = vpop.f32.mrb[0].mxu0
      %2925 = vmatprep.mubr.f32.mxu0 0.0
      %2926 = vmatmul.mubr.f32.gmra.mrb[0].mxu0 %v2733
      %v2927 = vpop.f32.mrb[0].mxu0
      %v2928 = vadd.f32 0.0, %v2927
      %v2929 = vpop.f32.mrb[0].mxu0
      %2930 = vmatprep.mubr.f32.mxu0 0.0
      %2931 = vmatmul.mubr.f32.gmra.mrb[0].mxu0 %v2736
      %v2932 = vpop.f32.mrb[0].mxu0
      %v2933 = vadd.f32 0.0, %v2932
      %v2934 = vpop.f32.mrb[0].mxu0
      %2935 = vmatprep.mubr.f32.mxu0 0.0
      %2936 = vmatmul.mubr.f32.gmra.mrb[0].mxu0 %v2739
      %v2937 = vpop.f32.mrb[0].mxu0
      %v2938 = vadd.f32 0.0, %v2937
      %v2939 = vpop.f32.mrb[0].mxu0
      %2940 = vmatprep.mubr.f32.mxu0 0.0
      %2941 = vmatmul.mubr.f32.gmra.mrb[0].mxu0 %v2742
      %v2942 = vpop.f32.mrb[0].mxu0
      %v2943 = vadd.f32 0.0, %v2942
      %v2944 = vpop.f32.mrb[0].mxu0
      %2945 = vmatprep.mubr.f32.mxu0 0.0
      %2946 = vmatmul.mubr.f32.gmra.mrb[0].mxu0 %v2745
      %v2947 = vpop.f32.mrb[0].mxu0
      %v2948 = vadd.f32 0.0, %v2947
      %v2949 = vpop.f32.mrb[0].mxu0
      %2950 = vmatprep.mubr.f32.mxu0 0.0
      %2951 = vmatmul.mubr.f32.gmra.mrb[0].mxu0 %v2748
      %v2952 = vpop.f32.mrb[0].mxu0
      %v2953 = vadd.f32 0.0, %v2952
      %v2954 = vpop.f32.mrb[0].mxu0
      %2955 = vmatprep.mubr.f32.mxu0 0.0
      %2956 = vmatmul.mubr.f32.gmra.mrb[0].mxu0 %v2751
      %v2957 = vpop.f32.mrb[0].mxu0
      %v2958 = vadd.f32 0.0, %v2957
      %v2959 = vpop.f32.mrb[0].mxu0
      %2960 = vmatprep.mubr.f32.mxu0 0.0
      %2961 = vmatmul.mubr.f32.gmra.mrb[0].mxu0 %v2754
      %v2962 = vpop.f32.mrb[0].mxu0
      %v2963 = vadd.f32 0.0, %v2962
      %v2964 = vpop.f32.mrb[0].mxu0
      %2965 = vmatprep.mubr.f32.mxu0 0.0
      %2966 = vmatmul.mubr.f32.gmra.mrb[0].mxu0 %v2757
      %v2967 = vpop.f32.mrb[0].mxu0
      %v2968 = vadd.f32 0.0, %v2967
      %v2969 = vpop.f32.mrb[0].mxu0
      %2970 = vmatprep.mubr.f32.mxu0 0.0
      %2971 = vmatmul.mubr.f32.gmra.mrb[0].mxu0 %v2760
      %v2972 = vpop.f32.mrb[0].mxu0
      %v2973 = vadd.f32 0.0, %v2972
      %v2974 = vpop.f32.mrb[0].mxu0
      %2975 = vmatprep.mubr.f32.mxu0 0.0
      %2976 = vmatmul.mubr.f32.gmra.mrb[0].mxu0 %v2763
      %v2977 = vpop.f32.mrb[0].mxu0
      %v2978 = vadd.f32 0.0, %v2977
      %v2979 = vpop.f32.mrb[0].mxu0
      %2980 = vmatprep.mubr.f32.mxu0 0.0
      %2981 = vmatmul.mubr.f32.gmra.mrb[0].mxu0 %v2766
      %v2982 = vpop.f32.mrb[0].mxu0
      %v2983 = vadd.f32 0.0, %v2982
      %v2984 = vpop.f32.mrb[0].mxu0
      %2985 = vmatprep.mubr.f32.mxu0 0.0
      %2986 = vmatmul.mubr.f32.gmra.mrb[0].mxu0 %v2769
      %v2987 = vpop.f32.mrb[0].mxu0
      %v2988 = vadd.f32 0.0, %v2987
      %v2989 = vpop.f32.mrb[0].mxu0
      %2990 = vmatprep.mubr.f32.mxu0 0.0
      %2991 = vmatmul.mubr.f32.gmra.mrb[0].mxu0 %v2772
      %v2992 = vpop.f32.mrb[0].mxu0
      %v2993 = vadd.f32 0.0, %v2992
      %v2994 = vpop.f32.mrb[0].mxu0
      %2995 = vmatprep.mubr.f32.mxu0 0.0
      %2996 = vmatmul.mubr.f32.gmra.mrb[0].mxu0 %v2775
      %v2997 = vpop.f32.mrb[0].mxu0
      %v2998 = vadd.f32 0.0, %v2997
      %v2999 = vpop.f32.mrb[0].mxu0
      %3000 = vmatprep.mubr.f32.mxu0 0.0
      %3001 = vmatmul.mubr.f32.gmra.mrb[0].mxu0 %v2778
      %v3002 = vpop.f32.mrb[0].mxu0
      %v3003 = vadd.f32 0.0, %v3002
      %v3004 = vpop.f32.mrb[0].mxu0
      %3005 = vmatprep.mubr.f32.mxu0 0.0
      %3006 = vmatmul.mubr.f32.gmra.mrb[0].mxu0 %v2781
      %v3007 = vpop.f32.mrb[0].mxu0
      %v3008 = vadd.f32 0.0, %v3007
      %v3009 = vpop.f32.mrb[0].mxu0
      %3010 = vdwg.mxu0
      %v3011 = vadd.f32 %v2604, %v2853
      %v3012 = vadd.f32 %v2605, %v2858
      %v3013 = vadd.f32 %v2606, %v2863
      %v3014 = vadd.f32 %v2607, %v2868
      %v3015 = vadd.f32 %v2608, %v2873
      %v3016 = vadd.f32 %v2609, %v2878
      %v3017 = vadd.f32 %v2610, %v2883
      %v3018 = vadd.f32 %v2611, %v2888
      %v3019 = vadd.f32 %v2612, %v2893
      %v3020 = vadd.f32 %v2613, %v2898
      %v3021 = vadd.f32 %v2614, %v2903
      %v3022 = vadd.f32 %v2615, %v2908
      %v3023 = vadd.f32 %v2616, %v2913
      %v3024 = vadd.f32 %v2617, %v2918
      %v3025 = vadd.f32 %v2618, %v2923
      %v3026 = vadd.f32 %v2619, %v2928
      %v3027 = vadd.f32 %v2620, %v2933
      %v3028 = vadd.f32 %v2621, %v2938
      %v3029 = vadd.f32 %v2622, %v2943
      %v3030 = vadd.f32 %v2623, %v2948
      %v3031 = vadd.f32 %v2624, %v2953
      %v3032 = vadd.f32 %v2625, %v2958
      %v3033 = vadd.f32 %v2626, %v2963
      %v3034 = vadd.f32 %v2627, %v2968
      %v3035 = vadd.f32 %v2628, %v2973
      %v3036 = vadd.f32 %v2629, %v2978
      %v3037 = vadd.f32 %v2630, %v2983
      %v3038 = vadd.f32 %v2631, %v2988
      %v3039 = vadd.f32 %v2632, %v2993
      %v3040 = vadd.f32 %v2633, %v2998
      %v3041 = vadd.f32 %v2634, %v3003
      %v3042 = vadd.f32 %v2635, %v3008
      %v3059 = vrot.slane %v2637, 1
      %v3060 = vrot.slane %v2638, 1
      %v3061 = vsel %vm325, %v3059, %v3060
      %v3062 = vrot.slane %v2639, 1
      %v3063 = vsel %vm325, %v3060, %v3062
      %v3064 = vrot.slane %v2640, 1
      %v3065 = vrot.slane %v2641, 1
      %v3066 = vsel %vm325, %v3064, %v3065
      %v3067 = vrot.slane %v2642, 1
      %v3068 = vsel %vm325, %v3065, %v3067
      %v3069 = vrot.slane %v2643, 1
      %v3070 = vrot.slane %v2644, 1
      %v3071 = vsel %vm325, %v3069, %v3070
      %v3072 = vrot.slane %v2645, 1
      %v3073 = vsel %vm325, %v3070, %v3072
      %v3074 = vrot.slane %v2646, 1
      %v3075 = vrot.slane %v2647, 1
      %v3076 = vsel %vm325, %v3074, %v3075
      %v3077 = vrot.slane %v2648, 1
      %v3078 = vsel %vm325, %v3075, %v3077
      %v3079 = vrot.slane %v2649, 1
      %v3080 = vrot.slane %v2650, 1
      %v3081 = vsel %vm325, %v3079, %v3080
      %v3082 = vrot.slane %v2651, 1
      %v3083 = vsel %vm325, %v3080, %v3082
      %v3084 = vrot.slane %v2652, 1
      %v3085 = vrot.slane %v2653, 1
      %v3086 = vsel %vm325, %v3084, %v3085
      %v3087 = vrot.slane %v2654, 1
      %v3088 = vsel %vm325, %v3085, %v3087
      %v3089 = vrot.slane %v2655, 1
      %v3090 = vrot.slane %v2656, 1
      %v3091 = vsel %vm325, %v3089, %v3090
      %v3092 = vrot.slane %v2657, 1
      %v3093 = vsel %vm325, %v3090, %v3092
      %v3094 = vrot.slane %v2658, 1
      %v3095 = vrot.slane %v2659, 1
      %v3096 = vsel %vm325, %v3094, %v3095
      %v3097 = vrot.slane %v2660, 1
      %v3098 = vsel %vm325, %v3095, %v3097
      %v3099 = vrot.slane %v2661, 1
      %v3100 = vrot.slane %v2662, 1
      %v3101 = vsel %vm325, %v3099, %v3100
      %v3102 = vrot.slane %v2663, 1
      %v3103 = vsel %vm325, %v3100, %v3102
      %v3104 = vrot.slane %v2664, 1
      %v3105 = vrot.slane %v2665, 1
      %v3106 = vsel %vm325, %v3104, %v3105
      %v3107 = vrot.slane %v2666, 1
      %v3108 = vsel %vm325, %v3105, %v3107
      %v3109 = vrot.slane %v2667, 1
      %v3110 = vrot.slane %v2668, 1
      %v3111 = vsel %vm325, %v3109, %v3110
      %v3112 = vrot.slane %v2669, 1
      %v3113 = vsel %vm325, %v3110, %v3112
      %v3114 = vrot.slane %v2670, 1
      %v3115 = vrot.slane %v2671, 1
      %v3116 = vsel %vm325, %v3114, %v3115
      %v3117 = vrot.slane %v2672, 1
      %v3118 = vsel %vm325, %v3115, %v3117
      %v3119 = vrot.slane %v2673, 1
      %v3120 = vrot.slane %v2674, 1
      %v3121 = vsel %vm325, %v3119, %v3120
      %v3122 = vrot.slane %v2675, 1
      %v3123 = vsel %vm325, %v3120, %v3122
      %v3124 = vrot.slane %v2676, 1
      %v3125 = vrot.slane %v2677, 1
      %v3126 = vsel %vm325, %v3124, %v3125
      %v3127 = vrot.slane %v2678, 1
      %v3128 = vsel %vm325, %v3125, %v3127
      %v3129 = vrot.slane %v2679, 1
      %v3130 = vrot.slane %v2680, 1
      %v3131 = vsel %vm325, %v3129, %v3130
      %v3132 = vrot.slane %v2681, 1
      %v3133 = vsel %vm325, %v3130, %v3132
      %v3134 = vrot.slane %v2682, 1
      %v3135 = vrot.slane %v2683, 1
      %v3136 = vsel %vm325, %v3134, %v3135
      %v3137 = vrot.slane %v2684, 1
      %v3138 = vsel %vm325, %v3135, %v3137
      %s3139 = scalar_lea.vmem %s1, 28
      %v3140 = vld [vmem:[%s3139] sm:$0xf]
      %v3141 = vsel %vm408, %v3061, 0
      %v3143 = vsel %vm408, %v3063, 0
      %v3145 = vsel %vm408, %v3066, 0
      %v3147 = vsel %vm408, %v3068, 0
      %v3149 = vsel %vm408, %v3071, 0
      %v3151 = vsel %vm408, %v3073, 0
      %v3153 = vsel %vm408, %v3076, 0
      %v3155 = vsel %vm408, %v3078, 0
      %v3157 = vsel %vm408, %v3081, 0
      %v3159 = vsel %vm408, %v3083, 0
      %v3161 = vsel %vm408, %v3086, 0
      %v3163 = vsel %vm408, %v3088, 0
      %v3165 = vsel %vm408, %v3091, 0
      %v3167 = vsel %vm408, %v3093, 0
      %v3169 = vsel %vm408, %v3096, 0
      %v3171 = vsel %vm408, %v3098, 0
      %v3173 = vsel %vm408, %v3101, 0
      %v3175 = vsel %vm408, %v3103, 0
      %v3177 = vsel %vm408, %v3106, 0
      %v3179 = vsel %vm408, %v3108, 0
      %v3181 = vsel %vm408, %v3111, 0
      %v3183 = vsel %vm408, %v3113, 0
      %v3185 = vsel %vm408, %v3116, 0
      %v3187 = vsel %vm408, %v3118, 0
      %v3189 = vsel %vm408, %v3121, 0
      %v3191 = vsel %vm408, %v3123, 0
      %v3193 = vsel %vm408, %v3126, 0
      %v3195 = vsel %vm408, %v3128, 0
      %v3197 = vsel %vm408, %v3131, 0
      %v3199 = vsel %vm408, %v3133, 0
      %v3201 = vsel %vm408, %v3136, 0
      %v3203 = vsel %vm408, %v3138, 0
      %v3206 = vsel %vm473, %v3140, 0
      %3208 = vmatprep.subr.mxu0 0.0
      %3209 = vmatpush1.msra.mxu0 %v3206
      %3210 = vmatprep.subr.mxu0 0.0
      %3211 = vmatpush1.msra.mxu0 0.0
      %3212 = vmatprep.subr.mxu0 0.0
      %3213 = vmatpush1.msra.mxu0 0.0
      %3214 = vmatprep.subr.mxu0 0.0
      %3215 = vmatpush1.msra.mxu0 0.0
      %3216 = vmatprep.subr.mxu0 0.0
      %3217 = vmatpush1.msra.mxu0 0.0
      %3218 = vmatprep.subr.mxu0 0.0
      %3219 = vmatpush1.msra.mxu0 0.0
      %3220 = vmatprep.subr.mxu0 0.0
      %3221 = vmatpush1.msra.mxu0 0.0
      %3222 = vmatprep.subr.mxu0 0.0
      %3223 = vmatpush1.msra.mxu0 0.0
      %3224 = vmatprep.subr.mxu0 0.0
      %3225 = vmatpush1.msra.mxu0 0.0
      %3226 = vmatprep.subr.mxu0 0.0
      %3227 = vmatpush1.msra.mxu0 0.0
      %3228 = vmatprep.subr.mxu0 0.0
      %3229 = vmatpush1.msra.mxu0 0.0
      %3230 = vmatprep.subr.mxu0 0.0
      %3231 = vmatpush1.msra.mxu0 0.0
      %3232 = vmatprep.subr.mxu0 0.0
      %3233 = vmatpush1.msra.mxu0 0.0
      %3234 = vmatprep.subr.mxu0 0.0
      %3235 = vmatpush1.msra.mxu0 0.0
      %3236 = vmatprep.subr.mxu0 0.0
      %3237 = vmatpush1.msra.mxu0 0.0
      %3238 = vmatprep.subr.mxu0 0.0
      %3239 = vmatpush1.msra.mxu0 0.0
      %3240 = vmatprep.subr.mxu0 0.0
      %3241 = vmatpush1.msra.mxu0 0.0
      %3242 = vmatprep.subr.mxu0 0.0
      %3243 = vmatpush1.msra.mxu0 0.0
      %3244 = vmatprep.subr.mxu0 0.0
      %3245 = vmatpush1.msra.mxu0 0.0
      %3246 = vmatprep.subr.mxu0 0.0
      %3247 = vmatpush1.msra.mxu0 0.0
      %3248 = vmatprep.subr.mxu0 0.0
      %3249 = vmatpush1.msra.mxu0 0.0
      %3250 = vmatprep.subr.mxu0 0.0
      %3251 = vmatpush1.msra.mxu0 0.0
      %3252 = vmatprep.subr.mxu0 0.0
      %3253 = vmatpush1.msra.mxu0 0.0
      %3254 = vmatprep.subr.mxu0 0.0
      %3255 = vmatpush1.msra.mxu0 0.0
      %3256 = vmatprep.subr.mxu0 0.0
      %3257 = vmatpush1.msra.mxu0 0.0
      %3258 = vmatprep.subr.mxu0 0.0
      %3259 = vmatpush1.msra.mxu0 0.0
      %3260 = vmatprep.subr.mxu0 0.0
      %3261 = vmatpush1.msra.mxu0 0.0
      %3262 = vmatprep.subr.mxu0 0.0
      %3263 = vmatpush1.msra.mxu0 0.0
      %3264 = vmatprep.subr.mxu0 0.0
      %3265 = vmatpush1.msra.mxu0 0.0
      %3266 = vmatprep.subr.mxu0 0.0
      %3267 = vmatpush1.msra.mxu0 0.0
      %3268 = vmatprep.subr.mxu0 0.0
      %3269 = vmatpush1.msra.mxu0 0.0
      %3270 = vmatprep.subr.mxu0 0.0
      %3271 = vmatpush1.msra.mxu0 0.0
      %3272 = vmatprep.mubr.f32.mxu0 0.0
      %3273 = vmatmul.mubr.f32.gmra.mrb[0].mxu0 %v3141
      %v3274 = vpop.f32.mrb[0].mxu0
      %v3275 = vadd.f32 0.0, %v3274
      %v3276 = vpop.f32.mrb[0].mxu0
      %3277 = vmatprep.mubr.f32.mxu0 0.0
      %3278 = vmatmul.mubr.f32.gmra.mrb[0].mxu0 %v3143
      %v3279 = vpop.f32.mrb[0].mxu0
      %v3280 = vadd.f32 0.0, %v3279
      %v3281 = vpop.f32.mrb[0].mxu0
      %3282 = vmatprep.mubr.f32.mxu0 0.0
      %3283 = vmatmul.mubr.f32.gmra.mrb[0].mxu0 %v3145
      %v3284 = vpop.f32.mrb[0].mxu0
      %v3285 = vadd.f32 0.0, %v3284
      %v3286 = vpop.f32.mrb[0].mxu0
      %3287 = vmatprep.mubr.f32.mxu0 0.0
      %3288 = vmatmul.mubr.f32.gmra.mrb[0].mxu0 %v3147
      %v3289 = vpop.f32.mrb[0].mxu0
      %v3290 = vadd.f32 0.0, %v3289
      %v3291 = vpop.f32.mrb[0].mxu0
      %3292 = vmatprep.mubr.f32.mxu0 0.0
      %3293 = vmatmul.mubr.f32.gmra.mrb[0].mxu0 %v3149
      %v3294 = vpop.f32.mrb[0].mxu0
      %v3295 = vadd.f32 0.0, %v3294
      %v3296 = vpop.f32.mrb[0].mxu0
      %3297 = vmatprep.mubr.f32.mxu0 0.0
      %3298 = vmatmul.mubr.f32.gmra.mrb[0].mxu0 %v3151
      %v3299 = vpop.f32.mrb[0].mxu0
      %v3300 = vadd.f32 0.0, %v3299
      %v3301 = vpop.f32.mrb[0].mxu0
      %3302 = vmatprep.mubr.f32.mxu0 0.0
      %3303 = vmatmul.mubr.f32.gmra.mrb[0].mxu0 %v3153
      %v3304 = vpop.f32.mrb[0].mxu0
      %v3305 = vadd.f32 0.0, %v3304
      %v3306 = vpop.f32.mrb[0].mxu0
      %3307 = vmatprep.mubr.f32.mxu0 0.0
      %3308 = vmatmul.mubr.f32.gmra.mrb[0].mxu0 %v3155
      %v3309 = vpop.f32.mrb[0].mxu0
      %v3310 = vadd.f32 0.0, %v3309
      %v3311 = vpop.f32.mrb[0].mxu0
      %3312 = vmatprep.mubr.f32.mxu0 0.0
      %3313 = vmatmul.mubr.f32.gmra.mrb[0].mxu0 %v3157
      %v3314 = vpop.f32.mrb[0].mxu0
      %v3315 = vadd.f32 0.0, %v3314
      %v3316 = vpop.f32.mrb[0].mxu0
      %3317 = vmatprep.mubr.f32.mxu0 0.0
      %3318 = vmatmul.mubr.f32.gmra.mrb[0].mxu0 %v3159
      %v3319 = vpop.f32.mrb[0].mxu0
      %v3320 = vadd.f32 0.0, %v3319
      %v3321 = vpop.f32.mrb[0].mxu0
      %3322 = vmatprep.mubr.f32.mxu0 0.0
      %3323 = vmatmul.mubr.f32.gmra.mrb[0].mxu0 %v3161
      %v3324 = vpop.f32.mrb[0].mxu0
      %v3325 = vadd.f32 0.0, %v3324
      %v3326 = vpop.f32.mrb[0].mxu0
      %3327 = vmatprep.mubr.f32.mxu0 0.0
      %3328 = vmatmul.mubr.f32.gmra.mrb[0].mxu0 %v3163
      %v3329 = vpop.f32.mrb[0].mxu0
      %v3330 = vadd.f32 0.0, %v3329
      %v3331 = vpop.f32.mrb[0].mxu0
      %3332 = vmatprep.mubr.f32.mxu0 0.0
      %3333 = vmatmul.mubr.f32.gmra.mrb[0].mxu0 %v3165
      %v3334 = vpop.f32.mrb[0].mxu0
      %v3335 = vadd.f32 0.0, %v3334
      %v3336 = vpop.f32.mrb[0].mxu0
      %3337 = vmatprep.mubr.f32.mxu0 0.0
      %3338 = vmatmul.mubr.f32.gmra.mrb[0].mxu0 %v3167
      %v3339 = vpop.f32.mrb[0].mxu0
      %v3340 = vadd.f32 0.0, %v3339
      %v3341 = vpop.f32.mrb[0].mxu0
      %3342 = vmatprep.mubr.f32.mxu0 0.0
      %3343 = vmatmul.mubr.f32.gmra.mrb[0].mxu0 %v3169
      %v3344 = vpop.f32.mrb[0].mxu0
      %v3345 = vadd.f32 0.0, %v3344
      %v3346 = vpop.f32.mrb[0].mxu0
      %3347 = vmatprep.mubr.f32.mxu0 0.0
      %3348 = vmatmul.mubr.f32.gmra.mrb[0].mxu0 %v3171
      %v3349 = vpop.f32.mrb[0].mxu0
      %v3350 = vadd.f32 0.0, %v3349
      %v3351 = vpop.f32.mrb[0].mxu0
      %3352 = vmatprep.mubr.f32.mxu0 0.0
      %3353 = vmatmul.mubr.f32.gmra.mrb[0].mxu0 %v3173
      %v3354 = vpop.f32.mrb[0].mxu0
      %v3355 = vadd.f32 0.0, %v3354
      %v3356 = vpop.f32.mrb[0].mxu0
      %3357 = vmatprep.mubr.f32.mxu0 0.0
      %3358 = vmatmul.mubr.f32.gmra.mrb[0].mxu0 %v3175
      %v3359 = vpop.f32.mrb[0].mxu0
      %v3360 = vadd.f32 0.0, %v3359
      %v3361 = vpop.f32.mrb[0].mxu0
      %3362 = vmatprep.mubr.f32.mxu0 0.0
      %3363 = vmatmul.mubr.f32.gmra.mrb[0].mxu0 %v3177
      %v3364 = vpop.f32.mrb[0].mxu0
      %v3365 = vadd.f32 0.0, %v3364
      %v3366 = vpop.f32.mrb[0].mxu0
      %3367 = vmatprep.mubr.f32.mxu0 0.0
      %3368 = vmatmul.mubr.f32.gmra.mrb[0].mxu0 %v3179
      %v3369 = vpop.f32.mrb[0].mxu0
      %v3370 = vadd.f32 0.0, %v3369
      %v3371 = vpop.f32.mrb[0].mxu0
      %3372 = vmatprep.mubr.f32.mxu0 0.0
      %3373 = vmatmul.mubr.f32.gmra.mrb[0].mxu0 %v3181
      %v3374 = vpop.f32.mrb[0].mxu0
      %v3375 = vadd.f32 0.0, %v3374
      %v3376 = vpop.f32.mrb[0].mxu0
      %3377 = vmatprep.mubr.f32.mxu0 0.0
      %3378 = vmatmul.mubr.f32.gmra.mrb[0].mxu0 %v3183
      %v3379 = vpop.f32.mrb[0].mxu0
      %v3380 = vadd.f32 0.0, %v3379
      %v3381 = vpop.f32.mrb[0].mxu0
      %3382 = vmatprep.mubr.f32.mxu0 0.0
      %3383 = vmatmul.mubr.f32.gmra.mrb[0].mxu0 %v3185
      %v3384 = vpop.f32.mrb[0].mxu0
      %v3385 = vadd.f32 0.0, %v3384
      %v3386 = vpop.f32.mrb[0].mxu0
      %3387 = vmatprep.mubr.f32.mxu0 0.0
      %3388 = vmatmul.mubr.f32.gmra.mrb[0].mxu0 %v3187
      %v3389 = vpop.f32.mrb[0].mxu0
      %v3390 = vadd.f32 0.0, %v3389
      %v3391 = vpop.f32.mrb[0].mxu0
      %3392 = vmatprep.mubr.f32.mxu0 0.0
      %3393 = vmatmul.mubr.f32.gmra.mrb[0].mxu0 %v3189
      %v3394 = vpop.f32.mrb[0].mxu0
      %v3395 = vadd.f32 0.0, %v3394
      %v3396 = vpop.f32.mrb[0].mxu0
      %3397 = vmatprep.mubr.f32.mxu0 0.0
      %3398 = vmatmul.mubr.f32.gmra.mrb[0].mxu0 %v3191
      %v3399 = vpop.f32.mrb[0].mxu0
      %v3400 = vadd.f32 0.0, %v3399
      %v3401 = vpop.f32.mrb[0].mxu0
      %3402 = vmatprep.mubr.f32.mxu0 0.0
      %3403 = vmatmul.mubr.f32.gmra.mrb[0].mxu0 %v3193
      %v3404 = vpop.f32.mrb[0].mxu0
      %v3405 = vadd.f32 0.0, %v3404
      %v3406 = vpop.f32.mrb[0].mxu0
      %3407 = vmatprep.mubr.f32.mxu0 0.0
      %3408 = vmatmul.mubr.f32.gmra.mrb[0].mxu0 %v3195
      %v3409 = vpop.f32.mrb[0].mxu0
      %v3410 = vadd.f32 0.0, %v3409
      %v3411 = vpop.f32.mrb[0].mxu0
      %3412 = vmatprep.mubr.f32.mxu0 0.0
      %3413 = vmatmul.mubr.f32.gmra.mrb[0].mxu0 %v3197
      %v3414 = vpop.f32.mrb[0].mxu0
      %v3415 = vadd.f32 0.0, %v3414
      %v3416 = vpop.f32.mrb[0].mxu0
      %3417 = vmatprep.mubr.f32.mxu0 0.0
      %3418 = vmatmul.mubr.f32.gmra.mrb[0].mxu0 %v3199
      %v3419 = vpop.f32.mrb[0].mxu0
      %v3420 = vadd.f32 0.0, %v3419
      %v3421 = vpop.f32.mrb[0].mxu0
      %3422 = vmatprep.mubr.f32.mxu0 0.0
      %3423 = vmatmul.mubr.f32.gmra.mrb[0].mxu0 %v3201
      %v3424 = vpop.f32.mrb[0].mxu0
      %v3425 = vadd.f32 0.0, %v3424
      %v3426 = vpop.f32.mrb[0].mxu0
      %3427 = vmatprep.mubr.f32.mxu0 0.0
      %3428 = vmatmul.mubr.f32.gmra.mrb[0].mxu0 %v3203
      %v3429 = vpop.f32.mrb[0].mxu0
      %v3430 = vadd.f32 0.0, %v3429
      %v3431 = vpop.f32.mrb[0].mxu0
      %3432 = vdwg.mxu0
      %v3433 = vadd.f32 %v3011, %v3275
      %v3434 = vadd.f32 %v3012, %v3280
      %v3435 = vadd.f32 %v3013, %v3285
      %v3436 = vadd.f32 %v3014, %v3290
      %v3437 = vadd.f32 %v3015, %v3295
      %v3438 = vadd.f32 %v3016, %v3300
      %v3439 = vadd.f32 %v3017, %v3305
      %v3440 = vadd.f32 %v3018, %v3310
      %v3441 = vadd.f32 %v3019, %v3315
      %v3442 = vadd.f32 %v3020, %v3320
      %v3443 = vadd.f32 %v3021, %v3325
      %v3444 = vadd.f32 %v3022, %v3330
      %v3445 = vadd.f32 %v3023, %v3335
      %v3446 = vadd.f32 %v3024, %v3340
      %v3447 = vadd.f32 %v3025, %v3345
      %v3448 = vadd.f32 %v3026, %v3350
      %v3449 = vadd.f32 %v3027, %v3355
      %v3450 = vadd.f32 %v3028, %v3360
      %v3451 = vadd.f32 %v3029, %v3365
      %v3452 = vadd.f32 %v3030, %v3370
      %v3453 = vadd.f32 %v3031, %v3375
      %v3454 = vadd.f32 %v3032, %v3380
      %v3455 = vadd.f32 %v3033, %v3385
      %v3456 = vadd.f32 %v3034, %v3390
      %v3457 = vadd.f32 %v3035, %v3395
      %v3458 = vadd.f32 %v3036, %v3400
      %v3459 = vadd.f32 %v3037, %v3405
      %v3460 = vadd.f32 %v3038, %v3410
      %v3461 = vadd.f32 %v3039, %v3415
      %v3462 = vadd.f32 %v3040, %v3420
      %v3463 = vadd.f32 %v3041, %v3425
      %v3464 = vadd.f32 %v3042, %v3430
      %v3465 = vrot.slane %v2637, 2
      %v3466 = vrot.slane %v2638, 2
      %v3467 = vsel %vm994, %v3465, %v3466
      %v3468 = vrot.slane %v2639, 2
      %v3469 = vsel %vm994, %v3466, %v3468
      %v3470 = vrot.slane %v2640, 2
      %v3471 = vrot.slane %v2641, 2
      %v3472 = vsel %vm994, %v3470, %v3471
      %v3473 = vrot.slane %v2642, 2
      %v3474 = vsel %vm994, %v3471, %v3473
      %v3475 = vrot.slane %v2643, 2
      %v3476 = vrot.slane %v2644, 2
      %v3477 = vsel %vm994, %v3475, %v3476
      %v3478 = vrot.slane %v2645, 2
      %v3479 = vsel %vm994, %v3476, %v3478
      %v3480 = vrot.slane %v2646, 2
      %v3481 = vrot.slane %v2647, 2
      %v3482 = vsel %vm994, %v3480, %v3481
      %v3483 = vrot.slane %v2648, 2
      %v3484 = vsel %vm994, %v3481, %v3483
      %v3485 = vrot.slane %v2649, 2
      %v3486 = vrot.slane %v2650, 2
      %v3487 = vsel %vm994, %v3485, %v3486
      %v3488 = vrot.slane %v2651, 2
      %v3489 = vsel %vm994, %v3486, %v3488
      %v3490 = vrot.slane %v2652, 2
      %v3491 = vrot.slane %v2653, 2
      %v3492 = vsel %vm994, %v3490, %v3491
      %v3493 = vrot.slane %v2654, 2
      %v3494 = vsel %vm994, %v3491, %v3493
      %v3495 = vrot.slane %v2655, 2
      %v3496 = vrot.slane %v2656, 2
      %v3497 = vsel %vm994, %v3495, %v3496
      %v3498 = vrot.slane %v2657, 2
      %v3499 = vsel %vm994, %v3496, %v3498
      %v3500 = vrot.slane %v2658, 2
      %v3501 = vrot.slane %v2659, 2
      %v3502 = vsel %vm994, %v3500, %v3501
      %v3503 = vrot.slane %v2660, 2
      %v3504 = vsel %vm994, %v3501, %v3503
      %v3505 = vrot.slane %v2661, 2
      %v3506 = vrot.slane %v2662, 2
      %v3507 = vsel %vm994, %v3505, %v3506
      %v3508 = vrot.slane %v2663, 2
      %v3509 = vsel %vm994, %v3506, %v3508
      %v3510 = vrot.slane %v2664, 2
      %v3511 = vrot.slane %v2665, 2
      %v3512 = vsel %vm994, %v3510, %v3511
      %v3513 = vrot.slane %v2666, 2
      %v3514 = vsel %vm994, %v3511, %v3513
      %v3515 = vrot.slane %v2667, 2
      %v3516 = vrot.slane %v2668, 2
      %v3517 = vsel %vm994, %v3515, %v3516
      %v3518 = vrot.slane %v2669, 2
      %v3519 = vsel %vm994, %v3516, %v3518
      %v3520 = vrot.slane %v2670, 2
      %v3521 = vrot.slane %v2671, 2
      %v3522 = vsel %vm994, %v3520, %v3521
      %v3523 = vrot.slane %v2672, 2
      %v3524 = vsel %vm994, %v3521, %v3523
      %v3525 = vrot.slane %v2673, 2
      %v3526 = vrot.slane %v2674, 2
      %v3527 = vsel %vm994, %v3525, %v3526
      %v3528 = vrot.slane %v2675, 2
      %v3529 = vsel %vm994, %v3526, %v3528
      %v3530 = vrot.slane %v2676, 2
      %v3531 = vrot.slane %v2677, 2
      %v3532 = vsel %vm994, %v3530, %v3531
      %v3533 = vrot.slane %v2678, 2
      %v3534 = vsel %vm994, %v3531, %v3533
      %v3535 = vrot.slane %v2679, 2
      %v3536 = vrot.slane %v2680, 2
      %v3537 = vsel %vm994, %v3535, %v3536
      %v3538 = vrot.slane %v2681, 2
      %v3539 = vsel %vm994, %v3536, %v3538
      %v3540 = vrot.slane %v2682, 2
      %v3541 = vrot.slane %v2683, 2
      %v3542 = vsel %vm994, %v3540, %v3541
      %v3543 = vrot.slane %v2684, 2
      %v3544 = vsel %vm994, %v3541, %v3543
      %s3545 = scalar_lea.vmem %s1, 32
      %v3546 = vld [vmem:[%s3545] sm:$0xf]
      %v3547 = vsel %vm408, %v3467, 0
      %v3549 = vsel %vm408, %v3469, 0
      %v3551 = vsel %vm408, %v3472, 0
      %v3553 = vsel %vm408, %v3474, 0
      %v3555 = vsel %vm408, %v3477, 0
      %v3557 = vsel %vm408, %v3479, 0
      %v3559 = vsel %vm408, %v3482, 0
      %v3561 = vsel %vm408, %v3484, 0
      %v3563 = vsel %vm408, %v3487, 0
      %v3565 = vsel %vm408, %v3489, 0
      %v3567 = vsel %vm408, %v3492, 0
      %v3569 = vsel %vm408, %v3494, 0
      %v3571 = vsel %vm408, %v3497, 0
      %v3573 = vsel %vm408, %v3499, 0
      %v3575 = vsel %vm408, %v3502, 0
      %v3577 = vsel %vm408, %v3504, 0
      %v3579 = vsel %vm408, %v3507, 0
      %v3581 = vsel %vm408, %v3509, 0
      %v3583 = vsel %vm408, %v3512, 0
      %v3585 = vsel %vm408, %v3514, 0
      %v3587 = vsel %vm408, %v3517, 0
      %v3589 = vsel %vm408, %v3519, 0
      %v3591 = vsel %vm408, %v3522, 0
      %v3593 = vsel %vm408, %v3524, 0
      %v3595 = vsel %vm408, %v3527, 0
      %v3597 = vsel %vm408, %v3529, 0
      %v3599 = vsel %vm408, %v3532, 0
      %v3601 = vsel %vm408, %v3534, 0
      %v3603 = vsel %vm408, %v3537, 0
      %v3605 = vsel %vm408, %v3539, 0
      %v3607 = vsel %vm408, %v3542, 0
      %v3609 = vsel %vm408, %v3544, 0
      %v3612 = vsel %vm473, %v3546, 0
      %3614 = vmatprep.subr.mxu0 0.0
      %3615 = vmatpush1.msra.mxu0 %v3612
      %3616 = vmatprep.subr.mxu0 0.0
      %3617 = vmatpush1.msra.mxu0 0.0
      %3618 = vmatprep.subr.mxu0 0.0
      %3619 = vmatpush1.msra.mxu0 0.0
      %3620 = vmatprep.subr.mxu0 0.0
      %3621 = vmatpush1.msra.mxu0 0.0
      %3622 = vmatprep.subr.mxu0 0.0
      %3623 = vmatpush1.msra.mxu0 0.0
      %3624 = vmatprep.subr.mxu0 0.0
      %3625 = vmatpush1.msra.mxu0 0.0
      %3626 = vmatprep.subr.mxu0 0.0
      %3627 = vmatpush1.msra.mxu0 0.0
      %3628 = vmatprep.subr.mxu0 0.0
      %3629 = vmatpush1.msra.mxu0 0.0
      %3630 = vmatprep.subr.mxu0 0.0
      %3631 = vmatpush1.msra.mxu0 0.0
      %3632 = vmatprep.subr.mxu0 0.0
      %3633 = vmatpush1.msra.mxu0 0.0
      %3634 = vmatprep.subr.mxu0 0.0
      %3635 = vmatpush1.msra.mxu0 0.0
      %3636 = vmatprep.subr.mxu0 0.0
      %3637 = vmatpush1.msra.mxu0 0.0
      %3638 = vmatprep.subr.mxu0 0.0
      %3639 = vmatpush1.msra.mxu0 0.0
      %3640 = vmatprep.subr.mxu0 0.0
      %3641 = vmatpush1.msra.mxu0 0.0
      %3642 = vmatprep.subr.mxu0 0.0
      %3643 = vmatpush1.msra.mxu0 0.0
      %3644 = vmatprep.subr.mxu0 0.0
      %3645 = vmatpush1.msra.mxu0 0.0
      %3646 = vmatprep.subr.mxu0 0.0
      %3647 = vmatpush1.msra.mxu0 0.0
      %3648 = vmatprep.subr.mxu0 0.0
      %3649 = vmatpush1.msra.mxu0 0.0
      %3650 = vmatprep.subr.mxu0 0.0
      %3651 = vmatpush1.msra.mxu0 0.0
      %3652 = vmatprep.subr.mxu0 0.0
      %3653 = vmatpush1.msra.mxu0 0.0
      %3654 = vmatprep.subr.mxu0 0.0
      %3655 = vmatpush1.msra.mxu0 0.0
      %3656 = vmatprep.subr.mxu0 0.0
      %3657 = vmatpush1.msra.mxu0 0.0
      %3658 = vmatprep.subr.mxu0 0.0
      %3659 = vmatpush1.msra.mxu0 0.0
      %3660 = vmatprep.subr.mxu0 0.0
      %3661 = vmatpush1.msra.mxu0 0.0
      %3662 = vmatprep.subr.mxu0 0.0
      %3663 = vmatpush1.msra.mxu0 0.0
      %3664 = vmatprep.subr.mxu0 0.0
      %3665 = vmatpush1.msra.mxu0 0.0
      %3666 = vmatprep.subr.mxu0 0.0
      %3667 = vmatpush1.msra.mxu0 0.0
      %3668 = vmatprep.subr.mxu0 0.0
      %3669 = vmatpush1.msra.mxu0 0.0
      %3670 = vmatprep.subr.mxu0 0.0
      %3671 = vmatpush1.msra.mxu0 0.0
      %3672 = vmatprep.subr.mxu0 0.0
      %3673 = vmatpush1.msra.mxu0 0.0
      %3674 = vmatprep.subr.mxu0 0.0
      %3675 = vmatpush1.msra.mxu0 0.0
      %3676 = vmatprep.subr.mxu0 0.0
      %3677 = vmatpush1.msra.mxu0 0.0
      %3678 = vmatprep.mubr.f32.mxu0 0.0
      %3679 = vmatmul.mubr.f32.gmra.mrb[0].mxu0 %v3547
      %v3680 = vpop.f32.mrb[0].mxu0
      %v3681 = vadd.f32 0.0, %v3680
      %v3682 = vpop.f32.mrb[0].mxu0
      %3683 = vmatprep.mubr.f32.mxu0 0.0
      %3684 = vmatmul.mubr.f32.gmra.mrb[0].mxu0 %v3549
      %v3685 = vpop.f32.mrb[0].mxu0
      %v3686 = vadd.f32 0.0, %v3685
      %v3687 = vpop.f32.mrb[0].mxu0
      %3688 = vmatprep.mubr.f32.mxu0 0.0
      %3689 = vmatmul.mubr.f32.gmra.mrb[0].mxu0 %v3551
      %v3690 = vpop.f32.mrb[0].mxu0
      %v3691 = vadd.f32 0.0, %v3690
      %v3692 = vpop.f32.mrb[0].mxu0
      %3693 = vmatprep.mubr.f32.mxu0 0.0
      %3694 = vmatmul.mubr.f32.gmra.mrb[0].mxu0 %v3553
      %v3695 = vpop.f32.mrb[0].mxu0
      %v3696 = vadd.f32 0.0, %v3695
      %v3697 = vpop.f32.mrb[0].mxu0
      %3698 = vmatprep.mubr.f32.mxu0 0.0
      %3699 = vmatmul.mubr.f32.gmra.mrb[0].mxu0 %v3555
      %v3700 = vpop.f32.mrb[0].mxu0
      %v3701 = vadd.f32 0.0, %v3700
      %v3702 = vpop.f32.mrb[0].mxu0
      %3703 = vmatprep.mubr.f32.mxu0 0.0
      %3704 = vmatmul.mubr.f32.gmra.mrb[0].mxu0 %v3557
      %v3705 = vpop.f32.mrb[0].mxu0
      %v3706 = vadd.f32 0.0, %v3705
      %v3707 = vpop.f32.mrb[0].mxu0
      %3708 = vmatprep.mubr.f32.mxu0 0.0
      %3709 = vmatmul.mubr.f32.gmra.mrb[0].mxu0 %v3559
      %v3710 = vpop.f32.mrb[0].mxu0
      %v3711 = vadd.f32 0.0, %v3710
      %v3712 = vpop.f32.mrb[0].mxu0
      %3713 = vmatprep.mubr.f32.mxu0 0.0
      %3714 = vmatmul.mubr.f32.gmra.mrb[0].mxu0 %v3561
      %v3715 = vpop.f32.mrb[0].mxu0
      %v3716 = vadd.f32 0.0, %v3715
      %v3717 = vpop.f32.mrb[0].mxu0
      %3718 = vmatprep.mubr.f32.mxu0 0.0
      %3719 = vmatmul.mubr.f32.gmra.mrb[0].mxu0 %v3563
      %v3720 = vpop.f32.mrb[0].mxu0
      %v3721 = vadd.f32 0.0, %v3720
      %v3722 = vpop.f32.mrb[0].mxu0
      %3723 = vmatprep.mubr.f32.mxu0 0.0
      %3724 = vmatmul.mubr.f32.gmra.mrb[0].mxu0 %v3565
      %v3725 = vpop.f32.mrb[0].mxu0
      %v3726 = vadd.f32 0.0, %v3725
      %v3727 = vpop.f32.mrb[0].mxu0
      %3728 = vmatprep.mubr.f32.mxu0 0.0
      %3729 = vmatmul.mubr.f32.gmra.mrb[0].mxu0 %v3567
      %v3730 = vpop.f32.mrb[0].mxu0
      %v3731 = vadd.f32 0.0, %v3730
      %v3732 = vpop.f32.mrb[0].mxu0
      %3733 = vmatprep.mubr.f32.mxu0 0.0
      %3734 = vmatmul.mubr.f32.gmra.mrb[0].mxu0 %v3569
      %v3735 = vpop.f32.mrb[0].mxu0
      %v3736 = vadd.f32 0.0, %v3735
      %v3737 = vpop.f32.mrb[0].mxu0
      %3738 = vmatprep.mubr.f32.mxu0 0.0
      %3739 = vmatmul.mubr.f32.gmra.mrb[0].mxu0 %v3571
      %v3740 = vpop.f32.mrb[0].mxu0
      %v3741 = vadd.f32 0.0, %v3740
      %v3742 = vpop.f32.mrb[0].mxu0
      %3743 = vmatprep.mubr.f32.mxu0 0.0
      %3744 = vmatmul.mubr.f32.gmra.mrb[0].mxu0 %v3573
      %v3745 = vpop.f32.mrb[0].mxu0
      %v3746 = vadd.f32 0.0, %v3745
      %v3747 = vpop.f32.mrb[0].mxu0
      %3748 = vmatprep.mubr.f32.mxu0 0.0
      %3749 = vmatmul.mubr.f32.gmra.mrb[0].mxu0 %v3575
      %v3750 = vpop.f32.mrb[0].mxu0
      %v3751 = vadd.f32 0.0, %v3750
      %v3752 = vpop.f32.mrb[0].mxu0
      %3753 = vmatprep.mubr.f32.mxu0 0.0
      %3754 = vmatmul.mubr.f32.gmra.mrb[0].mxu0 %v3577
      %v3755 = vpop.f32.mrb[0].mxu0
      %v3756 = vadd.f32 0.0, %v3755
      %v3757 = vpop.f32.mrb[0].mxu0
      %3758 = vmatprep.mubr.f32.mxu0 0.0
      %3759 = vmatmul.mubr.f32.gmra.mrb[0].mxu0 %v3579
      %v3760 = vpop.f32.mrb[0].mxu0
      %v3761 = vadd.f32 0.0, %v3760
      %v3762 = vpop.f32.mrb[0].mxu0
      %3763 = vmatprep.mubr.f32.mxu0 0.0
      %3764 = vmatmul.mubr.f32.gmra.mrb[0].mxu0 %v3581
      %v3765 = vpop.f32.mrb[0].mxu0
      %v3766 = vadd.f32 0.0, %v3765
      %v3767 = vpop.f32.mrb[0].mxu0
      %3768 = vmatprep.mubr.f32.mxu0 0.0
      %3769 = vmatmul.mubr.f32.gmra.mrb[0].mxu0 %v3583
      %v3770 = vpop.f32.mrb[0].mxu0
      %v3771 = vadd.f32 0.0, %v3770
      %v3772 = vpop.f32.mrb[0].mxu0
      %3773 = vmatprep.mubr.f32.mxu0 0.0
      %3774 = vmatmul.mubr.f32.gmra.mrb[0].mxu0 %v3585
      %v3775 = vpop.f32.mrb[0].mxu0
      %v3776 = vadd.f32 0.0, %v3775
      %v3777 = vpop.f32.mrb[0].mxu0
      %3778 = vmatprep.mubr.f32.mxu0 0.0
      %3779 = vmatmul.mubr.f32.gmra.mrb[0].mxu0 %v3587
      %v3780 = vpop.f32.mrb[0].mxu0
      %v3781 = vadd.f32 0.0, %v3780
      %v3782 = vpop.f32.mrb[0].mxu0
      %3783 = vmatprep.mubr.f32.mxu0 0.0
      %3784 = vmatmul.mubr.f32.gmra.mrb[0].mxu0 %v3589
      %v3785 = vpop.f32.mrb[0].mxu0
      %v3786 = vadd.f32 0.0, %v3785
      %v3787 = vpop.f32.mrb[0].mxu0
      %3788 = vmatprep.mubr.f32.mxu0 0.0
      %3789 = vmatmul.mubr.f32.gmra.mrb[0].mxu0 %v3591
      %v3790 = vpop.f32.mrb[0].mxu0
      %v3791 = vadd.f32 0.0, %v3790
      %v3792 = vpop.f32.mrb[0].mxu0
      %3793 = vmatprep.mubr.f32.mxu0 0.0
      %3794 = vmatmul.mubr.f32.gmra.mrb[0].mxu0 %v3593
      %v3795 = vpop.f32.mrb[0].mxu0
      %v3796 = vadd.f32 0.0, %v3795
      %v3797 = vpop.f32.mrb[0].mxu0
      %3798 = vmatprep.mubr.f32.mxu0 0.0
      %3799 = vmatmul.mubr.f32.gmra.mrb[0].mxu0 %v3595
      %v3800 = vpop.f32.mrb[0].mxu0
      %v3801 = vadd.f32 0.0, %v3800
      %v3802 = vpop.f32.mrb[0].mxu0
      %3803 = vmatprep.mubr.f32.mxu0 0.0
      %3804 = vmatmul.mubr.f32.gmra.mrb[0].mxu0 %v3597
      %v3805 = vpop.f32.mrb[0].mxu0
      %v3806 = vadd.f32 0.0, %v3805
      %v3807 = vpop.f32.mrb[0].mxu0
      %3808 = vmatprep.mubr.f32.mxu0 0.0
      %3809 = vmatmul.mubr.f32.gmra.mrb[0].mxu0 %v3599
      %v3810 = vpop.f32.mrb[0].mxu0
      %v3811 = vadd.f32 0.0, %v3810
      %v3812 = vpop.f32.mrb[0].mxu0
      %3813 = vmatprep.mubr.f32.mxu0 0.0
      %3814 = vmatmul.mubr.f32.gmra.mrb[0].mxu0 %v3601
      %v3815 = vpop.f32.mrb[0].mxu0
      %v3816 = vadd.f32 0.0, %v3815
      %v3817 = vpop.f32.mrb[0].mxu0
      %3818 = vmatprep.mubr.f32.mxu0 0.0
      %3819 = vmatmul.mubr.f32.gmra.mrb[0].mxu0 %v3603
      %v3820 = vpop.f32.mrb[0].mxu0
      %v3821 = vadd.f32 0.0, %v3820
      %v3822 = vpop.f32.mrb[0].mxu0
      %3823 = vmatprep.mubr.f32.mxu0 0.0
      %3824 = vmatmul.mubr.f32.gmra.mrb[0].mxu0 %v3605
      %v3825 = vpop.f32.mrb[0].mxu0
      %v3826 = vadd.f32 0.0, %v3825
      %v3827 = vpop.f32.mrb[0].mxu0
      %3828 = vmatprep.mubr.f32.mxu0 0.0
      %3829 = vmatmul.mubr.f32.gmra.mrb[0].mxu0 %v3607
      %v3830 = vpop.f32.mrb[0].mxu0
      %v3831 = vadd.f32 0.0, %v3830
      %v3832 = vpop.f32.mrb[0].mxu0
      %3833 = vmatprep.mubr.f32.mxu0 0.0
      %3834 = vmatmul.mubr.f32.gmra.mrb[0].mxu0 %v3609
      %v3835 = vpop.f32.mrb[0].mxu0
      %v3836 = vadd.f32 0.0, %v3835
      %v3837 = vpop.f32.mrb[0].mxu0
      %3838 = vdwg.mxu0
      %v3839 = vadd.f32 %v3433, %v3681
      %v3840 = vadd.f32 %v3434, %v3686
      %v3841 = vadd.f32 %v3435, %v3691
      %v3842 = vadd.f32 %v3436, %v3696
      %v3843 = vadd.f32 %v3437, %v3701
      %v3844 = vadd.f32 %v3438, %v3706
      %v3845 = vadd.f32 %v3439, %v3711
      %v3846 = vadd.f32 %v3440, %v3716
      %v3847 = vadd.f32 %v3441, %v3721
      %v3848 = vadd.f32 %v3442, %v3726
      %v3849 = vadd.f32 %v3443, %v3731
      %v3850 = vadd.f32 %v3444, %v3736
      %v3851 = vadd.f32 %v3445, %v3741
      %v3852 = vadd.f32 %v3446, %v3746
      %v3853 = vadd.f32 %v3447, %v3751
      %v3854 = vadd.f32 %v3448, %v3756
      %v3855 = vadd.f32 %v3449, %v3761
      %v3856 = vadd.f32 %v3450, %v3766
      %v3857 = vadd.f32 %v3451, %v3771
      %v3858 = vadd.f32 %v3452, %v3776
      %v3859 = vadd.f32 %v3453, %v3781
      %v3860 = vadd.f32 %v3454, %v3786
      %v3861 = vadd.f32 %v3455, %v3791
      %v3862 = vadd.f32 %v3456, %v3796
      %v3863 = vadd.f32 %v3457, %v3801
      %v3864 = vadd.f32 %v3458, %v3806
      %v3865 = vadd.f32 %v3459, %v3811
      %v3866 = vadd.f32 %v3460, %v3816
      %v3867 = vadd.f32 %v3461, %v3821
      %v3868 = vadd.f32 %v3462, %v3826
      %v3869 = vadd.f32 %v3463, %v3831
      %v3870 = vadd.f32 %v3464, %v3836
      %3871 = vst.msk [vmem:[%s224] sm:$0xff] %vm225, %v3839
      %3872 = vst.msk [vmem:[%s224 + $0x8] sm:$0xff] %vm225, %v3840
      %3873 = vst.msk [vmem:[%s224 + $0x10] sm:$0xff] %vm225, %v3841
      %3874 = vst.msk [vmem:[%s224 + $0x18] sm:$0xff] %vm225, %v3842
      %3875 = vst.msk [vmem:[%s224 + $0x20] sm:$0xff] %vm225, %v3843
      %3876 = vst.msk [vmem:[%s224 + $0x28] sm:$0xff] %vm225, %v3844
      %3877 = vst.msk [vmem:[%s224 + $0x30] sm:$0xff] %vm225, %v3845
      %3878 = vst.msk [vmem:[%s224 + $0x38] sm:$0xff] %vm225, %v3846
      %3879 = vst.msk [vmem:[%s224 + $0x40] sm:$0xff] %vm225, %v3847
      %3880 = vst.msk [vmem:[%s224 + $0x48] sm:$0xff] %vm225, %v3848
      %3881 = vst.msk [vmem:[%s224 + $0x50] sm:$0xff] %vm225, %v3849
      %3882 = vst.msk [vmem:[%s224 + $0x58] sm:$0xff] %vm225, %v3850
      %3883 = vst.msk [vmem:[%s224 + $0x60] sm:$0xff] %vm225, %v3851
      %3884 = vst.msk [vmem:[%s224 + $0x68] sm:$0xff] %vm225, %v3852
      %3885 = vst.msk [vmem:[%s224 + $0x70] sm:$0xff] %vm225, %v3853
      %3886 = vst.msk [vmem:[%s224 + $0x78] sm:$0xff] %vm225, %v3854
      %3887 = vst.msk [vmem:[%s224 + $0x80] sm:$0xff] %vm225, %v3855
      %3888 = vst.msk [vmem:[%s224 + $0x88] sm:$0xff] %vm225, %v3856
      %3889 = vst.msk [vmem:[%s224 + $0x90] sm:$0xff] %vm225, %v3857
      %3890 = vst.msk [vmem:[%s224 + $0x98] sm:$0xff] %vm225, %v3858
      %3891 = vst.msk [vmem:[%s224 + $0xa0] sm:$0xff] %vm225, %v3859
      %3892 = vst.msk [vmem:[%s224 + $0xa8] sm:$0xff] %vm225, %v3860
      %3893 = vst.msk [vmem:[%s224 + $0xb0] sm:$0xff] %vm225, %v3861
      %3894 = vst.msk [vmem:[%s224 + $0xb8] sm:$0xff] %vm225, %v3862
      %3895 = vst.msk [vmem:[%s224 + $0xc0] sm:$0xff] %vm225, %v3863
      %3896 = vst.msk [vmem:[%s224 + $0xc8] sm:$0xff] %vm225, %v3864
      %3897 = vst.msk [vmem:[%s224 + $0xd0] sm:$0xff] %vm225, %v3865
      %3898 = vst.msk [vmem:[%s224 + $0xd8] sm:$0xff] %vm225, %v3866
      %3899 = vst.msk [vmem:[%s224 + $0xe0] sm:$0xff] %vm225, %v3867
      %3900 = vst.msk [vmem:[%s224 + $0xe8] sm:$0xff] %vm225, %v3868
      %3901 = vst.msk [vmem:[%s224 + $0xf0] sm:$0xff] %vm225, %v3869
      %3902 = vst.msk [vmem:[%s224 + $0xf8] sm:$0xff] %vm225, %v3870
      %v3903 = vld [vmem:[#allocation2] sm:$0xff]
      %v3904 = vsel %vm225, %v3839, 0.0
      %v3905 = vsel %vm225, %v3840, 0.0
      %v3906 = vadd.f32 %v3904, %v3905
      %v3907 = vsel %vm225, %v3841, 0.0
      %v3908 = vadd.f32 %v3906, %v3907
      %v3909 = vsel %vm225, %v3842, 0.0
      %v3910 = vadd.f32 %v3908, %v3909
      %v3911 = vsel %vm225, %v3843, 0.0
      %v3912 = vadd.f32 %v3910, %v3911
      %v3913 = vsel %vm225, %v3844, 0.0
      %v3914 = vadd.f32 %v3912, %v3913
      %v3915 = vsel %vm225, %v3845, 0.0
      %v3916 = vadd.f32 %v3914, %v3915
      %v3917 = vsel %vm225, %v3846, 0.0
      %v3918 = vadd.f32 %v3916, %v3917
      %v3919 = vsel %vm225, %v3847, 0.0
      %v3920 = vadd.f32 %v3918, %v3919
      %v3921 = vsel %vm225, %v3848, 0.0
      %v3922 = vadd.f32 %v3920, %v3921
      %v3923 = vsel %vm225, %v3849, 0.0
      %v3924 = vadd.f32 %v3922, %v3923
      %v3925 = vsel %vm225, %v3850, 0.0
      %v3926 = vadd.f32 %v3924, %v3925
      %v3927 = vsel %vm225, %v3851, 0.0
      %v3928 = vadd.f32 %v3926, %v3927
      %v3929 = vsel %vm225, %v3852, 0.0
      %v3930 = vadd.f32 %v3928, %v3929
      %v3931 = vsel %vm225, %v3853, 0.0
      %v3932 = vadd.f32 %v3930, %v3931
      %v3933 = vsel %vm225, %v3854, 0.0
      %v3934 = vadd.f32 %v3932, %v3933
      %v3935 = vsel %vm225, %v3855, 0.0
      %v3936 = vadd.f32 %v3934, %v3935
      %v3937 = vsel %vm225, %v3856, 0.0
      %v3938 = vadd.f32 %v3936, %v3937
      %v3939 = vsel %vm225, %v3857, 0.0
      %v3940 = vadd.f32 %v3938, %v3939
      %v3941 = vsel %vm225, %v3858, 0.0
      %v3942 = vadd.f32 %v3940, %v3941
      %v3943 = vsel %vm225, %v3859, 0.0
      %v3944 = vadd.f32 %v3942, %v3943
      %v3945 = vsel %vm225, %v3860, 0.0
      %v3946 = vadd.f32 %v3944, %v3945
      %v3947 = vsel %vm225, %v3861, 0.0
      %v3948 = vadd.f32 %v3946, %v3947
      %v3949 = vsel %vm225, %v3862, 0.0
      %v3950 = vadd.f32 %v3948, %v3949
      %v3951 = vsel %vm225, %v3863, 0.0
      %v3952 = vadd.f32 %v3950, %v3951
      %v3953 = vsel %vm225, %v3864, 0.0
      %v3954 = vadd.f32 %v3952, %v3953
      %v3955 = vsel %vm225, %v3865, 0.0
      %v3956 = vadd.f32 %v3954, %v3955
      %v3957 = vsel %vm225, %v3866, 0.0
      %v3958 = vadd.f32 %v3956, %v3957
      %v3959 = vsel %vm225, %v3867, 0.0
      %v3960 = vadd.f32 %v3958, %v3959
      %v3961 = vsel %vm225, %v3868, 0.0
      %v3962 = vadd.f32 %v3960, %v3961
      %v3963 = vsel %vm225, %v3869, 0.0
      %v3964 = vadd.f32 %v3962, %v3963
      %v3965 = vsel %vm225, %v3870, 0.0
      %v3966 = vadd.f32 %v3964, %v3965
      %v3967 = vrot.slane %v3966, 4
      %v3968 = vadd.f32 %v3966, %v3967
      %v3969 = vrot.slane %v3968, 2
      %v3970 = vadd.f32 %v3968, %v3969
      %v3971 = vrot.slane %v3970, 1
      %v3972 = vadd.f32 %v3970, %v3971
      %v3973 = vadd.f32 %v3903, %v3972
      %3974 = vst.msk [vmem:[#allocation2] sm:$0xff] %vm225, %v3973
      %v3975 = vld [vmem:[#allocation3] sm:$0xff]
      %v3976 = vmul.f32 %v3839, %v3839
      %v3977 = vmul.f32 %v3840, %v3840
      %v3978 = vmul.f32 %v3841, %v3841
      %v3979 = vmul.f32 %v3842, %v3842
      %v3980 = vmul.f32 %v3843, %v3843
      %v3981 = vmul.f32 %v3844, %v3844
      %v3982 = vmul.f32 %v3845, %v3845
      %v3983 = vmul.f32 %v3846, %v3846
      %v3984 = vmul.f32 %v3847, %v3847
      %v3985 = vmul.f32 %v3848, %v3848
      %v3986 = vmul.f32 %v3849, %v3849
      %v3987 = vmul.f32 %v3850, %v3850
      %v3988 = vmul.f32 %v3851, %v3851
      %v3989 = vmul.f32 %v3852, %v3852
      %v3990 = vmul.f32 %v3853, %v3853
      %v3991 = vmul.f32 %v3854, %v3854
      %v3992 = vmul.f32 %v3855, %v3855
      %v3993 = vmul.f32 %v3856, %v3856
      %v3994 = vmul.f32 %v3857, %v3857
      %v3995 = vmul.f32 %v3858, %v3858
      %v3996 = vmul.f32 %v3859, %v3859
      %v3997 = vmul.f32 %v3860, %v3860
      %v3998 = vmul.f32 %v3861, %v3861
      %v3999 = vmul.f32 %v3862, %v3862
      %v4000 = vmul.f32 %v3863, %v3863
      %v4001 = vmul.f32 %v3864, %v3864
      %v4002 = vmul.f32 %v3865, %v3865
      %v4003 = vmul.f32 %v3866, %v3866
      %v4004 = vmul.f32 %v3867, %v3867
      %v4005 = vmul.f32 %v3868, %v3868
      %v4006 = vmul.f32 %v3869, %v3869
      %v4007 = vmul.f32 %v3870, %v3870
      %v4008 = vsel %vm225, %v3976, 0.0
      %v4009 = vsel %vm225, %v3977, 0.0
      %v4010 = vadd.f32 %v4008, %v4009
      %v4011 = vsel %vm225, %v3978, 0.0
      %v4012 = vadd.f32 %v4010, %v4011
      %v4013 = vsel %vm225, %v3979, 0.0
      %v4014 = vadd.f32 %v4012, %v4013
      %v4015 = vsel %vm225, %v3980, 0.0
      %v4016 = vadd.f32 %v4014, %v4015
      %v4017 = vsel %vm225, %v3981, 0.0
      %v4018 = vadd.f32 %v4016, %v4017
      %v4019 = vsel %vm225, %v3982, 0.0
      %v4020 = vadd.f32 %v4018, %v4019
      %v4021 = vsel %vm225, %v3983, 0.0
      %v4022 = vadd.f32 %v4020, %v4021
      %v4023 = vsel %vm225, %v3984, 0.0
      %v4024 = vadd.f32 %v4022, %v4023
      %v4025 = vsel %vm225, %v3985, 0.0
      %v4026 = vadd.f32 %v4024, %v4025
      %v4027 = vsel %vm225, %v3986, 0.0
      %v4028 = vadd.f32 %v4026, %v4027
      %v4029 = vsel %vm225, %v3987, 0.0
      %v4030 = vadd.f32 %v4028, %v4029
      %v4031 = vsel %vm225, %v3988, 0.0
      %v4032 = vadd.f32 %v4030, %v4031
      %v4033 = vsel %vm225, %v3989, 0.0
      %v4034 = vadd.f32 %v4032, %v4033
      %v4035 = vsel %vm225, %v3990, 0.0
      %v4036 = vadd.f32 %v4034, %v4035
      %v4037 = vsel %vm225, %v3991, 0.0
      %v4038 = vadd.f32 %v4036, %v4037
      %v4039 = vsel %vm225, %v3992, 0.0
      %v4040 = vadd.f32 %v4038, %v4039
      %v4041 = vsel %vm225, %v3993, 0.0
      %v4042 = vadd.f32 %v4040, %v4041
      %v4043 = vsel %vm225, %v3994, 0.0
      %v4044 = vadd.f32 %v4042, %v4043
      %v4045 = vsel %vm225, %v3995, 0.0
      %v4046 = vadd.f32 %v4044, %v4045
      %v4047 = vsel %vm225, %v3996, 0.0
      %v4048 = vadd.f32 %v4046, %v4047
      %v4049 = vsel %vm225, %v3997, 0.0
      %v4050 = vadd.f32 %v4048, %v4049
      %v4051 = vsel %vm225, %v3998, 0.0
      %v4052 = vadd.f32 %v4050, %v4051
      %v4053 = vsel %vm225, %v3999, 0.0
      %v4054 = vadd.f32 %v4052, %v4053
      %v4055 = vsel %vm225, %v4000, 0.0
      %v4056 = vadd.f32 %v4054, %v4055
      %v4057 = vsel %vm225, %v4001, 0.0
      %v4058 = vadd.f32 %v4056, %v4057
      %v4059 = vsel %vm225, %v4002, 0.0
      %v4060 = vadd.f32 %v4058, %v4059
      %v4061 = vsel %vm225, %v4003, 0.0
      %v4062 = vadd.f32 %v4060, %v4061
      %v4063 = vsel %vm225, %v4004, 0.0
      %v4064 = vadd.f32 %v4062, %v4063
      %v4065 = vsel %vm225, %v4005, 0.0
      %v4066 = vadd.f32 %v4064, %v4065
      %v4067 = vsel %vm225, %v4006, 0.0
      %v4068 = vadd.f32 %v4066, %v4067
      %v4069 = vsel %vm225, %v4007, 0.0
      %v4070 = vadd.f32 %v4068, %v4069
      %v4071 = vrot.slane %v4070, 4
      %v4072 = vadd.f32 %v4070, %v4071
      %v4073 = vrot.slane %v4072, 2
      %v4074 = vadd.f32 %v4072, %v4073
      %v4075 = vrot.slane %v4074, 1
      %v4076 = vadd.f32 %v4074, %v4075
      %v4077 = vadd.f32 %v3975, %v4076
      %4078 = vst.msk [vmem:[#allocation3] sm:$0xff] %vm225, %v4077
      %v4079 = vld [vmem:[#allocation2] sm:$0xff]
      %v4080 = vld [vmem:[%s2] sm:$0xff]
      %v4081 = vld [vmem:[%s2 + $0x8] sm:$0xff]
      %v4083 = vsel %vm225, %v4079, 0
      %4085 = vmatprep.subr.mxu0 0.0
      %4086 = vmatpush1.msra.mxu0 %v4080
      %4087 = vmatprep.subr.mxu0 0.0
      %4088 = vmatpush1.msra.mxu0 %v4081
      %4089 = vmatprep.subr.mxu0 0.0
      %4090 = vmatpush1.msra.mxu0 0.0
      %4091 = vmatprep.subr.mxu0 0.0
      %4092 = vmatpush1.msra.mxu0 0.0
      %4093 = vmatprep.subr.mxu0 0.0
      %4094 = vmatpush1.msra.mxu0 0.0
      %4095 = vmatprep.subr.mxu0 0.0
      %4096 = vmatpush1.msra.mxu0 0.0
      %4097 = vmatprep.subr.mxu0 0.0
      %4098 = vmatpush1.msra.mxu0 0.0
      %4099 = vmatprep.subr.mxu0 0.0
      %4100 = vmatpush1.msra.mxu0 0.0
      %4101 = vmatprep.subr.mxu0 0.0
      %4102 = vmatpush1.msra.mxu0 0.0
      %4103 = vmatprep.subr.mxu0 0.0
      %4104 = vmatpush1.msra.mxu0 0.0
      %4105 = vmatprep.subr.mxu0 0.0
      %4106 = vmatpush1.msra.mxu0 0.0
      %4107 = vmatprep.subr.mxu0 0.0
      %4108 = vmatpush1.msra.mxu0 0.0
      %4109 = vmatprep.subr.mxu0 0.0
      %4110 = vmatpush1.msra.mxu0 0.0
      %4111 = vmatprep.subr.mxu0 0.0
      %4112 = vmatpush1.msra.mxu0 0.0
      %4113 = vmatprep.subr.mxu0 0.0
      %4114 = vmatpush1.msra.mxu0 0.0
      %4115 = vmatprep.subr.mxu0 0.0
      %4116 = vmatpush1.msra.mxu0 0.0
      %4117 = vmatprep.subr.mxu0 0.0
      %4118 = vmatpush1.msra.mxu0 0.0
      %4119 = vmatprep.subr.mxu0 0.0
      %4120 = vmatpush1.msra.mxu0 0.0
      %4121 = vmatprep.subr.mxu0 0.0
      %4122 = vmatpush1.msra.mxu0 0.0
      %4123 = vmatprep.subr.mxu0 0.0
      %4124 = vmatpush1.msra.mxu0 0.0
      %4125 = vmatprep.subr.mxu0 0.0
      %4126 = vmatpush1.msra.mxu0 0.0
      %4127 = vmatprep.subr.mxu0 0.0
      %4128 = vmatpush1.msra.mxu0 0.0
      %4129 = vmatprep.subr.mxu0 0.0
      %4130 = vmatpush1.msra.mxu0 0.0
      %4131 = vmatprep.subr.mxu0 0.0
      %4132 = vmatpush1.msra.mxu0 0.0
      %4133 = vmatprep.subr.mxu0 0.0
      %4134 = vmatpush1.msra.mxu0 0.0
      %4135 = vmatprep.subr.mxu0 0.0
      %4136 = vmatpush1.msra.mxu0 0.0
      %4137 = vmatprep.subr.mxu0 0.0
      %4138 = vmatpush1.msra.mxu0 0.0
      %4139 = vmatprep.subr.mxu0 0.0
      %4140 = vmatpush1.msra.mxu0 0.0
      %4141 = vmatprep.subr.mxu0 0.0
      %4142 = vmatpush1.msra.mxu0 0.0
      %4143 = vmatprep.subr.mxu0 0.0
      %4144 = vmatpush1.msra.mxu0 0.0
      %4145 = vmatprep.subr.mxu0 0.0
      %4146 = vmatpush1.msra.mxu0 0.0
      %4147 = vmatprep.subr.mxu0 0.0
      %4148 = vmatpush1.msra.mxu0 0.0
      %4149 = vmatprep.mubr.f32.mxu0 0.0
      %4150 = vmatmul.mubr.f32.gmra.mrb[0].mxu0 %v4083
      %v4151 = vpop.f32.mrb[0].mxu0
      %v4152 = vadd.f32 0.0, %v4151
      %v4153 = vpop.f32.mrb[0].mxu0
      %4154 = vdwg.mxu0
      %v4155 = vld [vmem:[#allocation3] sm:$0xff]
      %v4157 = vsel %vm225, %v4155, 0
      %4159 = vmatprep.subr.mxu0 0.0
      %4160 = vmatpush1.msra.mxu0 %v4080
      %4161 = vmatprep.subr.mxu0 0.0
      %4162 = vmatpush1.msra.mxu0 %v4081
      %4163 = vmatprep.subr.mxu0 0.0
      %4164 = vmatpush1.msra.mxu0 0.0
      %4165 = vmatprep.subr.mxu0 0.0
      %4166 = vmatpush1.msra.mxu0 0.0
      %4167 = vmatprep.subr.mxu0 0.0
      %4168 = vmatpush1.msra.mxu0 0.0
      %4169 = vmatprep.subr.mxu0 0.0
      %4170 = vmatpush1.msra.mxu0 0.0
      %4171 = vmatprep.subr.mxu0 0.0
      %4172 = vmatpush1.msra.mxu0 0.0
      %4173 = vmatprep.subr.mxu0 0.0
      %4174 = vmatpush1.msra.mxu0 0.0
      %4175 = vmatprep.subr.mxu0 0.0
      %4176 = vmatpush1.msra.mxu0 0.0
      %4177 = vmatprep.subr.mxu0 0.0
      %4178 = vmatpush1.msra.mxu0 0.0
      %4179 = vmatprep.subr.mxu0 0.0
      %4180 = vmatpush1.msra.mxu0 0.0
      %4181 = vmatprep.subr.mxu0 0.0
      %4182 = vmatpush1.msra.mxu0 0.0
      %4183 = vmatprep.subr.mxu0 0.0
      %4184 = vmatpush1.msra.mxu0 0.0
      %4185 = vmatprep.subr.mxu0 0.0
      %4186 = vmatpush1.msra.mxu0 0.0
      %4187 = vmatprep.subr.mxu0 0.0
      %4188 = vmatpush1.msra.mxu0 0.0
      %4189 = vmatprep.subr.mxu0 0.0
      %4190 = vmatpush1.msra.mxu0 0.0
      %4191 = vmatprep.subr.mxu0 0.0
      %4192 = vmatpush1.msra.mxu0 0.0
      %4193 = vmatprep.subr.mxu0 0.0
      %4194 = vmatpush1.msra.mxu0 0.0
      %4195 = vmatprep.subr.mxu0 0.0
      %4196 = vmatpush1.msra.mxu0 0.0
      %4197 = vmatprep.subr.mxu0 0.0
      %4198 = vmatpush1.msra.mxu0 0.0
      %4199 = vmatprep.subr.mxu0 0.0
      %4200 = vmatpush1.msra.mxu0 0.0
      %4201 = vmatprep.subr.mxu0 0.0
      %4202 = vmatpush1.msra.mxu0 0.0
      %4203 = vmatprep.subr.mxu0 0.0
      %4204 = vmatpush1.msra.mxu0 0.0
      %4205 = vmatprep.subr.mxu0 0.0
      %4206 = vmatpush1.msra.mxu0 0.0
      %4207 = vmatprep.subr.mxu0 0.0
      %4208 = vmatpush1.msra.mxu0 0.0
      %4209 = vmatprep.subr.mxu0 0.0
      %4210 = vmatpush1.msra.mxu0 0.0
      %4211 = vmatprep.subr.mxu0 0.0
      %4212 = vmatpush1.msra.mxu0 0.0
      %4213 = vmatprep.subr.mxu0 0.0
      %4214 = vmatpush1.msra.mxu0 0.0
      %4215 = vmatprep.subr.mxu0 0.0
      %4216 = vmatpush1.msra.mxu0 0.0
      %4217 = vmatprep.subr.mxu0 0.0
      %4218 = vmatpush1.msra.mxu0 0.0
      %4219 = vmatprep.subr.mxu0 0.0
      %4220 = vmatpush1.msra.mxu0 0.0
      %4221 = vmatprep.subr.mxu0 0.0
      %4222 = vmatpush1.msra.mxu0 0.0
      %4223 = vmatprep.mubr.f32.mxu0 0.0
      %4224 = vmatmul.mubr.f32.gmra.mrb[0].mxu0 %v4157
      %v4225 = vpop.f32.mrb[0].mxu0
      %v4226 = vadd.f32 0.0, %v4225
      %v4227 = vpop.f32.mrb[0].mxu0
      %4228 = vdwg.mxu0
      %v4229 = vmul.f32 %v4152, 0.00048828125
      %v4230 = vmul.f32 %v4226, 0.00048828125
      %v4231 = vmul.f32 %v4229, %v4229
      %v4232 = vsub.f32 %v4230, %v4231
      %v4233 = vmax.f32 %v4232, 0.0
      %v4234 = vadd.f32 %v4233, 1e-05
      %v4235 = vrsqrt.pop %v4234
      %v4236 = vld [vmem:[%s3] sm:$0x1]
      %v4238 = vlaneseq
      %v4239 = vshrl.u32 %v4238, 7
      %v4240 = vsub.s32 0, %v4239
      %v4241 = vrot.slane %v4236, %v4240
      %v4243 = vmul.f32 %v4241, %v4235
      %v4244 = vld [vmem:[%s4] sm:$0x1]
      %v4245 = vmul.f32 %v4229, %v4243
      %v4247 = vlaneseq
      %v4248 = vshrl.u32 %v4247, 7
      %v4249 = vsub.s32 0, %v4248
      %v4250 = vrot.slane %v4244, %v4249
      %v4252 = vsub.f32 %v4250, %v4245
      %v4253 = vld [vmem:[%s224] sm:$0xff]
      %v4254 = vld [vmem:[%s224 + $0x8] sm:$0xff]
      %v4255 = vld [vmem:[%s224 + $0x10] sm:$0xff]
      %v4256 = vld [vmem:[%s224 + $0x18] sm:$0xff]
      %v4257 = vld [vmem:[%s224 + $0x20] sm:$0xff]
      %v4258 = vld [vmem:[%s224 + $0x28] sm:$0xff]
      %v4259 = vld [vmem:[%s224 + $0x30] sm:$0xff]
      %v4260 = vld [vmem:[%s224 + $0x38] sm:$0xff]
      %v4261 = vld [vmem:[%s224 + $0x40] sm:$0xff]
      %v4262 = vld [vmem:[%s224 + $0x48] sm:$0xff]
      %v4263 = vld [vmem:[%s224 + $0x50] sm:$0xff]
      %v4264 = vld [vmem:[%s224 + $0x58] sm:$0xff]
      %v4265 = vld [vmem:[%s224 + $0x60] sm:$0xff]
      %v4266 = vld [vmem:[%s224 + $0x68] sm:$0xff]
      %v4267 = vld [vmem:[%s224 + $0x70] sm:$0xff]
      %v4268 = vld [vmem:[%s224 + $0x78] sm:$0xff]
      %v4269 = vld [vmem:[%s224 + $0x80] sm:$0xff]
      %v4270 = vld [vmem:[%s224 + $0x88] sm:$0xff]
      %v4271 = vld [vmem:[%s224 + $0x90] sm:$0xff]
      %v4272 = vld [vmem:[%s224 + $0x98] sm:$0xff]
      %v4273 = vld [vmem:[%s224 + $0xa0] sm:$0xff]
      %v4274 = vld [vmem:[%s224 + $0xa8] sm:$0xff]
      %v4275 = vld [vmem:[%s224 + $0xb0] sm:$0xff]
      %v4276 = vld [vmem:[%s224 + $0xb8] sm:$0xff]
      %v4277 = vld [vmem:[%s224 + $0xc0] sm:$0xff]
      %v4278 = vld [vmem:[%s224 + $0xc8] sm:$0xff]
      %v4279 = vld [vmem:[%s224 + $0xd0] sm:$0xff]
      %v4280 = vld [vmem:[%s224 + $0xd8] sm:$0xff]
      %v4281 = vld [vmem:[%s224 + $0xe0] sm:$0xff]
      %v4282 = vld [vmem:[%s224 + $0xe8] sm:$0xff]
      %v4283 = vld [vmem:[%s224 + $0xf0] sm:$0xff]
      %v4284 = vld [vmem:[%s224 + $0xf8] sm:$0xff]
      %v4285 = vlaneseq
      %v4286 = vshrl.u32 %v4285, 7
      %v4287 = vsub.s32 0, %v4286
      %v4288 = vrot.slane %v4243, %v4287
      %v4289 = vmul.f32 %v4253, %v4288
      %v4290 = vmul.f32 %v4254, %v4288
      %v4291 = vmul.f32 %v4255, %v4288
      %v4292 = vmul.f32 %v4256, %v4288
      %v4293 = vmul.f32 %v4257, %v4288
      %v4294 = vmul.f32 %v4258, %v4288
      %v4295 = vmul.f32 %v4259, %v4288
      %v4296 = vmul.f32 %v4260, %v4288
      %v4297 = vmul.f32 %v4261, %v4288
      %v4298 = vmul.f32 %v4262, %v4288
      %v4299 = vmul.f32 %v4263, %v4288
      %v4300 = vmul.f32 %v4264, %v4288
      %v4301 = vmul.f32 %v4265, %v4288
      %v4302 = vmul.f32 %v4266, %v4288
      %v4303 = vmul.f32 %v4267, %v4288
      %v4304 = vmul.f32 %v4268, %v4288
      %v4305 = vmul.f32 %v4269, %v4288
      %v4306 = vmul.f32 %v4270, %v4288
      %v4307 = vmul.f32 %v4271, %v4288
      %v4308 = vmul.f32 %v4272, %v4288
      %v4309 = vmul.f32 %v4273, %v4288
      %v4310 = vmul.f32 %v4274, %v4288
      %v4311 = vmul.f32 %v4275, %v4288
      %v4312 = vmul.f32 %v4276, %v4288
      %v4313 = vmul.f32 %v4277, %v4288
      %v4314 = vmul.f32 %v4278, %v4288
      %v4315 = vmul.f32 %v4279, %v4288
      %v4316 = vmul.f32 %v4280, %v4288
      %v4317 = vmul.f32 %v4281, %v4288
      %v4318 = vmul.f32 %v4282, %v4288
      %v4319 = vmul.f32 %v4283, %v4288
      %v4320 = vmul.f32 %v4284, %v4288
      %v4321 = vlaneseq
      %v4322 = vshrl.u32 %v4321, 7
      %v4323 = vsub.s32 0, %v4322
      %v4324 = vrot.slane %v4252, %v4323
      %v4325 = vadd.f32 %v4289, %v4324
      %v4326 = vadd.f32 %v4290, %v4324
      %v4327 = vadd.f32 %v4291, %v4324
      %v4328 = vadd.f32 %v4292, %v4324
      %v4329 = vadd.f32 %v4293, %v4324
      %v4330 = vadd.f32 %v4294, %v4324
      %v4331 = vadd.f32 %v4295, %v4324
      %v4332 = vadd.f32 %v4296, %v4324
      %v4333 = vadd.f32 %v4297, %v4324
      %v4334 = vadd.f32 %v4298, %v4324
      %v4335 = vadd.f32 %v4299, %v4324
      %v4336 = vadd.f32 %v4300, %v4324
      %v4337 = vadd.f32 %v4301, %v4324
      %v4338 = vadd.f32 %v4302, %v4324
      %v4339 = vadd.f32 %v4303, %v4324
      %v4340 = vadd.f32 %v4304, %v4324
      %v4341 = vadd.f32 %v4305, %v4324
      %v4342 = vadd.f32 %v4306, %v4324
      %v4343 = vadd.f32 %v4307, %v4324
      %v4344 = vadd.f32 %v4308, %v4324
      %v4345 = vadd.f32 %v4309, %v4324
      %v4346 = vadd.f32 %v4310, %v4324
      %v4347 = vadd.f32 %v4311, %v4324
      %v4348 = vadd.f32 %v4312, %v4324
      %v4349 = vadd.f32 %v4313, %v4324
      %v4350 = vadd.f32 %v4314, %v4324
      %v4351 = vadd.f32 %v4315, %v4324
      %v4352 = vadd.f32 %v4316, %v4324
      %v4353 = vadd.f32 %v4317, %v4324
      %v4354 = vadd.f32 %v4318, %v4324
      %v4355 = vadd.f32 %v4319, %v4324
      %v4356 = vadd.f32 %v4320, %v4324
      %v4357 = vmax.f32 %v4325, 0.0
      %v4358 = vmax.f32 %v4326, 0.0
      %v4359 = vmax.f32 %v4327, 0.0
      %v4360 = vmax.f32 %v4328, 0.0
      %v4361 = vmax.f32 %v4329, 0.0
      %v4362 = vmax.f32 %v4330, 0.0
      %v4363 = vmax.f32 %v4331, 0.0
      %v4364 = vmax.f32 %v4332, 0.0
      %v4365 = vmax.f32 %v4333, 0.0
      %v4366 = vmax.f32 %v4334, 0.0
      %v4367 = vmax.f32 %v4335, 0.0
      %v4368 = vmax.f32 %v4336, 0.0
      %v4369 = vmax.f32 %v4337, 0.0
      %v4370 = vmax.f32 %v4338, 0.0
      %v4371 = vmax.f32 %v4339, 0.0
      %v4372 = vmax.f32 %v4340, 0.0
      %v4373 = vmax.f32 %v4341, 0.0
      %v4374 = vmax.f32 %v4342, 0.0
      %v4375 = vmax.f32 %v4343, 0.0
      %v4376 = vmax.f32 %v4344, 0.0
      %v4377 = vmax.f32 %v4345, 0.0
      %v4378 = vmax.f32 %v4346, 0.0
      %v4379 = vmax.f32 %v4347, 0.0
      %v4380 = vmax.f32 %v4348, 0.0
      %v4381 = vmax.f32 %v4349, 0.0
      %v4382 = vmax.f32 %v4350, 0.0
      %v4383 = vmax.f32 %v4351, 0.0
      %v4384 = vmax.f32 %v4352, 0.0
      %v4385 = vmax.f32 %v4353, 0.0
      %v4386 = vmax.f32 %v4354, 0.0
      %v4387 = vmax.f32 %v4355, 0.0
      %v4388 = vmax.f32 %v4356, 0.0
      %4389 = vst.msk [vmem:[%s224] sm:$0xff] %vm225, %v4357
      %4390 = vst.msk [vmem:[%s224 + $0x8] sm:$0xff] %vm225, %v4358
      %4391 = vst.msk [vmem:[%s224 + $0x10] sm:$0xff] %vm225, %v4359
      %4392 = vst.msk [vmem:[%s224 + $0x18] sm:$0xff] %vm225, %v4360
      %4393 = vst.msk [vmem:[%s224 + $0x20] sm:$0xff] %vm225, %v4361
      %4394 = vst.msk [vmem:[%s224 + $0x28] sm:$0xff] %vm225, %v4362
      %4395 = vst.msk [vmem:[%s224 + $0x30] sm:$0xff] %vm225, %v4363
      %4396 = vst.msk [vmem:[%s224 + $0x38] sm:$0xff] %vm225, %v4364
      %4397 = vst.msk [vmem:[%s224 + $0x40] sm:$0xff] %vm225, %v4365
      %4398 = vst.msk [vmem:[%s224 + $0x48] sm:$0xff] %vm225, %v4366
      %4399 = vst.msk [vmem:[%s224 + $0x50] sm:$0xff] %vm225, %v4367
      %4400 = vst.msk [vmem:[%s224 + $0x58] sm:$0xff] %vm225, %v4368
      %4401 = vst.msk [vmem:[%s224 + $0x60] sm:$0xff] %vm225, %v4369
      %4402 = vst.msk [vmem:[%s224 + $0x68] sm:$0xff] %vm225, %v4370
      %4403 = vst.msk [vmem:[%s224 + $0x70] sm:$0xff] %vm225, %v4371
      %4404 = vst.msk [vmem:[%s224 + $0x78] sm:$0xff] %vm225, %v4372
      %4405 = vst.msk [vmem:[%s224 + $0x80] sm:$0xff] %vm225, %v4373
      %4406 = vst.msk [vmem:[%s224 + $0x88] sm:$0xff] %vm225, %v4374
      %4407 = vst.msk [vmem:[%s224 + $0x90] sm:$0xff] %vm225, %v4375
      %4408 = vst.msk [vmem:[%s224 + $0x98] sm:$0xff] %vm225, %v4376
      %4409 = vst.msk [vmem:[%s224 + $0xa0] sm:$0xff] %vm225, %v4377
      %4410 = vst.msk [vmem:[%s224 + $0xa8] sm:$0xff] %vm225, %v4378
      %4411 = vst.msk [vmem:[%s224 + $0xb0] sm:$0xff] %vm225, %v4379
      %4412 = vst.msk [vmem:[%s224 + $0xb8] sm:$0xff] %vm225, %v4380
      %4413 = vst.msk [vmem:[%s224 + $0xc0] sm:$0xff] %vm225, %v4381
      %4414 = vst.msk [vmem:[%s224 + $0xc8] sm:$0xff] %vm225, %v4382
      %4415 = vst.msk [vmem:[%s224 + $0xd0] sm:$0xff] %vm225, %v4383
      %4416 = vst.msk [vmem:[%s224 + $0xd8] sm:$0xff] %vm225, %v4384
      %4417 = vst.msk [vmem:[%s224 + $0xe0] sm:$0xff] %vm225, %v4385
      %4418 = vst.msk [vmem:[%s224 + $0xe8] sm:$0xff] %vm225, %v4386
      %4419 = vst.msk [vmem:[%s224 + $0xf0] sm:$0xff] %vm225, %v4387
      %4420 = vst.msk [vmem:[%s224 + $0xf8] sm:$0xff] %vm225, %v4388
      %p4421 = scmp.lt.s32.totalorder %s16, 1
      %s4422 = scalar_select %p4421, %s16, 1
      %s4423 = smul.addr %s4422, 32
      %s4424 = smul.addr %s4423, 8
      %s4425 = scalar_lea.vmem %s5, %s4424
      // Predicated region
      $region41: #{conv_gn_relu.1} parent=39 // pred_check
        %p4426 = pneg %p144
      $region42: #{conv_gn_relu.1} parent=39 // pred_check_branch
        %4428 = sbr.rel (%p4426) target = $region44
      $region43: #{conv_gn_relu.1} parent=39 // pred_region
        _
      $region44: #{conv_gn_relu.1} parent=39 // pred_fallthru
        _
    $region40: #{conv_gn_relu.1} parent=5 // pred_fallthru
      _
    %p4429 = scmp.le.s32.totalorder 2, %s11
    // Predicated region
    $region45: #{conv_gn_relu.1} parent=5 // pred_check
      %p4430 = pneg %p4429
    $region46: #{conv_gn_relu.1} parent=5 // pred_check_branch
      %4432 = sbr.rel (%p4430) target = $region48
    $region47: #{conv_gn_relu.1} parent=5 // pred_region
      %s4433 = ssub.s32 %s11, 2
      // Predicated region
      $region49: #{conv_gn_relu.1} parent=47 // pred_check
        %p4434 = pneg %p150
      $region50: #{conv_gn_relu.1} parent=47 // pred_check_branch
        %4436 = sbr.rel (%p4434) target = $region52
      $region51: #{conv_gn_relu.1} parent=47 // pred_region
        %p4437 = scmp.lt.s32.totalorder %s17, 1
        %s4438 = scalar_select %p4437, %s17, 1
        %s4439 = smul.addr %s4438, 32
        %s4440 = smul.addr %s4439, 8
        %s4441 = scalar_lea.vmem %s5, %s4440
      $region52: #{conv_gn_relu.1} parent=47 // pred_fallthru
        _
    $region48: #{conv_gn_relu.1} parent=5 // pred_fallthru
      _
  $region6: #{conv_gn_relu.1} parent=0 // loop_footer
    %s15 = sadd.s32 1, %s11
  $region7: #{conv_gn_relu.1} parent=0 // loop_footer_branch
    %10 = sbr.rel target = $region3
  $region8: #{conv_gn_relu.1} parent=0 // loop_exit
    _

</llo_original>
